<compile_context>
chip_gen: v7x
topology: tpu7x:2x2x1
jax: 0.10.0
libtpu: 0.0.40
codegen_flags: <defaults>
</compile_context>

<pallas_src>
import functools
import math

import jax
import jax.numpy as jnp
from jax import lax
from jax.experimental import pallas as pl
from jax.experimental.pallas import tpu as pltpu


def _self_attention_kernel(x_ref, wqkv_ref, bqkv_ref, wo_ref, bo_ref, o_ref,
                           *, C, H, W, Bt):
    # x_ref:    (Bt, H+2, W+2, C)  halo-padded NHWC input block
    # wqkv_ref: (9, C, 3C)         per-tap fused q/k/v weights (q block pre-scaled)
    # bqkv_ref: (1, 3C)            fused q/k/v biases (q bias pre-scaled)
    # wo_ref:   (C_pad, C)         1x1 conv weight, out-channels padded to 8 sublanes
    # bo_ref:   (C_pad, 1)         1x1 conv bias (padded rows are zero)
    # o_ref:    (Bt, C_pad, HW)    channel-major (lane-dense) output
    HW = H * W

    for b in range(Bt):  # Bt <= 4: small static unroll, images are independent
        # ---- fused q/k/v 3x3 conv: in-VMEM im2col as 9 shift-and-matmul taps ----
        # Start the accumulator from the fused bias row (broadcast once per image).
        qkv = jnp.broadcast_to(bqkv_ref[...], (HW, 3 * C))
        for kh in range(3):
            for kw in range(3):
                win = x_ref[b, pl.ds(kh, H), pl.ds(kw, W), :].reshape(HW, C)
                qkv = qkv + jnp.dot(win, wqkv_ref[3 * kh + kw],
                                    preferred_element_type=jnp.float32)

        q = qkv[:, 0 * C:1 * C]            # already scaled by 1/sqrt(C)
        k = qkv[:, 1 * C:2 * C]
        v = qkv[:, 2 * C:3 * C]

        # energy[i, j] = <q_i, k_j>; NT dot_general avoids materializing k^T.
        energy = lax.dot_general(q, k, (((1,), (1,)), ((), ())),
                                 preferred_element_type=jnp.float32)   # (HW, HW)
        energy = energy - jnp.max(energy, axis=-1, keepdims=True)
        e = jnp.exp(energy)

        # Deferred softmax normalization: matmul the unnormalized exponentials,
        # then rescale the small (HW, C) accumulator instead of the (HW, HW) weights.
        row_sum = jnp.sum(e, axis=-1, keepdims=True)                   # (HW, 1)
        acc = jnp.dot(e, v, preferred_element_type=jnp.float32)        # (HW, C)
        acc = acc * pl.reciprocal(row_sum)   # exact recip: keeps the 1e-4 tolerance

        # Final 1x1 conv computed transposed -> lane-dense (C_pad, HW) store.
        out_t = lax.dot_general(wo_ref[...], acc, (((1,), (1,)), ((), ())),
                                preferred_element_type=jnp.float32)    # (C_pad, HW)
        o_ref[b] = out_t + bo_ref[...]


def _pick_batch_tile(B):
    """Keep >= 2 grid steps when B >= 2 (v7x: feed both TensorCores) while packing
    a few images per step to amortize per-step overhead on single-TC v5e/v6e."""
    if B < 2:
        return max(B, 1)
    for bt in (4, 3, 2):
        if B % bt == 0 and B // bt >= 2:
            return bt
    return 1


def self_attention(x, params, *, batch_tile=None):
    """x: (B, C, H, W) float32, NCHW (matches the PyTorch module)."""
    B, C, H, W = x.shape
    HW = H * W
    dk = float(C) ** 0.5
    C_pad = ((max(C, 8) + 7) // 8) * 8          # full-sublane output channel block

    # NHWC + 1-pixel zero halo: the only HBM-side prep (one small XLA fusion).
    # The 9x im2col expansion now happens in VMEM inside the kernel.
    x_pad = jnp.pad(jnp.transpose(x.astype(jnp.float32), (0, 2, 3, 1)),
                    ((0, 0), (1, 1), (1, 1), (0, 0)))        # (B, H+2, W+2, C)

    # Fused per-tap q/k/v weights (9, C_in, 3*C_out); the q block (weights AND bias)
    # is pre-scaled by 1/sqrt(C) so the kernel never rescales energy.
    def taps(w, s=1.0):                                       # (C,C,3,3)->(9,Cin,Cout)
        return jnp.transpose(w.astype(jnp.float32), (2, 3, 1, 0)).reshape(9, C, C) * s

    w_qkv = jnp.concatenate([taps(params["wq"], 1.0 / dk),
                             taps(params["wk"]),
                             taps(params["wv"])], axis=-1)    # (9, C, 3C)
    b_qkv = jnp.concatenate([params["bq"] / dk, params["bk"],
                             params["bv"]]).reshape(1, 3 * C).astype(jnp.float32)

    wo = jnp.pad(params["wo"].reshape(C, C).astype(jnp.float32),
                 ((0, C_pad - C), (0, 0)))                    # (C_pad, C)
    bo = jnp.pad(params["bo"].reshape(C, 1).astype(jnp.float32),
                 ((0, C_pad - C), (0, 0)))                    # (C_pad, 1)

    Bt = batch_tile if batch_tile is not None else _pick_batch_tile(B)
    assert B % Bt == 0, "batch tile must divide the batch"
    steps = B // Bt

    # Scoped-VMEM hint: energy + e dominate (2*HW^2 f32 per live image); v5e's
    # 16 MiB scoped default trips first as HW grows. Clamp to v7x physical (64 MiB);
    # beyond that the flash-tiled path (TODO above) is required anyway.
    live_f32 = (2 * HW * HW + 10 * HW * max(C, C_pad)
                + 2 * Bt * ((H + 2) * (W + 2) * C + C_pad * HW))
    vmem_limit = int(min(64 * 2 ** 20, max(32 * 2 ** 20, 8 * live_f32)))

    kernel = functools.partial(_self_attention_kernel, C=C, H=H, W=W, Bt=Bt)

    out = pl.pallas_call(
        kernel,
        out_shape=jax.ShapeDtypeStruct((B, C_pad, HW), jnp.float32),
        grid=(steps,),
        in_specs=[
            pl.BlockSpec((Bt, H + 2, W + 2, C), lambda i: (i, 0, 0, 0)),  # halo'd x
            pl.BlockSpec((9, C, 3 * C), lambda i: (0, 0, 0)),             # qkv taps
            pl.BlockSpec((1, 3 * C), lambda i: (0, 0)),                   # qkv bias
            pl.BlockSpec((C_pad, C), lambda i: (0, 0)),                   # 1x1 conv W
            pl.BlockSpec((C_pad, 1), lambda i: (0, 0)),                   # 1x1 conv b
        ],
        out_specs=pl.BlockSpec((Bt, C_pad, HW), lambda i: (i, 0, 0)),
        compiler_params=pltpu.CompilerParams(
            dimension_semantics=("parallel",),
            vmem_limit_bytes=vmem_limit),
    )(x_pad, w_qkv, b_qkv, wo, bo)

    # Drop the channel padding; (B, C, HW) -> (B, C, H, W) is a pure reshape
    # (no transpose needed: the kernel writes channel-major, lane-dense output).
    return out[:, :C, :].reshape(B, C, H, W)


def init_params(key, c):
    """Deterministic parameter init (shapes match the PyTorch module)."""
    keys = jax.random.split(key, 8)
    scale3 = 1.0 / math.sqrt(c * 9)
    scale1 = 1.0 / math.sqrt(c)
    return {
        "wq": jax.random.uniform(keys[0], (c, c, 3, 3), jnp.float32, -scale3, scale3),
        "bq": jax.random.uniform(keys[1], (c,), jnp.float32, -scale3, scale3),
        "wk": jax.random.uniform(keys[2], (c, c, 3, 3), jnp.float32, -scale3, scale3),
        "bk": jax.random.uniform(keys[3], (c,), jnp.float32, -scale3, scale3),
        "wv": jax.random.uniform(keys[4], (c, c, 3, 3), jnp.float32, -scale3, scale3),
        "bv": jax.random.uniform(keys[5], (c,), jnp.float32, -scale3, scale3),
        "wo": jax.random.uniform(keys[6], (c, c, 1, 1), jnp.float32, -scale1, scale1),
        "bo": jax.random.uniform(keys[7], (c,), jnp.float32, -scale1, scale1),
    }


def _reference(x, params):
    """Pure-JAX reference using lax.conv (mirrors the PyTorch forward)."""
    B, C, H, W = x.shape
    dn = jax.lax.conv_dimension_numbers(x.shape, params["wq"].shape,
                                        ("NCHW", "OIHW", "NCHW"))

    def conv(x, w, b, pad):
        y = jax.lax.conv_general_dilated(x, w, (1, 1), [(pad, pad), (pad, pad)],
                                         dimension_numbers=dn)
        return y + b.reshape(1, C, 1, 1)

    q = conv(x, params["wq"], params["bq"], 1).reshape(B, C, -1).transpose(0, 2, 1)
    k = conv(x, params["wk"], params["bk"], 1).reshape(B, C, -1)
    v = conv(x, params["wv"], params["bv"], 1).reshape(B, C, -1)
    energy = jnp.einsum("bic,bcj->bij", q, k) / (C ** 0.5)
    attn = jax.nn.softmax(energy, axis=-1)
    out = jnp.einsum("bcj,bij->bci", v, attn).reshape(B, C, H, W)
    dn1 = jax.lax.conv_dimension_numbers(out.shape, params["wo"].shape,
                                         ("NCHW", "OIHW", "NCHW"))
    out = jax.lax.conv_general_dilated(out, params["wo"], (1, 1), [(0, 0), (0, 0)],
                                       dimension_numbers=dn1)
    return out + params["bo"].reshape(1, C, 1, 1)


if __name__ == "__main__":
    B, C, H, W = 2, 4, 16, 16
    key = jax.random.PRNGKey(0)
    kx, kp = jax.random.split(key)
    x = jax.random.normal(kx, (B, C, H, W), jnp.float32)
    params = init_params(kp, C)

    out = self_attention(x, params)
    out = jax.block_until_ready(out)

    ref = jax.block_until_ready(_reference(x, params))
    assert out.shape == (B, C, H, W)
    assert jnp.allclose(out, ref, atol=1e-4, rtol=1e-4), "mismatch vs reference"

    print("KERNEL_OK")
</pallas_src>

<mosaic_0001>
module attributes {stable_mosaic.version = 11 : i64} {
  func.func @_self_attention_kernel(%arg0: i32, %arg1: memref<1x18x18x4xf32, #tpu.memory_space<vmem>>, %arg2: memref<9x4x12xf32, #tpu.memory_space<vmem>>, %arg3: memref<1x12xf32, #tpu.memory_space<vmem>>, %arg4: memref<8x4xf32, #tpu.memory_space<vmem>>, %arg5: memref<8x1xf32, #tpu.memory_space<vmem>>, %arg6: memref<1x8x256xf32, #tpu.memory_space<vmem>>) attributes {dimension_semantics = [#tpu.dimension_semantics<parallel>], iteration_bounds = array<i64: 2>, scalar_prefetch = 0 : i64, scratch_operands = 0 : i64, tpu.core_type = #tpu.core_type<tc>, window_params = [{transform_indices = @transform_0, window_bounds = array<i64: 1, 18, 18, 4>}, {pipeline_mode = #tpu.pipeline_mode<synchronous>, transform_indices = @transform_1, window_bounds = array<i64: 9, 4, 12>}, {pipeline_mode = #tpu.pipeline_mode<synchronous>, transform_indices = @transform_2, window_bounds = array<i64: 1, 12>}, {pipeline_mode = #tpu.pipeline_mode<synchronous>, transform_indices = @transform_3, window_bounds = array<i64: 8, 4>}, {pipeline_mode = #tpu.pipeline_mode<synchronous>, transform_indices = @transform_4, window_bounds = array<i64: 8, 1>}, {transform_indices = @transform_5, window_bounds = array<i64: 1, 8, 256>}]} {
    %c0 = arith.constant 0 : index
    %c0_0 = arith.constant 0 : index
    %0 = vector.load %arg3[%c0, %c0_0] : memref<1x12xf32, #tpu.memory_space<vmem>>, vector<1x12xf32>
    %1 = vector.shape_cast %0 : vector<1x12xf32> to vector<1x12xf32>
    %2 = vector.broadcast %1 : vector<1x12xf32> to vector<256x12xf32>
    %c0_1 = arith.constant 0 : index
    %c0_2 = arith.constant 0 : index
    %c0_3 = arith.constant 0 : index
    %c0_4 = arith.constant 0 : index
    %3 = vector.load %arg1[%c0_1, %c0_2, %c0_3, %c0_4] : memref<1x18x18x4xf32, #tpu.memory_space<vmem>>, vector<1x16x16x4xf32>
    %4 = vector.shape_cast %3 : vector<1x16x16x4xf32> to vector<16x16x4xf32>
    %5 = vector.shape_cast %4 : vector<16x16x4xf32> to vector<256x4xf32>
    %c0_5 = arith.constant 0 : index
    %c0_6 = arith.constant 0 : index
    %c0_7 = arith.constant 0 : index
    %6 = vector.load %arg2[%c0_5, %c0_6, %c0_7] : memref<9x4x12xf32, #tpu.memory_space<vmem>>, vector<1x4x12xf32>
    %7 = vector.shape_cast %6 : vector<1x4x12xf32> to vector<4x12xf32>
    %cst = arith.constant dense<0.000000e+00> : vector<256x12xf32>
    %8 = tpu.matmul %5, %7, %cst {dimension_numbers = #tpu.dot_dimension_numbers<[1], [0], [0], [1], [0, 0, 1, 1], [], []>} : vector<256x4xf32>, vector<4x12xf32>, vector<256x12xf32> -> vector<256x12xf32>
    %9 = arith.addf %2, %8 : vector<256x12xf32>
    %c0_8 = arith.constant 0 : index
    %c0_9 = arith.constant 0 : index
    %c1 = arith.constant 1 : index
    %c0_10 = arith.constant 0 : index
    %10 = vector.load %arg1[%c0_8, %c0_9, %c1, %c0_10] : memref<1x18x18x4xf32, #tpu.memory_space<vmem>>, vector<1x16x16x4xf32>
    %11 = vector.shape_cast %10 : vector<1x16x16x4xf32> to vector<16x16x4xf32>
    %12 = vector.shape_cast %11 : vector<16x16x4xf32> to vector<256x4xf32>
    %c1_11 = arith.constant 1 : index
    %c0_12 = arith.constant 0 : index
    %c0_13 = arith.constant 0 : index
    %13 = vector.load %arg2[%c1_11, %c0_12, %c0_13] : memref<9x4x12xf32, #tpu.memory_space<vmem>>, vector<1x4x12xf32>
    %14 = vector.shape_cast %13 : vector<1x4x12xf32> to vector<4x12xf32>
    %cst_14 = arith.constant dense<0.000000e+00> : vector<256x12xf32>
    %15 = tpu.matmul %12, %14, %cst_14 {dimension_numbers = #tpu.dot_dimension_numbers<[1], [0], [0], [1], [0, 0, 1, 1], [], []>} : vector<256x4xf32>, vector<4x12xf32>, vector<256x12xf32> -> vector<256x12xf32>
    %16 = arith.addf %9, %15 : vector<256x12xf32>
    %c0_15 = arith.constant 0 : index
    %c0_16 = arith.constant 0 : index
    %c2 = arith.constant 2 : index
    %c0_17 = arith.constant 0 : index
    %17 = vector.load %arg1[%c0_15, %c0_16, %c2, %c0_17] : memref<1x18x18x4xf32, #tpu.memory_space<vmem>>, vector<1x16x16x4xf32>
    %18 = vector.shape_cast %17 : vector<1x16x16x4xf32> to vector<16x16x4xf32>
    %19 = vector.shape_cast %18 : vector<16x16x4xf32> to vector<256x4xf32>
    %c2_18 = arith.constant 2 : index
    %c0_19 = arith.constant 0 : index
    %c0_20 = arith.constant 0 : index
    %20 = vector.load %arg2[%c2_18, %c0_19, %c0_20] : memref<9x4x12xf32, #tpu.memory_space<vmem>>, vector<1x4x12xf32>
    %21 = vector.shape_cast %20 : vector<1x4x12xf32> to vector<4x12xf32>
    %cst_21 = arith.constant dense<0.000000e+00> : vector<256x12xf32>
    %22 = tpu.matmul %19, %21, %cst_21 {dimension_numbers = #tpu.dot_dimension_numbers<[1], [0], [0], [1], [0, 0, 1, 1], [], []>} : vector<256x4xf32>, vector<4x12xf32>, vector<256x12xf32> -> vector<256x12xf32>
    %23 = arith.addf %16, %22 : vector<256x12xf32>
    %c0_22 = arith.constant 0 : index
    %c1_23 = arith.constant 1 : index
    %c0_24 = arith.constant 0 : index
    %c0_25 = arith.constant 0 : index
    %24 = vector.load %arg1[%c0_22, %c1_23, %c0_24, %c0_25] : memref<1x18x18x4xf32, #tpu.memory_space<vmem>>, vector<1x16x16x4xf32>
    %25 = vector.shape_cast %24 : vector<1x16x16x4xf32> to vector<16x16x4xf32>
    %26 = vector.shape_cast %25 : vector<16x16x4xf32> to vector<256x4xf32>
    %c3 = arith.constant 3 : index
    %c0_26 = arith.constant 0 : index
    %c0_27 = arith.constant 0 : index
    %27 = vector.load %arg2[%c3, %c0_26, %c0_27] : memref<9x4x12xf32, #tpu.memory_space<vmem>>, vector<1x4x12xf32>
    %28 = vector.shape_cast %27 : vector<1x4x12xf32> to vector<4x12xf32>
    %cst_28 = arith.constant dense<0.000000e+00> : vector<256x12xf32>
    %29 = tpu.matmul %26, %28, %cst_28 {dimension_numbers = #tpu.dot_dimension_numbers<[1], [0], [0], [1], [0, 0, 1, 1], [], []>} : vector<256x4xf32>, vector<4x12xf32>, vector<256x12xf32> -> vector<256x12xf32>
    %30 = arith.addf %23, %29 : vector<256x12xf32>
    %c0_29 = arith.constant 0 : index
    %c1_30 = arith.constant 1 : index
    %c1_31 = arith.constant 1 : index
    %c0_32 = arith.constant 0 : index
    %31 = vector.load %arg1[%c0_29, %c1_30, %c1_31, %c0_32] : memref<1x18x18x4xf32, #tpu.memory_space<vmem>>, vector<1x16x16x4xf32>
    %32 = vector.shape_cast %31 : vector<1x16x16x4xf32> to vector<16x16x4xf32>
    %33 = vector.shape_cast %32 : vector<16x16x4xf32> to vector<256x4xf32>
    %c4 = arith.constant 4 : index
    %c0_33 = arith.constant 0 : index
    %c0_34 = arith.constant 0 : index
    %34 = vector.load %arg2[%c4, %c0_33, %c0_34] : memref<9x4x12xf32, #tpu.memory_space<vmem>>, vector<1x4x12xf32>
    %35 = vector.shape_cast %34 : vector<1x4x12xf32> to vector<4x12xf32>
    %cst_35 = arith.constant dense<0.000000e+00> : vector<256x12xf32>
    %36 = tpu.matmul %33, %35, %cst_35 {dimension_numbers = #tpu.dot_dimension_numbers<[1], [0], [0], [1], [0, 0, 1, 1], [], []>} : vector<256x4xf32>, vector<4x12xf32>, vector<256x12xf32> -> vector<256x12xf32>
    %37 = arith.addf %30, %36 : vector<256x12xf32>
    %c0_36 = arith.constant 0 : index
    %c1_37 = arith.constant 1 : index
    %c2_38 = arith.constant 2 : index
    %c0_39 = arith.constant 0 : index
    %38 = vector.load %arg1[%c0_36, %c1_37, %c2_38, %c0_39] : memref<1x18x18x4xf32, #tpu.memory_space<vmem>>, vector<1x16x16x4xf32>
    %39 = vector.shape_cast %38 : vector<1x16x16x4xf32> to vector<16x16x4xf32>
    %40 = vector.shape_cast %39 : vector<16x16x4xf32> to vector<256x4xf32>
    %c5 = arith.constant 5 : index
    %c0_40 = arith.constant 0 : index
    %c0_41 = arith.constant 0 : index
    %41 = vector.load %arg2[%c5, %c0_40, %c0_41] : memref<9x4x12xf32, #tpu.memory_space<vmem>>, vector<1x4x12xf32>
    %42 = vector.shape_cast %41 : vector<1x4x12xf32> to vector<4x12xf32>
    %cst_42 = arith.constant dense<0.000000e+00> : vector<256x12xf32>
    %43 = tpu.matmul %40, %42, %cst_42 {dimension_numbers = #tpu.dot_dimension_numbers<[1], [0], [0], [1], [0, 0, 1, 1], [], []>} : vector<256x4xf32>, vector<4x12xf32>, vector<256x12xf32> -> vector<256x12xf32>
    %44 = arith.addf %37, %43 : vector<256x12xf32>
    %c0_43 = arith.constant 0 : index
    %c2_44 = arith.constant 2 : index
    %c0_45 = arith.constant 0 : index
    %c0_46 = arith.constant 0 : index
    %45 = vector.load %arg1[%c0_43, %c2_44, %c0_45, %c0_46] : memref<1x18x18x4xf32, #tpu.memory_space<vmem>>, vector<1x16x16x4xf32>
    %46 = vector.shape_cast %45 : vector<1x16x16x4xf32> to vector<16x16x4xf32>
    %47 = vector.shape_cast %46 : vector<16x16x4xf32> to vector<256x4xf32>
    %c6 = arith.constant 6 : index
    %c0_47 = arith.constant 0 : index
    %c0_48 = arith.constant 0 : index
    %48 = vector.load %arg2[%c6, %c0_47, %c0_48] : memref<9x4x12xf32, #tpu.memory_space<vmem>>, vector<1x4x12xf32>
    %49 = vector.shape_cast %48 : vector<1x4x12xf32> to vector<4x12xf32>
    %cst_49 = arith.constant dense<0.000000e+00> : vector<256x12xf32>
    %50 = tpu.matmul %47, %49, %cst_49 {dimension_numbers = #tpu.dot_dimension_numbers<[1], [0], [0], [1], [0, 0, 1, 1], [], []>} : vector<256x4xf32>, vector<4x12xf32>, vector<256x12xf32> -> vector<256x12xf32>
    %51 = arith.addf %44, %50 : vector<256x12xf32>
    %c0_50 = arith.constant 0 : index
    %c2_51 = arith.constant 2 : index
    %c1_52 = arith.constant 1 : index
    %c0_53 = arith.constant 0 : index
    %52 = vector.load %arg1[%c0_50, %c2_51, %c1_52, %c0_53] : memref<1x18x18x4xf32, #tpu.memory_space<vmem>>, vector<1x16x16x4xf32>
    %53 = vector.shape_cast %52 : vector<1x16x16x4xf32> to vector<16x16x4xf32>
    %54 = vector.shape_cast %53 : vector<16x16x4xf32> to vector<256x4xf32>
    %c7 = arith.constant 7 : index
    %c0_54 = arith.constant 0 : index
    %c0_55 = arith.constant 0 : index
    %55 = vector.load %arg2[%c7, %c0_54, %c0_55] : memref<9x4x12xf32, #tpu.memory_space<vmem>>, vector<1x4x12xf32>
    %56 = vector.shape_cast %55 : vector<1x4x12xf32> to vector<4x12xf32>
    %cst_56 = arith.constant dense<0.000000e+00> : vector<256x12xf32>
    %57 = tpu.matmul %54, %56, %cst_56 {dimension_numbers = #tpu.dot_dimension_numbers<[1], [0], [0], [1], [0, 0, 1, 1], [], []>} : vector<256x4xf32>, vector<4x12xf32>, vector<256x12xf32> -> vector<256x12xf32>
    %58 = arith.addf %51, %57 : vector<256x12xf32>
    %c0_57 = arith.constant 0 : index
    %c2_58 = arith.constant 2 : index
    %c2_59 = arith.constant 2 : index
    %c0_60 = arith.constant 0 : index
    %59 = vector.load %arg1[%c0_57, %c2_58, %c2_59, %c0_60] : memref<1x18x18x4xf32, #tpu.memory_space<vmem>>, vector<1x16x16x4xf32>
    %60 = vector.shape_cast %59 : vector<1x16x16x4xf32> to vector<16x16x4xf32>
    %61 = vector.shape_cast %60 : vector<16x16x4xf32> to vector<256x4xf32>
    %c8 = arith.constant 8 : index
    %c0_61 = arith.constant 0 : index
    %c0_62 = arith.constant 0 : index
    %62 = vector.load %arg2[%c8, %c0_61, %c0_62] : memref<9x4x12xf32, #tpu.memory_space<vmem>>, vector<1x4x12xf32>
    %63 = vector.shape_cast %62 : vector<1x4x12xf32> to vector<4x12xf32>
    %cst_63 = arith.constant dense<0.000000e+00> : vector<256x12xf32>
    %64 = tpu.matmul %61, %63, %cst_63 {dimension_numbers = #tpu.dot_dimension_numbers<[1], [0], [0], [1], [0, 0, 1, 1], [], []>} : vector<256x4xf32>, vector<4x12xf32>, vector<256x12xf32> -> vector<256x12xf32>
    %65 = arith.addf %58, %64 : vector<256x12xf32>
    %66 = vector.extract_strided_slice %65 {offsets = [0, 0], sizes = [256, 4], strides = [1, 1]} : vector<256x12xf32> to vector<256x4xf32>
    %67 = vector.extract_strided_slice %65 {offsets = [0, 4], sizes = [256, 4], strides = [1, 1]} : vector<256x12xf32> to vector<256x4xf32>
    %68 = vector.extract_strided_slice %65 {offsets = [0, 8], sizes = [256, 4], strides = [1, 1]} : vector<256x12xf32> to vector<256x4xf32>
    %cst_64 = arith.constant dense<0.000000e+00> : vector<256x256xf32>
    %69 = tpu.matmul %66, %67, %cst_64 {dimension_numbers = #tpu.dot_dimension_numbers<[1], [1], [0], [0], [0, 0, 1, 0], [], []>} : vector<256x4xf32>, vector<256x4xf32>, vector<256x256xf32> -> vector<256x256xf32>
    %cst_65 = arith.constant dense<0xFF800000> : vector<256xf32>
    %70 = vector.multi_reduction <maximumf>, %69, %cst_65 [1] : vector<256x256xf32> to vector<256xf32>
    %71 = vector.shape_cast %70 : vector<256xf32> to vector<256x1xf32>
    %72 = vector.broadcast %71 : vector<256x1xf32> to vector<256x256xf32>
    %73 = arith.subf %69, %72 : vector<256x256xf32>
    %74 = math.exp %73 : vector<256x256xf32>
    %cst_66 = arith.constant dense<0.000000e+00> : vector<256xf32>
    %75 = vector.multi_reduction <add>, %74, %cst_66 [1] : vector<256x256xf32> to vector<256xf32>
    %76 = vector.shape_cast %75 : vector<256xf32> to vector<256x1xf32>
    %cst_67 = arith.constant dense<0.000000e+00> : vector<256x4xf32>
    %77 = tpu.matmul %74, %68, %cst_67 {dimension_numbers = #tpu.dot_dimension_numbers<[1], [0], [0], [1], [0, 0, 1, 1], [], []>} : vector<256x256xf32>, vector<256x4xf32>, vector<256x4xf32> -> vector<256x4xf32>
    %78 = tpu.reciprocal %76 : vector<256x1xf32> -> vector<256x1xf32>
    %79 = vector.broadcast %78 : vector<256x1xf32> to vector<256x4xf32>
    %80 = arith.mulf %77, %79 : vector<256x4xf32>
    %c0_68 = arith.constant 0 : index
    %c0_69 = arith.constant 0 : index
    %81 = vector.load %arg4[%c0_68, %c0_69] : memref<8x4xf32, #tpu.memory_space<vmem>>, vector<8x4xf32>
    %cst_70 = arith.constant dense<0.000000e+00> : vector<8x256xf32>
    %82 = tpu.matmul %81, %80, %cst_70 {dimension_numbers = #tpu.dot_dimension_numbers<[1], [1], [0], [0], [0, 0, 1, 0], [], []>} : vector<8x4xf32>, vector<256x4xf32>, vector<8x256xf32> -> vector<8x256xf32>
    %c0_71 = arith.constant 0 : index
    %c0_72 = arith.constant 0 : index
    %83 = vector.load %arg5[%c0_71, %c0_72] : memref<8x1xf32, #tpu.memory_space<vmem>>, vector<8x1xf32>
    %84 = vector.broadcast %83 : vector<8x1xf32> to vector<8x256xf32>
    %85 = arith.addf %82, %84 : vector<8x256xf32>
    %c0_73 = arith.constant 0 : index
    %c0_74 = arith.constant 0 : index
    %c0_75 = arith.constant 0 : index
    %86 = vector.load %arg6[%c0_73, %c0_74, %c0_75] : memref<1x8x256xf32, #tpu.memory_space<vmem>>, vector<1x8x256xf32>
    %87 = vector.shape_cast %86 : vector<1x8x256xf32> to vector<8x256xf32>
    %88 = vector.shape_cast %85 : vector<8x256xf32> to vector<1x8x256xf32>
    tpu.vector_store %arg6[%c0_73, %c0_74, %c0_75], %88 {strides = array<i32>} : memref<1x8x256xf32, #tpu.memory_space<vmem>>, vector<1x8x256xf32>,
    return
  }
  func.func @transform_0(%arg0: i32) -> (i32, i32, i32, i32) {
    %c0_i32 = arith.constant 0 : i32
    %c0_i32_0 = arith.constant 0 : i32
    %c0_i32_1 = arith.constant 0 : i32
    %c0_i32_2 = arith.constant 0 : i32
    return %arg0, %c0_i32, %c0_i32_0, %c0_i32_1 : i32, i32, i32, i32
  }
  func.func @transform_1(%arg0: i32) -> (i32, i32, i32) {
    %c0_i32 = arith.constant 0 : i32
    %c0_i32_0 = arith.constant 0 : i32
    %c0_i32_1 = arith.constant 0 : i32
    %c0_i32_2 = arith.constant 0 : i32
    return %c0_i32, %c0_i32_0, %c0_i32_1 : i32, i32, i32
  }
  func.func @transform_2(%arg0: i32) -> (i32, i32) {
    %c0_i32 = arith.constant 0 : i32
    %c0_i32_0 = arith.constant 0 : i32
    %c0_i32_1 = arith.constant 0 : i32
    return %c0_i32, %c0_i32_0 : i32, i32
  }
  func.func @transform_3(%arg0: i32) -> (i32, i32) {
    %c0_i32 = arith.constant 0 : i32
    %c0_i32_0 = arith.constant 0 : i32
    %c0_i32_1 = arith.constant 0 : i32
    return %c0_i32, %c0_i32_0 : i32, i32
  }
  func.func @transform_4(%arg0: i32) -> (i32, i32) {
    %c0_i32 = arith.constant 0 : i32
    %c0_i32_0 = arith.constant 0 : i32
    %c0_i32_1 = arith.constant 0 : i32
    return %c0_i32, %c0_i32_0 : i32, i32
  }
  func.func @transform_5(%arg0: i32) -> (i32, i32, i32) {
    %c0_i32 = arith.constant 0 : i32
    %c0_i32_0 = arith.constant 0 : i32
    %c0_i32_1 = arith.constant 0 : i32
    return %arg0, %c0_i32, %c0_i32_0 : i32, i32, i32
  }
}

</mosaic_0001>

<llo_original>
// kernel: tpu_custom_call.1
$region0: #{tpu_custom_call.1}
  #allocation0 [shape = 'u32[]', space=smem, size = 0x4, offset = 0x4, fixed_abs, tag = 'smem constant byte address 0x4 - core index']
  #allocation1 [shape = 'u32[144,128]{1,0:T(1,128)}', space=vmem, size = 0x12000, scoped, tag = 'internal scratch']
  %s0 = inlined_call_operand.vmem [shape: f32[2,18,18,4], index: 0, kind: input, shape index: {}]
  %s1 = inlined_call_operand.vmem [shape: f32[9,4,12], index: 1, kind: input, shape index: {}]
  %s2 = inlined_call_operand.vmem [shape: f32[1,12], index: 2, kind: input, shape index: {}]
  %s3 = inlined_call_operand.vmem [shape: f32[8,4], index: 3, kind: input, shape index: {}]
  %s4 = inlined_call_operand.vmem [shape: f32[8,1], index: 4, kind: input, shape index: {}]
  %s5 = inlined_call_operand.hbm [shape: f32[2,8,256], index: 5, kind: output, shape index: {}]
  %s6 = sld [smem:[#allocation0]]
  $region53: #{tpu_custom_call.1} parent=0
    _
  %s8 = ssub.s32 1, %s6
  %s9 = scalar_select 0, %s8, %s6
  $region1: #{tpu_custom_call.1} parent=0
    #allocation2 [shape = 'u8[16384]{0}', space=vmem, size = 0x4000, scoped, tag = 'output window, operand 0']
    #allocation3 [shape = 's32[2]{0}', space=sflag, size = 0x8, scoped, tag = 'scoped memory for tpu_custom_call.1']
    %10 = vsyncpa [#allocation3], 0
    %s11 = scalar_lea.sflag [#allocation3], 1
    %12 = vsyncpa %s11, 0
    loop: start=0, step=1, limit=4
    $region2: #{tpu_custom_call.1} parent=1 // loop_pre_header
      _
    $region3: #{tpu_custom_call.1} parent=1 // loop_header
      %s14 = sphi 0, %s18
      %p15 = scmp.ge.s32.totalorder %s14, 4
      %s24 = sphi 0, %s26
      %s27 = sphi 0, %s24
      %s28 = sphi 0, %s27
      %s44 = sphi 0, %s28
      %s48 = sphi 0, %s48
      %s50 = sphi 0, %s48
      %s51 = sphi 0, %s50
      %s65 = sphi 0, %s51
      %s69 = sphi 0, %s69
      %s71 = sphi 0, %s69
      %s72 = sphi 0, %s71
      %s86 = sphi 0, %s72
      %s90 = sphi 0, %s90
      %s92 = sphi 0, %s90
      %s93 = sphi 0, %s92
      %s107 = sphi 0, %s93
      %s111 = sphi 0, %s111
      %s113 = sphi 0, %s111
      %s114 = sphi 0, %s113
      %s128 = sphi 0, %s114
      %s134 = sphi 0, %s136
      %s137 = sphi 0, %s134
      %s138 = sphi 0, %s137
      %s154 = sphi 0, %s138
    $region4: #{tpu_custom_call.1} parent=1 // loop_header_branch
      %17 = sbr.rel (%p15) target = $region8
    $region5: #{tpu_custom_call.1} parent=1 // loop_body
      %s19 = ssub.s32 %s14, 1
      %s20 = ssub.s32 %s14, 2
      %s21 = sadd.s32 %s14, 1
      %s22 = ssub.s32 %s14, %s21
      %p23 = scmp.eq.s32.totalorder %s22, 0
      %s25 = sadd.s32 %s24, 1
      %s26 = scalar_select %p23, %s24, %s25
      %p29 = pneg %p23
      %p30 = scmp.eq.s32.totalorder %s14, 1
      %p31 = por %p29, %p30
      %p32 = scmp.ne.s32.totalorder %s24, %s27
      %p33 = scmp.eq.s32.totalorder %s14, 0
      %p34 = por %p32, %p33
      %p35 = scmp.ne.s32.totalorder %s24, %s27
      %p36 = scmp.eq.s32.totalorder %s19, 1
      %p37 = por %p35, %p36
      %p38 = scmp.ne.s32.totalorder %s27, %s28
      %p39 = scmp.eq.s32.totalorder %s19, 0
      %p40 = por %p38, %p39
      %p41 = scmp.ne.s32.totalorder %s27, %s28
      %p42 = scmp.eq.s32.totalorder %s20, 1
      %p43 = por %p41, %p42
      %p45 = scmp.ne.s32.totalorder %s28, %s44
      %p46 = scmp.eq.s32.totalorder %s20, 0
      %p47 = por %p45, %p46
      %s49 = sadd.s32 %s48, 1
      %p52 = scmp.eq.s32.totalorder %s14, 1
      %p53 = scmp.ne.s32.totalorder %s48, %s50
      %p54 = scmp.eq.s32.totalorder %s14, 0
      %p55 = por %p53, %p54
      %p56 = scmp.ne.s32.totalorder %s48, %s50
      %p57 = scmp.eq.s32.totalorder %s19, 1
      %p58 = por %p56, %p57
      %p59 = scmp.ne.s32.totalorder %s50, %s51
      %p60 = scmp.eq.s32.totalorder %s19, 0
      %p61 = por %p59, %p60
      %p62 = scmp.ne.s32.totalorder %s50, %s51
      %p63 = scmp.eq.s32.totalorder %s20, 1
      %p64 = por %p62, %p63
      %p66 = scmp.ne.s32.totalorder %s51, %s65
      %p67 = scmp.eq.s32.totalorder %s20, 0
      %p68 = por %p66, %p67
      %s70 = sadd.s32 %s69, 1
      %p73 = scmp.eq.s32.totalorder %s14, 1
      %p74 = scmp.ne.s32.totalorder %s69, %s71
      %p75 = scmp.eq.s32.totalorder %s14, 0
      %p76 = por %p74, %p75
      %p77 = scmp.ne.s32.totalorder %s69, %s71
      %p78 = scmp.eq.s32.totalorder %s19, 1
      %p79 = por %p77, %p78
      %p80 = scmp.ne.s32.totalorder %s71, %s72
      %p81 = scmp.eq.s32.totalorder %s19, 0
      %p82 = por %p80, %p81
      %p83 = scmp.ne.s32.totalorder %s71, %s72
      %p84 = scmp.eq.s32.totalorder %s20, 1
      %p85 = por %p83, %p84
      %p87 = scmp.ne.s32.totalorder %s72, %s86
      %p88 = scmp.eq.s32.totalorder %s20, 0
      %p89 = por %p87, %p88
      %s91 = sadd.s32 %s90, 1
      %p94 = scmp.eq.s32.totalorder %s14, 1
      %p95 = scmp.ne.s32.totalorder %s90, %s92
      %p96 = scmp.eq.s32.totalorder %s14, 0
      %p97 = por %p95, %p96
      %p98 = scmp.ne.s32.totalorder %s90, %s92
      %p99 = scmp.eq.s32.totalorder %s19, 1
      %p100 = por %p98, %p99
      %p101 = scmp.ne.s32.totalorder %s92, %s93
      %p102 = scmp.eq.s32.totalorder %s19, 0
      %p103 = por %p101, %p102
      %p104 = scmp.ne.s32.totalorder %s92, %s93
      %p105 = scmp.eq.s32.totalorder %s20, 1
      %p106 = por %p104, %p105
      %p108 = scmp.ne.s32.totalorder %s93, %s107
      %p109 = scmp.eq.s32.totalorder %s20, 0
      %p110 = por %p108, %p109
      %s112 = sadd.s32 %s111, 1
      %p115 = scmp.eq.s32.totalorder %s14, 1
      %p116 = scmp.ne.s32.totalorder %s111, %s113
      %p117 = scmp.eq.s32.totalorder %s14, 0
      %p118 = por %p116, %p117
      %p119 = scmp.ne.s32.totalorder %s111, %s113
      %p120 = scmp.eq.s32.totalorder %s19, 1
      %p121 = por %p119, %p120
      %p122 = scmp.ne.s32.totalorder %s113, %s114
      %p123 = scmp.eq.s32.totalorder %s19, 0
      %p124 = por %p122, %p123
      %p125 = scmp.ne.s32.totalorder %s113, %s114
      %p126 = scmp.eq.s32.totalorder %s20, 1
      %p127 = por %p125, %p126
      %p129 = scmp.ne.s32.totalorder %s114, %s128
      %p130 = scmp.eq.s32.totalorder %s20, 0
      %p131 = por %p129, %p130
      %s132 = ssub.s32 %s14, %s21
      %p133 = scmp.eq.s32.totalorder %s132, 0
      %s135 = sadd.s32 %s134, 1
      %s136 = scalar_select %p133, %s134, %s135
      %p139 = pneg %p133
      %p140 = scmp.eq.s32.totalorder %s14, 1
      %p141 = por %p139, %p140
      %p142 = scmp.ne.s32.totalorder %s134, %s137
      %p143 = scmp.eq.s32.totalorder %s14, 0
      %p144 = por %p142, %p143
      %p145 = scmp.ne.s32.totalorder %s134, %s137
      %p146 = scmp.eq.s32.totalorder %s19, 1
      %p147 = por %p145, %p146
      %p148 = scmp.ne.s32.totalorder %s137, %s138
      %p149 = scmp.eq.s32.totalorder %s19, 0
      %p150 = por %p148, %p149
      %p151 = scmp.ne.s32.totalorder %s137, %s138
      %p152 = scmp.eq.s32.totalorder %s20, 1
      %p153 = por %p151, %p152
      %p155 = scmp.ne.s32.totalorder %s138, %s154
      %p156 = scmp.eq.s32.totalorder %s20, 0
      %p157 = por %p155, %p156
      %p158 = scmp.le.s32.totalorder 1, %s14
      %p159 = scmp.lt.s32.totalorder %s14, 3
      %p160 = pnand %p158, %p159
      %p161 = pneg %p160
      // Predicated region
      $region9: #{tpu_custom_call.1} parent=5 // pred_check
        _
      $region10: #{tpu_custom_call.1} parent=5 // pred_check_branch
        %163 = sbr.rel (%p160) target = $region12
      $region11: #{tpu_custom_call.1} parent=5 // pred_region
        %s164 = ssub.s32 %s14, 1
        // Predicated region
        $region13: #{tpu_custom_call.1} parent=11 // pred_check
          %p165 = pneg %p61
        $region14: #{tpu_custom_call.1} parent=11 // pred_check_branch
          %167 = sbr.rel (%p165) target = $region16
        $region15: #{tpu_custom_call.1} parent=11 // pred_region
          _
        $region16: #{tpu_custom_call.1} parent=11 // pred_fallthru
          _
        // Predicated region
        $region17: #{tpu_custom_call.1} parent=11 // pred_check
          %p168 = pneg %p82
        $region18: #{tpu_custom_call.1} parent=11 // pred_check_branch
          %170 = sbr.rel (%p168) target = $region20
        $region19: #{tpu_custom_call.1} parent=11 // pred_region
          _
        $region20: #{tpu_custom_call.1} parent=11 // pred_fallthru
          _
        // Predicated region
        $region21: #{tpu_custom_call.1} parent=11 // pred_check
          %p171 = pneg %p103
        $region22: #{tpu_custom_call.1} parent=11 // pred_check_branch
          %173 = sbr.rel (%p171) target = $region24
        $region23: #{tpu_custom_call.1} parent=11 // pred_region
          _
        $region24: #{tpu_custom_call.1} parent=11 // pred_fallthru
          _
        // Predicated region
        $region25: #{tpu_custom_call.1} parent=11 // pred_check
          %p174 = pneg %p124
        $region26: #{tpu_custom_call.1} parent=11 // pred_check_branch
          %176 = sbr.rel (%p174) target = $region28
        $region27: #{tpu_custom_call.1} parent=11 // pred_region
          _
        $region28: #{tpu_custom_call.1} parent=11 // pred_fallthru
          _
      $region12: #{tpu_custom_call.1} parent=5 // pred_fallthru
        _
      %p177 = scmp.lt.s32.totalorder %s14, 2
      // Predicated region
      $region29: #{tpu_custom_call.1} parent=5 // pred_check
        %p178 = pneg %p177
      $region30: #{tpu_custom_call.1} parent=5 // pred_check_branch
        %180 = sbr.rel (%p178) target = $region32
      $region31: #{tpu_custom_call.1} parent=5 // pred_region
        // Predicated region
        $region33: #{tpu_custom_call.1} parent=31 // pred_check
          %p181 = pneg %p34
        $region34: #{tpu_custom_call.1} parent=31 // pred_check_branch
          %183 = sbr.rel (%p181) target = $region36
        $region35: #{tpu_custom_call.1} parent=31 // pred_region
          %p184 = scmp.lt.s32.totalorder %s14, 1
          %s185 = scalar_select %p184, %s14, 1
          %s186 = smul.addr %s185, 54
          %s187 = smul.addr %s186, 8
          %s188 = scalar_lea.vmem %s0, %s187
        $region36: #{tpu_custom_call.1} parent=31 // pred_fallthru
          _
      $region32: #{tpu_custom_call.1} parent=5 // pred_fallthru
        _
      %p189 = scmp.le.s32.totalorder 1, %s14
      %p190 = scmp.lt.s32.totalorder %s14, 3
      %p191 = pnand %p189, %p190
      %p192 = pneg %p191
      // Predicated region
      $region37: #{tpu_custom_call.1} parent=5 // pred_check
        _
      $region38: #{tpu_custom_call.1} parent=5 // pred_check_branch
        %194 = sbr.rel (%p191) target = $region40
      $region39: #{tpu_custom_call.1} parent=5 // pred_region
        %s195 = ssub.s32 %s14, 1
        %p196 = scmp.lt.s32.totalorder %s19, 1
        %s197 = scalar_select %p196, %s19, 1
        %s198 = smul.addr %s197, 54
        %s199 = smul.addr %s198, 8
        %s200 = scalar_lea.vmem %s0, %s199
        %p201 = pneg %p40
        %p202 = pneg %p37
        %p203 = pneg %p61
        %p204 = pneg %p58
        %p205 = pneg %p82
        %p206 = pneg %p79
        %p207 = pneg %p103
        %p208 = pneg %p100
        %p209 = pneg %p124
        %p210 = pneg %p121
        %p211 = pneg %p150
        %p212 = pneg %p147
        %s213 = sand.u32 %s137, 1
        %s214 = scalar_lea.sflag [#allocation3], %s213
        %s215 = sand.u32 %s137, 1
        %s216 = smul.addr %s215, 16
        %s217 = scalar_lea.vmem [#allocation2], %s216
        %p218 = scmp.lt.s32.totalorder %s19, 1
        %s219 = scalar_select %p218, %s19, 1
        %s220 = smul.addr %s219, 54
        %s221 = smul.addr %s220, 8
        %s222 = scalar_lea.vmem %s0, %s221
        %v223 = vld [vmem:[%s2] sm:$0x1]
        %v225 = vlaneseq
        %v226 = vshrl.u32 %v225, 7
        %v227 = vsub.s32 0, %v226
        %v228 = vrot.slane %v223, %v227
        %v230 = vld [vmem:[%s222] sm:$0xff]
        %v231 = vld [vmem:[%s222 + $0x8] sm:$0xff]
        %v232 = vld [vmem:[%s222 + $0x18] sm:$0xff]
        %v233 = vld [vmem:[%s222 + $0x20] sm:$0xff]
        %v234 = vld [vmem:[%s222 + $0x30] sm:$0xff]
        %v235 = vld [vmem:[%s222 + $0x38] sm:$0xff]
        %v236 = vld [vmem:[%s222 + $0x48] sm:$0xff]
        %v237 = vld [vmem:[%s222 + $0x50] sm:$0xff]
        %v238 = vld [vmem:[%s222 + $0x60] sm:$0xff]
        %v239 = vld [vmem:[%s222 + $0x68] sm:$0xff]
        %v240 = vld [vmem:[%s222 + $0x78] sm:$0xff]
        %v241 = vld [vmem:[%s222 + $0x80] sm:$0xff]
        %v242 = vld [vmem:[%s222 + $0x90] sm:$0xff]
        %v243 = vld [vmem:[%s222 + $0x98] sm:$0xff]
        %v244 = vld [vmem:[%s222 + $0xa8] sm:$0xff]
        %v245 = vld [vmem:[%s222 + $0xb0] sm:$0xff]
        %v246 = vld [vmem:[%s222 + $0xc0] sm:$0xff]
        %v247 = vld [vmem:[%s222 + $0xc8] sm:$0xff]
        %v248 = vld [vmem:[%s222 + $0xd8] sm:$0xff]
        %v249 = vld [vmem:[%s222 + $0xe0] sm:$0xff]
        %v250 = vld [vmem:[%s222 + $0xf0] sm:$0xff]
        %v251 = vld [vmem:[%s222 + $0xf8] sm:$0xff]
        %v252 = vld [vmem:[%s222 + $0x108] sm:$0xff]
        %v253 = vld [vmem:[%s222 + $0x110] sm:$0xff]
        %v254 = vld [vmem:[%s222 + $0x120] sm:$0xff]
        %v255 = vld [vmem:[%s222 + $0x128] sm:$0xff]
        %v256 = vld [vmem:[%s222 + $0x138] sm:$0xff]
        %v257 = vld [vmem:[%s222 + $0x140] sm:$0xff]
        %v258 = vld [vmem:[%s222 + $0x150] sm:$0xff]
        %v259 = vld [vmem:[%s222 + $0x158] sm:$0xff]
        %v260 = vld [vmem:[%s222 + $0x168] sm:$0xff]
        %v261 = vld [vmem:[%s222 + $0x170] sm:$0xff]
        %v262 = vld [vmem:[%s1] sm:$0xf]
        %vm263 = vcmask 31744
        %v265 = vsel %vm263, %v230, 0
        %v268 = vsel %vm263, %v231, 0
        %v271 = vsel %vm263, %v232, 0
        %v274 = vsel %vm263, %v233, 0
        %v277 = vsel %vm263, %v234, 0
        %v280 = vsel %vm263, %v235, 0
        %v283 = vsel %vm263, %v236, 0
        %v286 = vsel %vm263, %v237, 0
        %v289 = vsel %vm263, %v238, 0
        %v292 = vsel %vm263, %v239, 0
        %v295 = vsel %vm263, %v240, 0
        %v298 = vsel %vm263, %v241, 0
        %v301 = vsel %vm263, %v242, 0
        %v304 = vsel %vm263, %v243, 0
        %v307 = vsel %vm263, %v244, 0
        %v310 = vsel %vm263, %v245, 0
        %v313 = vsel %vm263, %v246, 0
        %v316 = vsel %vm263, %v247, 0
        %v319 = vsel %vm263, %v248, 0
        %v322 = vsel %vm263, %v249, 0
        %v325 = vsel %vm263, %v250, 0
        %v328 = vsel %vm263, %v251, 0
        %v331 = vsel %vm263, %v252, 0
        %v334 = vsel %vm263, %v253, 0
        %v337 = vsel %vm263, %v254, 0
        %v340 = vsel %vm263, %v255, 0
        %v343 = vsel %vm263, %v256, 0
        %v346 = vsel %vm263, %v257, 0
        %v349 = vsel %vm263, %v258, 0
        %v352 = vsel %vm263, %v259, 0
        %v355 = vsel %vm263, %v260, 0
        %v358 = vsel %vm263, %v261, 0
        %vm360 = vcmask 1043456
        %v362 = vsel %vm360, %v262, 0
        %364 = vmatprep.subr.mxu0 0.0
        %365 = vmatpush1.msra.mxu0 %v362
        %366 = vmatprep.subr.mxu0 0.0
        %367 = vmatpush1.msra.mxu0 0.0
        %368 = vmatprep.subr.mxu0 0.0
        %369 = vmatpush1.msra.mxu0 0.0
        %370 = vmatprep.subr.mxu0 0.0
        %371 = vmatpush1.msra.mxu0 0.0
        %372 = vmatprep.subr.mxu0 0.0
        %373 = vmatpush1.msra.mxu0 0.0
        %374 = vmatprep.subr.mxu0 0.0
        %375 = vmatpush1.msra.mxu0 0.0
        %376 = vmatprep.subr.mxu0 0.0
        %377 = vmatpush1.msra.mxu0 0.0
        %378 = vmatprep.subr.mxu0 0.0
        %379 = vmatpush1.msra.mxu0 0.0
        %380 = vmatprep.subr.mxu0 0.0
        %381 = vmatpush1.msra.mxu0 0.0
        %382 = vmatprep.subr.mxu0 0.0
        %383 = vmatpush1.msra.mxu0 0.0
        %384 = vmatprep.subr.mxu0 0.0
        %385 = vmatpush1.msra.mxu0 0.0
        %386 = vmatprep.subr.mxu0 0.0
        %387 = vmatpush1.msra.mxu0 0.0
        %388 = vmatprep.subr.mxu0 0.0
        %389 = vmatpush1.msra.mxu0 0.0
        %390 = vmatprep.subr.mxu0 0.0
        %391 = vmatpush1.msra.mxu0 0.0
        %392 = vmatprep.subr.mxu0 0.0
        %393 = vmatpush1.msra.mxu0 0.0
        %394 = vmatprep.subr.mxu0 0.0
        %395 = vmatpush1.msra.mxu0 0.0
        %396 = vmatprep.subr.mxu0 0.0
        %397 = vmatpush1.msra.mxu0 0.0
        %398 = vmatprep.subr.mxu0 0.0
        %399 = vmatpush1.msra.mxu0 0.0
        %400 = vmatprep.subr.mxu0 0.0
        %401 = vmatpush1.msra.mxu0 0.0
        %402 = vmatprep.subr.mxu0 0.0
        %403 = vmatpush1.msra.mxu0 0.0
        %404 = vmatprep.subr.mxu0 0.0
        %405 = vmatpush1.msra.mxu0 0.0
        %406 = vmatprep.subr.mxu0 0.0
        %407 = vmatpush1.msra.mxu0 0.0
        %408 = vmatprep.subr.mxu0 0.0
        %409 = vmatpush1.msra.mxu0 0.0
        %410 = vmatprep.subr.mxu0 0.0
        %411 = vmatpush1.msra.mxu0 0.0
        %412 = vmatprep.subr.mxu0 0.0
        %413 = vmatpush1.msra.mxu0 0.0
        %414 = vmatprep.subr.mxu0 0.0
        %415 = vmatpush1.msra.mxu0 0.0
        %416 = vmatprep.subr.mxu0 0.0
        %417 = vmatpush1.msra.mxu0 0.0
        %418 = vmatprep.subr.mxu0 0.0
        %419 = vmatpush1.msra.mxu0 0.0
        %420 = vmatprep.subr.mxu0 0.0
        %421 = vmatpush1.msra.mxu0 0.0
        %422 = vmatprep.subr.mxu0 0.0
        %423 = vmatpush1.msra.mxu0 0.0
        %424 = vmatprep.subr.mxu0 0.0
        %425 = vmatpush1.msra.mxu0 0.0
        %426 = vmatprep.subr.mxu0 0.0
        %427 = vmatpush1.msra.mxu0 0.0
        %428 = vmatprep.mubr.f32.mxu0 0.0
        %429 = vmatmul.mubr.f32.gmra.mrb[0].mxu0 %v265
        %v430 = vpop.f32.mrb[0].mxu0
        %v431 = vadd.f32 0.0, %v430
        %v432 = vpop.f32.mrb[0].mxu0
        %433 = vmatprep.mubr.f32.mxu0 0.0
        %434 = vmatmul.mubr.f32.gmra.mrb[0].mxu0 %v268
        %v435 = vpop.f32.mrb[0].mxu0
        %v436 = vadd.f32 0.0, %v435
        %v437 = vpop.f32.mrb[0].mxu0
        %438 = vmatprep.mubr.f32.mxu0 0.0
        %439 = vmatmul.mubr.f32.gmra.mrb[0].mxu0 %v271
        %v440 = vpop.f32.mrb[0].mxu0
        %v441 = vadd.f32 0.0, %v440
        %v442 = vpop.f32.mrb[0].mxu0
        %443 = vmatprep.mubr.f32.mxu0 0.0
        %444 = vmatmul.mubr.f32.gmra.mrb[0].mxu0 %v274
        %v445 = vpop.f32.mrb[0].mxu0
        %v446 = vadd.f32 0.0, %v445
        %v447 = vpop.f32.mrb[0].mxu0
        %448 = vmatprep.mubr.f32.mxu0 0.0
        %449 = vmatmul.mubr.f32.gmra.mrb[0].mxu0 %v277
        %v450 = vpop.f32.mrb[0].mxu0
        %v451 = vadd.f32 0.0, %v450
        %v452 = vpop.f32.mrb[0].mxu0
        %453 = vmatprep.mubr.f32.mxu0 0.0
        %454 = vmatmul.mubr.f32.gmra.mrb[0].mxu0 %v280
        %v455 = vpop.f32.mrb[0].mxu0
        %v456 = vadd.f32 0.0, %v455
        %v457 = vpop.f32.mrb[0].mxu0
        %458 = vmatprep.mubr.f32.mxu0 0.0
        %459 = vmatmul.mubr.f32.gmra.mrb[0].mxu0 %v283
        %v460 = vpop.f32.mrb[0].mxu0
        %v461 = vadd.f32 0.0, %v460
        %v462 = vpop.f32.mrb[0].mxu0
        %463 = vmatprep.mubr.f32.mxu0 0.0
        %464 = vmatmul.mubr.f32.gmra.mrb[0].mxu0 %v286
        %v465 = vpop.f32.mrb[0].mxu0
        %v466 = vadd.f32 0.0, %v465
        %v467 = vpop.f32.mrb[0].mxu0
        %468 = vmatprep.mubr.f32.mxu0 0.0
        %469 = vmatmul.mubr.f32.gmra.mrb[0].mxu0 %v289
        %v470 = vpop.f32.mrb[0].mxu0
        %v471 = vadd.f32 0.0, %v470
        %v472 = vpop.f32.mrb[0].mxu0
        %473 = vmatprep.mubr.f32.mxu0 0.0
        %474 = vmatmul.mubr.f32.gmra.mrb[0].mxu0 %v292
        %v475 = vpop.f32.mrb[0].mxu0
        %v476 = vadd.f32 0.0, %v475
        %v477 = vpop.f32.mrb[0].mxu0
        %478 = vmatprep.mubr.f32.mxu0 0.0
        %479 = vmatmul.mubr.f32.gmra.mrb[0].mxu0 %v295
        %v480 = vpop.f32.mrb[0].mxu0
        %v481 = vadd.f32 0.0, %v480
        %v482 = vpop.f32.mrb[0].mxu0
        %483 = vmatprep.mubr.f32.mxu0 0.0
        %484 = vmatmul.mubr.f32.gmra.mrb[0].mxu0 %v298
        %v485 = vpop.f32.mrb[0].mxu0
        %v486 = vadd.f32 0.0, %v485
        %v487 = vpop.f32.mrb[0].mxu0
        %488 = vmatprep.mubr.f32.mxu0 0.0
        %489 = vmatmul.mubr.f32.gmra.mrb[0].mxu0 %v301
        %v490 = vpop.f32.mrb[0].mxu0
        %v491 = vadd.f32 0.0, %v490
        %v492 = vpop.f32.mrb[0].mxu0
        %493 = vmatprep.mubr.f32.mxu0 0.0
        %494 = vmatmul.mubr.f32.gmra.mrb[0].mxu0 %v304
        %v495 = vpop.f32.mrb[0].mxu0
        %v496 = vadd.f32 0.0, %v495
        %v497 = vpop.f32.mrb[0].mxu0
        %498 = vmatprep.mubr.f32.mxu0 0.0
        %499 = vmatmul.mubr.f32.gmra.mrb[0].mxu0 %v307
        %v500 = vpop.f32.mrb[0].mxu0
        %v501 = vadd.f32 0.0, %v500
        %v502 = vpop.f32.mrb[0].mxu0
        %503 = vmatprep.mubr.f32.mxu0 0.0
        %504 = vmatmul.mubr.f32.gmra.mrb[0].mxu0 %v310
        %v505 = vpop.f32.mrb[0].mxu0
        %v506 = vadd.f32 0.0, %v505
        %v507 = vpop.f32.mrb[0].mxu0
        %508 = vmatprep.mubr.f32.mxu0 0.0
        %509 = vmatmul.mubr.f32.gmra.mrb[0].mxu0 %v313
        %v510 = vpop.f32.mrb[0].mxu0
        %v511 = vadd.f32 0.0, %v510
        %v512 = vpop.f32.mrb[0].mxu0
        %513 = vmatprep.mubr.f32.mxu0 0.0
        %514 = vmatmul.mubr.f32.gmra.mrb[0].mxu0 %v316
        %v515 = vpop.f32.mrb[0].mxu0
        %v516 = vadd.f32 0.0, %v515
        %v517 = vpop.f32.mrb[0].mxu0
        %518 = vmatprep.mubr.f32.mxu0 0.0
        %519 = vmatmul.mubr.f32.gmra.mrb[0].mxu0 %v319
        %v520 = vpop.f32.mrb[0].mxu0
        %v521 = vadd.f32 0.0, %v520
        %v522 = vpop.f32.mrb[0].mxu0
        %523 = vmatprep.mubr.f32.mxu0 0.0
        %524 = vmatmul.mubr.f32.gmra.mrb[0].mxu0 %v322
        %v525 = vpop.f32.mrb[0].mxu0
        %v526 = vadd.f32 0.0, %v525
        %v527 = vpop.f32.mrb[0].mxu0
        %528 = vmatprep.mubr.f32.mxu0 0.0
        %529 = vmatmul.mubr.f32.gmra.mrb[0].mxu0 %v325
        %v530 = vpop.f32.mrb[0].mxu0
        %v531 = vadd.f32 0.0, %v530
        %v532 = vpop.f32.mrb[0].mxu0
        %533 = vmatprep.mubr.f32.mxu0 0.0
        %534 = vmatmul.mubr.f32.gmra.mrb[0].mxu0 %v328
        %v535 = vpop.f32.mrb[0].mxu0
        %v536 = vadd.f32 0.0, %v535
        %v537 = vpop.f32.mrb[0].mxu0
        %538 = vmatprep.mubr.f32.mxu0 0.0
        %539 = vmatmul.mubr.f32.gmra.mrb[0].mxu0 %v331
        %v540 = vpop.f32.mrb[0].mxu0
        %v541 = vadd.f32 0.0, %v540
        %v542 = vpop.f32.mrb[0].mxu0
        %543 = vmatprep.mubr.f32.mxu0 0.0
        %544 = vmatmul.mubr.f32.gmra.mrb[0].mxu0 %v334
        %v545 = vpop.f32.mrb[0].mxu0
        %v546 = vadd.f32 0.0, %v545
        %v547 = vpop.f32.mrb[0].mxu0
        %548 = vmatprep.mubr.f32.mxu0 0.0
        %549 = vmatmul.mubr.f32.gmra.mrb[0].mxu0 %v337
        %v550 = vpop.f32.mrb[0].mxu0
        %v551 = vadd.f32 0.0, %v550
        %v552 = vpop.f32.mrb[0].mxu0
        %553 = vmatprep.mubr.f32.mxu0 0.0
        %554 = vmatmul.mubr.f32.gmra.mrb[0].mxu0 %v340
        %v555 = vpop.f32.mrb[0].mxu0
        %v556 = vadd.f32 0.0, %v555
        %v557 = vpop.f32.mrb[0].mxu0
        %558 = vmatprep.mubr.f32.mxu0 0.0
        %559 = vmatmul.mubr.f32.gmra.mrb[0].mxu0 %v343
        %v560 = vpop.f32.mrb[0].mxu0
        %v561 = vadd.f32 0.0, %v560
        %v562 = vpop.f32.mrb[0].mxu0
        %563 = vmatprep.mubr.f32.mxu0 0.0
        %564 = vmatmul.mubr.f32.gmra.mrb[0].mxu0 %v346
        %v565 = vpop.f32.mrb[0].mxu0
        %v566 = vadd.f32 0.0, %v565
        %v567 = vpop.f32.mrb[0].mxu0
        %568 = vmatprep.mubr.f32.mxu0 0.0
        %569 = vmatmul.mubr.f32.gmra.mrb[0].mxu0 %v349
        %v570 = vpop.f32.mrb[0].mxu0
        %v571 = vadd.f32 0.0, %v570
        %v572 = vpop.f32.mrb[0].mxu0
        %573 = vmatprep.mubr.f32.mxu0 0.0
        %574 = vmatmul.mubr.f32.gmra.mrb[0].mxu0 %v352
        %v575 = vpop.f32.mrb[0].mxu0
        %v576 = vadd.f32 0.0, %v575
        %v577 = vpop.f32.mrb[0].mxu0
        %578 = vmatprep.mubr.f32.mxu0 0.0
        %579 = vmatmul.mubr.f32.gmra.mrb[0].mxu0 %v355
        %v580 = vpop.f32.mrb[0].mxu0
        %v581 = vadd.f32 0.0, %v580
        %v582 = vpop.f32.mrb[0].mxu0
        %583 = vmatprep.mubr.f32.mxu0 0.0
        %584 = vmatmul.mubr.f32.gmra.mrb[0].mxu0 %v358
        %v585 = vpop.f32.mrb[0].mxu0
        %v586 = vadd.f32 0.0, %v585
        %v587 = vpop.f32.mrb[0].mxu0
        %588 = vdwg.mxu0
        %v589 = vadd.f32 %v228, %v431
        %v590 = vadd.f32 %v228, %v436
        %v591 = vadd.f32 %v228, %v441
        %v592 = vadd.f32 %v228, %v446
        %v593 = vadd.f32 %v228, %v451
        %v594 = vadd.f32 %v228, %v456
        %v595 = vadd.f32 %v228, %v461
        %v596 = vadd.f32 %v228, %v466
        %v597 = vadd.f32 %v228, %v471
        %v598 = vadd.f32 %v228, %v476
        %v599 = vadd.f32 %v228, %v481
        %v600 = vadd.f32 %v228, %v486
        %v601 = vadd.f32 %v228, %v491
        %v602 = vadd.f32 %v228, %v496
        %v603 = vadd.f32 %v228, %v501
        %v604 = vadd.f32 %v228, %v506
        %v605 = vadd.f32 %v228, %v511
        %v606 = vadd.f32 %v228, %v516
        %v607 = vadd.f32 %v228, %v521
        %v608 = vadd.f32 %v228, %v526
        %v609 = vadd.f32 %v228, %v531
        %v610 = vadd.f32 %v228, %v536
        %v611 = vadd.f32 %v228, %v541
        %v612 = vadd.f32 %v228, %v546
        %v613 = vadd.f32 %v228, %v551
        %v614 = vadd.f32 %v228, %v556
        %v615 = vadd.f32 %v228, %v561
        %v616 = vadd.f32 %v228, %v566
        %v617 = vadd.f32 %v228, %v571
        %v618 = vadd.f32 %v228, %v576
        %v619 = vadd.f32 %v228, %v581
        %v620 = vadd.f32 %v228, %v586
        %v621 = vld [vmem:[%s222 + $0x1] sm:$0xff]
        %v622 = vld [vmem:[%s222 + $0x9] sm:$0xff]
        %v623 = vld [vmem:[%s222 + $0x19] sm:$0xff]
        %v624 = vld [vmem:[%s222 + $0x21] sm:$0xff]
        %v625 = vld [vmem:[%s222 + $0x31] sm:$0xff]
        %v626 = vld [vmem:[%s222 + $0x39] sm:$0xff]
        %v627 = vld [vmem:[%s222 + $0x49] sm:$0xff]
        %v628 = vld [vmem:[%s222 + $0x51] sm:$0xff]
        %v629 = vld [vmem:[%s222 + $0x61] sm:$0xff]
        %v630 = vld [vmem:[%s222 + $0x69] sm:$0xff]
        %v631 = vld [vmem:[%s222 + $0x79] sm:$0xff]
        %v632 = vld [vmem:[%s222 + $0x81] sm:$0xff]
        %v633 = vld [vmem:[%s222 + $0x91] sm:$0xff]
        %v634 = vld [vmem:[%s222 + $0x99] sm:$0xff]
        %v635 = vld [vmem:[%s222 + $0xa9] sm:$0xff]
        %v636 = vld [vmem:[%s222 + $0xb1] sm:$0xff]
        %v637 = vld [vmem:[%s222 + $0xc1] sm:$0xff]
        %v638 = vld [vmem:[%s222 + $0xc9] sm:$0xff]
        %v639 = vld [vmem:[%s222 + $0xd9] sm:$0xff]
        %v640 = vld [vmem:[%s222 + $0xe1] sm:$0xff]
        %v641 = vld [vmem:[%s222 + $0xf1] sm:$0xff]
        %v642 = vld [vmem:[%s222 + $0xf9] sm:$0xff]
        %v643 = vld [vmem:[%s222 + $0x109] sm:$0xff]
        %v644 = vld [vmem:[%s222 + $0x111] sm:$0xff]
        %v645 = vld [vmem:[%s222 + $0x121] sm:$0xff]
        %v646 = vld [vmem:[%s222 + $0x129] sm:$0xff]
        %v647 = vld [vmem:[%s222 + $0x139] sm:$0xff]
        %v648 = vld [vmem:[%s222 + $0x141] sm:$0xff]
        %v649 = vld [vmem:[%s222 + $0x151] sm:$0xff]
        %v650 = vld [vmem:[%s222 + $0x159] sm:$0xff]
        %v651 = vld [vmem:[%s222 + $0x169] sm:$0xff]
        %v652 = vld [vmem:[%s222 + $0x171] sm:$0xff]
        %s653 = scalar_lea.vmem %s1, 4
        %v654 = vld [vmem:[%s653] sm:$0xf]
        %v656 = vsel %vm263, %v621, 0
        %v659 = vsel %vm263, %v622, 0
        %v662 = vsel %vm263, %v623, 0
        %v665 = vsel %vm263, %v624, 0
        %v668 = vsel %vm263, %v625, 0
        %v671 = vsel %vm263, %v626, 0
        %v674 = vsel %vm263, %v627, 0
        %v677 = vsel %vm263, %v628, 0
        %v680 = vsel %vm263, %v629, 0
        %v683 = vsel %vm263, %v630, 0
        %v686 = vsel %vm263, %v631, 0
        %v689 = vsel %vm263, %v632, 0
        %v692 = vsel %vm263, %v633, 0
        %v695 = vsel %vm263, %v634, 0
        %v698 = vsel %vm263, %v635, 0
        %v701 = vsel %vm263, %v636, 0
        %v704 = vsel %vm263, %v637, 0
        %v707 = vsel %vm263, %v638, 0
        %v710 = vsel %vm263, %v639, 0
        %v713 = vsel %vm263, %v640, 0
        %v716 = vsel %vm263, %v641, 0
        %v719 = vsel %vm263, %v642, 0
        %v722 = vsel %vm263, %v643, 0
        %v725 = vsel %vm263, %v644, 0
        %v728 = vsel %vm263, %v645, 0
        %v731 = vsel %vm263, %v646, 0
        %v734 = vsel %vm263, %v647, 0
        %v737 = vsel %vm263, %v648, 0
        %v740 = vsel %vm263, %v649, 0
        %v743 = vsel %vm263, %v650, 0
        %v746 = vsel %vm263, %v651, 0
        %v749 = vsel %vm263, %v652, 0
        %v752 = vsel %vm360, %v654, 0
        %754 = vmatprep.subr.mxu0 0.0
        %755 = vmatpush1.msra.mxu0 %v752
        %756 = vmatprep.subr.mxu0 0.0
        %757 = vmatpush1.msra.mxu0 0.0
        %758 = vmatprep.subr.mxu0 0.0
        %759 = vmatpush1.msra.mxu0 0.0
        %760 = vmatprep.subr.mxu0 0.0
        %761 = vmatpush1.msra.mxu0 0.0
        %762 = vmatprep.subr.mxu0 0.0
        %763 = vmatpush1.msra.mxu0 0.0
        %764 = vmatprep.subr.mxu0 0.0
        %765 = vmatpush1.msra.mxu0 0.0
        %766 = vmatprep.subr.mxu0 0.0
        %767 = vmatpush1.msra.mxu0 0.0
        %768 = vmatprep.subr.mxu0 0.0
        %769 = vmatpush1.msra.mxu0 0.0
        %770 = vmatprep.subr.mxu0 0.0
        %771 = vmatpush1.msra.mxu0 0.0
        %772 = vmatprep.subr.mxu0 0.0
        %773 = vmatpush1.msra.mxu0 0.0
        %774 = vmatprep.subr.mxu0 0.0
        %775 = vmatpush1.msra.mxu0 0.0
        %776 = vmatprep.subr.mxu0 0.0
        %777 = vmatpush1.msra.mxu0 0.0
        %778 = vmatprep.subr.mxu0 0.0
        %779 = vmatpush1.msra.mxu0 0.0
        %780 = vmatprep.subr.mxu0 0.0
        %781 = vmatpush1.msra.mxu0 0.0
        %782 = vmatprep.subr.mxu0 0.0
        %783 = vmatpush1.msra.mxu0 0.0
        %784 = vmatprep.subr.mxu0 0.0
        %785 = vmatpush1.msra.mxu0 0.0
        %786 = vmatprep.subr.mxu0 0.0
        %787 = vmatpush1.msra.mxu0 0.0
        %788 = vmatprep.subr.mxu0 0.0
        %789 = vmatpush1.msra.mxu0 0.0
        %790 = vmatprep.subr.mxu0 0.0
        %791 = vmatpush1.msra.mxu0 0.0
        %792 = vmatprep.subr.mxu0 0.0
        %793 = vmatpush1.msra.mxu0 0.0
        %794 = vmatprep.subr.mxu0 0.0
        %795 = vmatpush1.msra.mxu0 0.0
        %796 = vmatprep.subr.mxu0 0.0
        %797 = vmatpush1.msra.mxu0 0.0
        %798 = vmatprep.subr.mxu0 0.0
        %799 = vmatpush1.msra.mxu0 0.0
        %800 = vmatprep.subr.mxu0 0.0
        %801 = vmatpush1.msra.mxu0 0.0
        %802 = vmatprep.subr.mxu0 0.0
        %803 = vmatpush1.msra.mxu0 0.0
        %804 = vmatprep.subr.mxu0 0.0
        %805 = vmatpush1.msra.mxu0 0.0
        %806 = vmatprep.subr.mxu0 0.0
        %807 = vmatpush1.msra.mxu0 0.0
        %808 = vmatprep.subr.mxu0 0.0
        %809 = vmatpush1.msra.mxu0 0.0
        %810 = vmatprep.subr.mxu0 0.0
        %811 = vmatpush1.msra.mxu0 0.0
        %812 = vmatprep.subr.mxu0 0.0
        %813 = vmatpush1.msra.mxu0 0.0
        %814 = vmatprep.subr.mxu0 0.0
        %815 = vmatpush1.msra.mxu0 0.0
        %816 = vmatprep.subr.mxu0 0.0
        %817 = vmatpush1.msra.mxu0 0.0
        %818 = vmatprep.mubr.f32.mxu0 0.0
        %819 = vmatmul.mubr.f32.gmra.mrb[0].mxu0 %v656
        %v820 = vpop.f32.mrb[0].mxu0
        %v821 = vadd.f32 0.0, %v820
        %v822 = vpop.f32.mrb[0].mxu0
        %823 = vmatprep.mubr.f32.mxu0 0.0
        %824 = vmatmul.mubr.f32.gmra.mrb[0].mxu0 %v659
        %v825 = vpop.f32.mrb[0].mxu0
        %v826 = vadd.f32 0.0, %v825
        %v827 = vpop.f32.mrb[0].mxu0
        %828 = vmatprep.mubr.f32.mxu0 0.0
        %829 = vmatmul.mubr.f32.gmra.mrb[0].mxu0 %v662
        %v830 = vpop.f32.mrb[0].mxu0
        %v831 = vadd.f32 0.0, %v830
        %v832 = vpop.f32.mrb[0].mxu0
        %833 = vmatprep.mubr.f32.mxu0 0.0
        %834 = vmatmul.mubr.f32.gmra.mrb[0].mxu0 %v665
        %v835 = vpop.f32.mrb[0].mxu0
        %v836 = vadd.f32 0.0, %v835
        %v837 = vpop.f32.mrb[0].mxu0
        %838 = vmatprep.mubr.f32.mxu0 0.0
        %839 = vmatmul.mubr.f32.gmra.mrb[0].mxu0 %v668
        %v840 = vpop.f32.mrb[0].mxu0
        %v841 = vadd.f32 0.0, %v840
        %v842 = vpop.f32.mrb[0].mxu0
        %843 = vmatprep.mubr.f32.mxu0 0.0
        %844 = vmatmul.mubr.f32.gmra.mrb[0].mxu0 %v671
        %v845 = vpop.f32.mrb[0].mxu0
        %v846 = vadd.f32 0.0, %v845
        %v847 = vpop.f32.mrb[0].mxu0
        %848 = vmatprep.mubr.f32.mxu0 0.0
        %849 = vmatmul.mubr.f32.gmra.mrb[0].mxu0 %v674
        %v850 = vpop.f32.mrb[0].mxu0
        %v851 = vadd.f32 0.0, %v850
        %v852 = vpop.f32.mrb[0].mxu0
        %853 = vmatprep.mubr.f32.mxu0 0.0
        %854 = vmatmul.mubr.f32.gmra.mrb[0].mxu0 %v677
        %v855 = vpop.f32.mrb[0].mxu0
        %v856 = vadd.f32 0.0, %v855
        %v857 = vpop.f32.mrb[0].mxu0
        %858 = vmatprep.mubr.f32.mxu0 0.0
        %859 = vmatmul.mubr.f32.gmra.mrb[0].mxu0 %v680
        %v860 = vpop.f32.mrb[0].mxu0
        %v861 = vadd.f32 0.0, %v860
        %v862 = vpop.f32.mrb[0].mxu0
        %863 = vmatprep.mubr.f32.mxu0 0.0
        %864 = vmatmul.mubr.f32.gmra.mrb[0].mxu0 %v683
        %v865 = vpop.f32.mrb[0].mxu0
        %v866 = vadd.f32 0.0, %v865
        %v867 = vpop.f32.mrb[0].mxu0
        %868 = vmatprep.mubr.f32.mxu0 0.0
        %869 = vmatmul.mubr.f32.gmra.mrb[0].mxu0 %v686
        %v870 = vpop.f32.mrb[0].mxu0
        %v871 = vadd.f32 0.0, %v870
        %v872 = vpop.f32.mrb[0].mxu0
        %873 = vmatprep.mubr.f32.mxu0 0.0
        %874 = vmatmul.mubr.f32.gmra.mrb[0].mxu0 %v689
        %v875 = vpop.f32.mrb[0].mxu0
        %v876 = vadd.f32 0.0, %v875
        %v877 = vpop.f32.mrb[0].mxu0
        %878 = vmatprep.mubr.f32.mxu0 0.0
        %879 = vmatmul.mubr.f32.gmra.mrb[0].mxu0 %v692
        %v880 = vpop.f32.mrb[0].mxu0
        %v881 = vadd.f32 0.0, %v880
        %v882 = vpop.f32.mrb[0].mxu0
        %883 = vmatprep.mubr.f32.mxu0 0.0
        %884 = vmatmul.mubr.f32.gmra.mrb[0].mxu0 %v695
        %v885 = vpop.f32.mrb[0].mxu0
        %v886 = vadd.f32 0.0, %v885
        %v887 = vpop.f32.mrb[0].mxu0
        %888 = vmatprep.mubr.f32.mxu0 0.0
        %889 = vmatmul.mubr.f32.gmra.mrb[0].mxu0 %v698
        %v890 = vpop.f32.mrb[0].mxu0
        %v891 = vadd.f32 0.0, %v890
        %v892 = vpop.f32.mrb[0].mxu0
        %893 = vmatprep.mubr.f32.mxu0 0.0
        %894 = vmatmul.mubr.f32.gmra.mrb[0].mxu0 %v701
        %v895 = vpop.f32.mrb[0].mxu0
        %v896 = vadd.f32 0.0, %v895
        %v897 = vpop.f32.mrb[0].mxu0
        %898 = vmatprep.mubr.f32.mxu0 0.0
        %899 = vmatmul.mubr.f32.gmra.mrb[0].mxu0 %v704
        %v900 = vpop.f32.mrb[0].mxu0
        %v901 = vadd.f32 0.0, %v900
        %v902 = vpop.f32.mrb[0].mxu0
        %903 = vmatprep.mubr.f32.mxu0 0.0
        %904 = vmatmul.mubr.f32.gmra.mrb[0].mxu0 %v707
        %v905 = vpop.f32.mrb[0].mxu0
        %v906 = vadd.f32 0.0, %v905
        %v907 = vpop.f32.mrb[0].mxu0
        %908 = vmatprep.mubr.f32.mxu0 0.0
        %909 = vmatmul.mubr.f32.gmra.mrb[0].mxu0 %v710
        %v910 = vpop.f32.mrb[0].mxu0
        %v911 = vadd.f32 0.0, %v910
        %v912 = vpop.f32.mrb[0].mxu0
        %913 = vmatprep.mubr.f32.mxu0 0.0
        %914 = vmatmul.mubr.f32.gmra.mrb[0].mxu0 %v713
        %v915 = vpop.f32.mrb[0].mxu0
        %v916 = vadd.f32 0.0, %v915
        %v917 = vpop.f32.mrb[0].mxu0
        %918 = vmatprep.mubr.f32.mxu0 0.0
        %919 = vmatmul.mubr.f32.gmra.mrb[0].mxu0 %v716
        %v920 = vpop.f32.mrb[0].mxu0
        %v921 = vadd.f32 0.0, %v920
        %v922 = vpop.f32.mrb[0].mxu0
        %923 = vmatprep.mubr.f32.mxu0 0.0
        %924 = vmatmul.mubr.f32.gmra.mrb[0].mxu0 %v719
        %v925 = vpop.f32.mrb[0].mxu0
        %v926 = vadd.f32 0.0, %v925
        %v927 = vpop.f32.mrb[0].mxu0
        %928 = vmatprep.mubr.f32.mxu0 0.0
        %929 = vmatmul.mubr.f32.gmra.mrb[0].mxu0 %v722
        %v930 = vpop.f32.mrb[0].mxu0
        %v931 = vadd.f32 0.0, %v930
        %v932 = vpop.f32.mrb[0].mxu0
        %933 = vmatprep.mubr.f32.mxu0 0.0
        %934 = vmatmul.mubr.f32.gmra.mrb[0].mxu0 %v725
        %v935 = vpop.f32.mrb[0].mxu0
        %v936 = vadd.f32 0.0, %v935
        %v937 = vpop.f32.mrb[0].mxu0
        %938 = vmatprep.mubr.f32.mxu0 0.0
        %939 = vmatmul.mubr.f32.gmra.mrb[0].mxu0 %v728
        %v940 = vpop.f32.mrb[0].mxu0
        %v941 = vadd.f32 0.0, %v940
        %v942 = vpop.f32.mrb[0].mxu0
        %943 = vmatprep.mubr.f32.mxu0 0.0
        %944 = vmatmul.mubr.f32.gmra.mrb[0].mxu0 %v731
        %v945 = vpop.f32.mrb[0].mxu0
        %v946 = vadd.f32 0.0, %v945
        %v947 = vpop.f32.mrb[0].mxu0
        %948 = vmatprep.mubr.f32.mxu0 0.0
        %949 = vmatmul.mubr.f32.gmra.mrb[0].mxu0 %v734
        %v950 = vpop.f32.mrb[0].mxu0
        %v951 = vadd.f32 0.0, %v950
        %v952 = vpop.f32.mrb[0].mxu0
        %953 = vmatprep.mubr.f32.mxu0 0.0
        %954 = vmatmul.mubr.f32.gmra.mrb[0].mxu0 %v737
        %v955 = vpop.f32.mrb[0].mxu0
        %v956 = vadd.f32 0.0, %v955
        %v957 = vpop.f32.mrb[0].mxu0
        %958 = vmatprep.mubr.f32.mxu0 0.0
        %959 = vmatmul.mubr.f32.gmra.mrb[0].mxu0 %v740
        %v960 = vpop.f32.mrb[0].mxu0
        %v961 = vadd.f32 0.0, %v960
        %v962 = vpop.f32.mrb[0].mxu0
        %963 = vmatprep.mubr.f32.mxu0 0.0
        %964 = vmatmul.mubr.f32.gmra.mrb[0].mxu0 %v743
        %v965 = vpop.f32.mrb[0].mxu0
        %v966 = vadd.f32 0.0, %v965
        %v967 = vpop.f32.mrb[0].mxu0
        %968 = vmatprep.mubr.f32.mxu0 0.0
        %969 = vmatmul.mubr.f32.gmra.mrb[0].mxu0 %v746
        %v970 = vpop.f32.mrb[0].mxu0
        %v971 = vadd.f32 0.0, %v970
        %v972 = vpop.f32.mrb[0].mxu0
        %973 = vmatprep.mubr.f32.mxu0 0.0
        %974 = vmatmul.mubr.f32.gmra.mrb[0].mxu0 %v749
        %v975 = vpop.f32.mrb[0].mxu0
        %v976 = vadd.f32 0.0, %v975
        %v977 = vpop.f32.mrb[0].mxu0
        %978 = vdwg.mxu0
        %v979 = vadd.f32 %v589, %v821
        %v980 = vadd.f32 %v590, %v826
        %v981 = vadd.f32 %v591, %v831
        %v982 = vadd.f32 %v592, %v836
        %v983 = vadd.f32 %v593, %v841
        %v984 = vadd.f32 %v594, %v846
        %v985 = vadd.f32 %v595, %v851
        %v986 = vadd.f32 %v596, %v856
        %v987 = vadd.f32 %v597, %v861
        %v988 = vadd.f32 %v598, %v866
        %v989 = vadd.f32 %v599, %v871
        %v990 = vadd.f32 %v600, %v876
        %v991 = vadd.f32 %v601, %v881
        %v992 = vadd.f32 %v602, %v886
        %v993 = vadd.f32 %v603, %v891
        %v994 = vadd.f32 %v604, %v896
        %v995 = vadd.f32 %v605, %v901
        %v996 = vadd.f32 %v606, %v906
        %v997 = vadd.f32 %v607, %v911
        %v998 = vadd.f32 %v608, %v916
        %v999 = vadd.f32 %v609, %v921
        %v1000 = vadd.f32 %v610, %v926
        %v1001 = vadd.f32 %v611, %v931
        %v1002 = vadd.f32 %v612, %v936
        %v1003 = vadd.f32 %v613, %v941
        %v1004 = vadd.f32 %v614, %v946
        %v1005 = vadd.f32 %v615, %v951
        %v1006 = vadd.f32 %v616, %v956
        %v1007 = vadd.f32 %v617, %v961
        %v1008 = vadd.f32 %v618, %v966
        %v1009 = vadd.f32 %v619, %v971
        %v1010 = vadd.f32 %v620, %v976
        %v1011 = vld [vmem:[%s222 + $0x2] sm:$0xff]
        %v1012 = vld [vmem:[%s222 + $0xa] sm:$0xff]
        %v1013 = vld [vmem:[%s222 + $0x1a] sm:$0xff]
        %v1014 = vld [vmem:[%s222 + $0x22] sm:$0xff]
        %v1015 = vld [vmem:[%s222 + $0x32] sm:$0xff]
        %v1016 = vld [vmem:[%s222 + $0x3a] sm:$0xff]
        %v1017 = vld [vmem:[%s222 + $0x4a] sm:$0xff]
        %v1018 = vld [vmem:[%s222 + $0x52] sm:$0xff]
        %v1019 = vld [vmem:[%s222 + $0x62] sm:$0xff]
        %v1020 = vld [vmem:[%s222 + $0x6a] sm:$0xff]
        %v1021 = vld [vmem:[%s222 + $0x7a] sm:$0xff]
        %v1022 = vld [vmem:[%s222 + $0x82] sm:$0xff]
        %v1023 = vld [vmem:[%s222 + $0x92] sm:$0xff]
        %v1024 = vld [vmem:[%s222 + $0x9a] sm:$0xff]
        %v1025 = vld [vmem:[%s222 + $0xaa] sm:$0xff]
        %v1026 = vld [vmem:[%s222 + $0xb2] sm:$0xff]
        %v1027 = vld [vmem:[%s222 + $0xc2] sm:$0xff]
        %v1028 = vld [vmem:[%s222 + $0xca] sm:$0xff]
        %v1029 = vld [vmem:[%s222 + $0xda] sm:$0xff]
        %v1030 = vld [vmem:[%s222 + $0xe2] sm:$0xff]
        %v1031 = vld [vmem:[%s222 + $0xf2] sm:$0xff]
        %v1032 = vld [vmem:[%s222 + $0xfa] sm:$0xff]
        %v1033 = vld [vmem:[%s222 + $0x10a] sm:$0xff]
        %v1034 = vld [vmem:[%s222 + $0x112] sm:$0xff]
        %v1035 = vld [vmem:[%s222 + $0x122] sm:$0xff]
        %v1036 = vld [vmem:[%s222 + $0x12a] sm:$0xff]
        %v1037 = vld [vmem:[%s222 + $0x13a] sm:$0xff]
        %v1038 = vld [vmem:[%s222 + $0x142] sm:$0xff]
        %v1039 = vld [vmem:[%s222 + $0x152] sm:$0xff]
        %v1040 = vld [vmem:[%s222 + $0x15a] sm:$0xff]
        %v1041 = vld [vmem:[%s222 + $0x16a] sm:$0xff]
        %v1042 = vld [vmem:[%s222 + $0x172] sm:$0xff]
        %s1043 = scalar_lea.vmem %s1, 8
        %v1044 = vld [vmem:[%s1043] sm:$0xf]
        %v1046 = vsel %vm263, %v1011, 0
        %v1049 = vsel %vm263, %v1012, 0
        %v1052 = vsel %vm263, %v1013, 0
        %v1055 = vsel %vm263, %v1014, 0
        %v1058 = vsel %vm263, %v1015, 0
        %v1061 = vsel %vm263, %v1016, 0
        %v1064 = vsel %vm263, %v1017, 0
        %v1067 = vsel %vm263, %v1018, 0
        %v1070 = vsel %vm263, %v1019, 0
        %v1073 = vsel %vm263, %v1020, 0
        %v1076 = vsel %vm263, %v1021, 0
        %v1079 = vsel %vm263, %v1022, 0
        %v1082 = vsel %vm263, %v1023, 0
        %v1085 = vsel %vm263, %v1024, 0
        %v1088 = vsel %vm263, %v1025, 0
        %v1091 = vsel %vm263, %v1026, 0
        %v1094 = vsel %vm263, %v1027, 0
        %v1097 = vsel %vm263, %v1028, 0
        %v1100 = vsel %vm263, %v1029, 0
        %v1103 = vsel %vm263, %v1030, 0
        %v1106 = vsel %vm263, %v1031, 0
        %v1109 = vsel %vm263, %v1032, 0
        %v1112 = vsel %vm263, %v1033, 0
        %v1115 = vsel %vm263, %v1034, 0
        %v1118 = vsel %vm263, %v1035, 0
        %v1121 = vsel %vm263, %v1036, 0
        %v1124 = vsel %vm263, %v1037, 0
        %v1127 = vsel %vm263, %v1038, 0
        %v1130 = vsel %vm263, %v1039, 0
        %v1133 = vsel %vm263, %v1040, 0
        %v1136 = vsel %vm263, %v1041, 0
        %v1139 = vsel %vm263, %v1042, 0
        %v1142 = vsel %vm360, %v1044, 0
        %1144 = vmatprep.subr.mxu0 0.0
        %1145 = vmatpush1.msra.mxu0 %v1142
        %1146 = vmatprep.subr.mxu0 0.0
        %1147 = vmatpush1.msra.mxu0 0.0
        %1148 = vmatprep.subr.mxu0 0.0
        %1149 = vmatpush1.msra.mxu0 0.0
        %1150 = vmatprep.subr.mxu0 0.0
        %1151 = vmatpush1.msra.mxu0 0.0
        %1152 = vmatprep.subr.mxu0 0.0
        %1153 = vmatpush1.msra.mxu0 0.0
        %1154 = vmatprep.subr.mxu0 0.0
        %1155 = vmatpush1.msra.mxu0 0.0
        %1156 = vmatprep.subr.mxu0 0.0
        %1157 = vmatpush1.msra.mxu0 0.0
        %1158 = vmatprep.subr.mxu0 0.0
        %1159 = vmatpush1.msra.mxu0 0.0
        %1160 = vmatprep.subr.mxu0 0.0
        %1161 = vmatpush1.msra.mxu0 0.0
        %1162 = vmatprep.subr.mxu0 0.0
        %1163 = vmatpush1.msra.mxu0 0.0
        %1164 = vmatprep.subr.mxu0 0.0
        %1165 = vmatpush1.msra.mxu0 0.0
        %1166 = vmatprep.subr.mxu0 0.0
        %1167 = vmatpush1.msra.mxu0 0.0
        %1168 = vmatprep.subr.mxu0 0.0
        %1169 = vmatpush1.msra.mxu0 0.0
        %1170 = vmatprep.subr.mxu0 0.0
        %1171 = vmatpush1.msra.mxu0 0.0
        %1172 = vmatprep.subr.mxu0 0.0
        %1173 = vmatpush1.msra.mxu0 0.0
        %1174 = vmatprep.subr.mxu0 0.0
        %1175 = vmatpush1.msra.mxu0 0.0
        %1176 = vmatprep.subr.mxu0 0.0
        %1177 = vmatpush1.msra.mxu0 0.0
        %1178 = vmatprep.subr.mxu0 0.0
        %1179 = vmatpush1.msra.mxu0 0.0
        %1180 = vmatprep.subr.mxu0 0.0
        %1181 = vmatpush1.msra.mxu0 0.0
        %1182 = vmatprep.subr.mxu0 0.0
        %1183 = vmatpush1.msra.mxu0 0.0
        %1184 = vmatprep.subr.mxu0 0.0
        %1185 = vmatpush1.msra.mxu0 0.0
        %1186 = vmatprep.subr.mxu0 0.0
        %1187 = vmatpush1.msra.mxu0 0.0
        %1188 = vmatprep.subr.mxu0 0.0
        %1189 = vmatpush1.msra.mxu0 0.0
        %1190 = vmatprep.subr.mxu0 0.0
        %1191 = vmatpush1.msra.mxu0 0.0
        %1192 = vmatprep.subr.mxu0 0.0
        %1193 = vmatpush1.msra.mxu0 0.0
        %1194 = vmatprep.subr.mxu0 0.0
        %1195 = vmatpush1.msra.mxu0 0.0
        %1196 = vmatprep.subr.mxu0 0.0
        %1197 = vmatpush1.msra.mxu0 0.0
        %1198 = vmatprep.subr.mxu0 0.0
        %1199 = vmatpush1.msra.mxu0 0.0
        %1200 = vmatprep.subr.mxu0 0.0
        %1201 = vmatpush1.msra.mxu0 0.0
        %1202 = vmatprep.subr.mxu0 0.0
        %1203 = vmatpush1.msra.mxu0 0.0
        %1204 = vmatprep.subr.mxu0 0.0
        %1205 = vmatpush1.msra.mxu0 0.0
        %1206 = vmatprep.subr.mxu0 0.0
        %1207 = vmatpush1.msra.mxu0 0.0
        %1208 = vmatprep.mubr.f32.mxu0 0.0
        %1209 = vmatmul.mubr.f32.gmra.mrb[0].mxu0 %v1046
        %v1210 = vpop.f32.mrb[0].mxu0
        %v1211 = vadd.f32 0.0, %v1210
        %v1212 = vpop.f32.mrb[0].mxu0
        %1213 = vmatprep.mubr.f32.mxu0 0.0
        %1214 = vmatmul.mubr.f32.gmra.mrb[0].mxu0 %v1049
        %v1215 = vpop.f32.mrb[0].mxu0
        %v1216 = vadd.f32 0.0, %v1215
        %v1217 = vpop.f32.mrb[0].mxu0
        %1218 = vmatprep.mubr.f32.mxu0 0.0
        %1219 = vmatmul.mubr.f32.gmra.mrb[0].mxu0 %v1052
        %v1220 = vpop.f32.mrb[0].mxu0
        %v1221 = vadd.f32 0.0, %v1220
        %v1222 = vpop.f32.mrb[0].mxu0
        %1223 = vmatprep.mubr.f32.mxu0 0.0
        %1224 = vmatmul.mubr.f32.gmra.mrb[0].mxu0 %v1055
        %v1225 = vpop.f32.mrb[0].mxu0
        %v1226 = vadd.f32 0.0, %v1225
        %v1227 = vpop.f32.mrb[0].mxu0
        %1228 = vmatprep.mubr.f32.mxu0 0.0
        %1229 = vmatmul.mubr.f32.gmra.mrb[0].mxu0 %v1058
        %v1230 = vpop.f32.mrb[0].mxu0
        %v1231 = vadd.f32 0.0, %v1230
        %v1232 = vpop.f32.mrb[0].mxu0
        %1233 = vmatprep.mubr.f32.mxu0 0.0
        %1234 = vmatmul.mubr.f32.gmra.mrb[0].mxu0 %v1061
        %v1235 = vpop.f32.mrb[0].mxu0
        %v1236 = vadd.f32 0.0, %v1235
        %v1237 = vpop.f32.mrb[0].mxu0
        %1238 = vmatprep.mubr.f32.mxu0 0.0
        %1239 = vmatmul.mubr.f32.gmra.mrb[0].mxu0 %v1064
        %v1240 = vpop.f32.mrb[0].mxu0
        %v1241 = vadd.f32 0.0, %v1240
        %v1242 = vpop.f32.mrb[0].mxu0
        %1243 = vmatprep.mubr.f32.mxu0 0.0
        %1244 = vmatmul.mubr.f32.gmra.mrb[0].mxu0 %v1067
        %v1245 = vpop.f32.mrb[0].mxu0
        %v1246 = vadd.f32 0.0, %v1245
        %v1247 = vpop.f32.mrb[0].mxu0
        %1248 = vmatprep.mubr.f32.mxu0 0.0
        %1249 = vmatmul.mubr.f32.gmra.mrb[0].mxu0 %v1070
        %v1250 = vpop.f32.mrb[0].mxu0
        %v1251 = vadd.f32 0.0, %v1250
        %v1252 = vpop.f32.mrb[0].mxu0
        %1253 = vmatprep.mubr.f32.mxu0 0.0
        %1254 = vmatmul.mubr.f32.gmra.mrb[0].mxu0 %v1073
        %v1255 = vpop.f32.mrb[0].mxu0
        %v1256 = vadd.f32 0.0, %v1255
        %v1257 = vpop.f32.mrb[0].mxu0
        %1258 = vmatprep.mubr.f32.mxu0 0.0
        %1259 = vmatmul.mubr.f32.gmra.mrb[0].mxu0 %v1076
        %v1260 = vpop.f32.mrb[0].mxu0
        %v1261 = vadd.f32 0.0, %v1260
        %v1262 = vpop.f32.mrb[0].mxu0
        %1263 = vmatprep.mubr.f32.mxu0 0.0
        %1264 = vmatmul.mubr.f32.gmra.mrb[0].mxu0 %v1079
        %v1265 = vpop.f32.mrb[0].mxu0
        %v1266 = vadd.f32 0.0, %v1265
        %v1267 = vpop.f32.mrb[0].mxu0
        %1268 = vmatprep.mubr.f32.mxu0 0.0
        %1269 = vmatmul.mubr.f32.gmra.mrb[0].mxu0 %v1082
        %v1270 = vpop.f32.mrb[0].mxu0
        %v1271 = vadd.f32 0.0, %v1270
        %v1272 = vpop.f32.mrb[0].mxu0
        %1273 = vmatprep.mubr.f32.mxu0 0.0
        %1274 = vmatmul.mubr.f32.gmra.mrb[0].mxu0 %v1085
        %v1275 = vpop.f32.mrb[0].mxu0
        %v1276 = vadd.f32 0.0, %v1275
        %v1277 = vpop.f32.mrb[0].mxu0
        %1278 = vmatprep.mubr.f32.mxu0 0.0
        %1279 = vmatmul.mubr.f32.gmra.mrb[0].mxu0 %v1088
        %v1280 = vpop.f32.mrb[0].mxu0
        %v1281 = vadd.f32 0.0, %v1280
        %v1282 = vpop.f32.mrb[0].mxu0
        %1283 = vmatprep.mubr.f32.mxu0 0.0
        %1284 = vmatmul.mubr.f32.gmra.mrb[0].mxu0 %v1091
        %v1285 = vpop.f32.mrb[0].mxu0
        %v1286 = vadd.f32 0.0, %v1285
        %v1287 = vpop.f32.mrb[0].mxu0
        %1288 = vmatprep.mubr.f32.mxu0 0.0
        %1289 = vmatmul.mubr.f32.gmra.mrb[0].mxu0 %v1094
        %v1290 = vpop.f32.mrb[0].mxu0
        %v1291 = vadd.f32 0.0, %v1290
        %v1292 = vpop.f32.mrb[0].mxu0
        %1293 = vmatprep.mubr.f32.mxu0 0.0
        %1294 = vmatmul.mubr.f32.gmra.mrb[0].mxu0 %v1097
        %v1295 = vpop.f32.mrb[0].mxu0
        %v1296 = vadd.f32 0.0, %v1295
        %v1297 = vpop.f32.mrb[0].mxu0
        %1298 = vmatprep.mubr.f32.mxu0 0.0
        %1299 = vmatmul.mubr.f32.gmra.mrb[0].mxu0 %v1100
        %v1300 = vpop.f32.mrb[0].mxu0
        %v1301 = vadd.f32 0.0, %v1300
        %v1302 = vpop.f32.mrb[0].mxu0
        %1303 = vmatprep.mubr.f32.mxu0 0.0
        %1304 = vmatmul.mubr.f32.gmra.mrb[0].mxu0 %v1103
        %v1305 = vpop.f32.mrb[0].mxu0
        %v1306 = vadd.f32 0.0, %v1305
        %v1307 = vpop.f32.mrb[0].mxu0
        %1308 = vmatprep.mubr.f32.mxu0 0.0
        %1309 = vmatmul.mubr.f32.gmra.mrb[0].mxu0 %v1106
        %v1310 = vpop.f32.mrb[0].mxu0
        %v1311 = vadd.f32 0.0, %v1310
        %v1312 = vpop.f32.mrb[0].mxu0
        %1313 = vmatprep.mubr.f32.mxu0 0.0
        %1314 = vmatmul.mubr.f32.gmra.mrb[0].mxu0 %v1109
        %v1315 = vpop.f32.mrb[0].mxu0
        %v1316 = vadd.f32 0.0, %v1315
        %v1317 = vpop.f32.mrb[0].mxu0
        %1318 = vmatprep.mubr.f32.mxu0 0.0
        %1319 = vmatmul.mubr.f32.gmra.mrb[0].mxu0 %v1112
        %v1320 = vpop.f32.mrb[0].mxu0
        %v1321 = vadd.f32 0.0, %v1320
        %v1322 = vpop.f32.mrb[0].mxu0
        %1323 = vmatprep.mubr.f32.mxu0 0.0
        %1324 = vmatmul.mubr.f32.gmra.mrb[0].mxu0 %v1115
        %v1325 = vpop.f32.mrb[0].mxu0
        %v1326 = vadd.f32 0.0, %v1325
        %v1327 = vpop.f32.mrb[0].mxu0
        %1328 = vmatprep.mubr.f32.mxu0 0.0
        %1329 = vmatmul.mubr.f32.gmra.mrb[0].mxu0 %v1118
        %v1330 = vpop.f32.mrb[0].mxu0
        %v1331 = vadd.f32 0.0, %v1330
        %v1332 = vpop.f32.mrb[0].mxu0
        %1333 = vmatprep.mubr.f32.mxu0 0.0
        %1334 = vmatmul.mubr.f32.gmra.mrb[0].mxu0 %v1121
        %v1335 = vpop.f32.mrb[0].mxu0
        %v1336 = vadd.f32 0.0, %v1335
        %v1337 = vpop.f32.mrb[0].mxu0
        %1338 = vmatprep.mubr.f32.mxu0 0.0
        %1339 = vmatmul.mubr.f32.gmra.mrb[0].mxu0 %v1124
        %v1340 = vpop.f32.mrb[0].mxu0
        %v1341 = vadd.f32 0.0, %v1340
        %v1342 = vpop.f32.mrb[0].mxu0
        %1343 = vmatprep.mubr.f32.mxu0 0.0
        %1344 = vmatmul.mubr.f32.gmra.mrb[0].mxu0 %v1127
        %v1345 = vpop.f32.mrb[0].mxu0
        %v1346 = vadd.f32 0.0, %v1345
        %v1347 = vpop.f32.mrb[0].mxu0
        %1348 = vmatprep.mubr.f32.mxu0 0.0
        %1349 = vmatmul.mubr.f32.gmra.mrb[0].mxu0 %v1130
        %v1350 = vpop.f32.mrb[0].mxu0
        %v1351 = vadd.f32 0.0, %v1350
        %v1352 = vpop.f32.mrb[0].mxu0
        %1353 = vmatprep.mubr.f32.mxu0 0.0
        %1354 = vmatmul.mubr.f32.gmra.mrb[0].mxu0 %v1133
        %v1355 = vpop.f32.mrb[0].mxu0
        %v1356 = vadd.f32 0.0, %v1355
        %v1357 = vpop.f32.mrb[0].mxu0
        %1358 = vmatprep.mubr.f32.mxu0 0.0
        %1359 = vmatmul.mubr.f32.gmra.mrb[0].mxu0 %v1136
        %v1360 = vpop.f32.mrb[0].mxu0
        %v1361 = vadd.f32 0.0, %v1360
        %v1362 = vpop.f32.mrb[0].mxu0
        %1363 = vmatprep.mubr.f32.mxu0 0.0
        %1364 = vmatmul.mubr.f32.gmra.mrb[0].mxu0 %v1139
        %v1365 = vpop.f32.mrb[0].mxu0
        %v1366 = vadd.f32 0.0, %v1365
        %v1367 = vpop.f32.mrb[0].mxu0
        %1368 = vdwg.mxu0
        %v1369 = vadd.f32 %v979, %v1211
        %v1370 = vadd.f32 %v980, %v1216
        %v1371 = vadd.f32 %v981, %v1221
        %v1372 = vadd.f32 %v982, %v1226
        %v1373 = vadd.f32 %v983, %v1231
        %v1374 = vadd.f32 %v984, %v1236
        %v1375 = vadd.f32 %v985, %v1241
        %v1376 = vadd.f32 %v986, %v1246
        %v1377 = vadd.f32 %v987, %v1251
        %v1378 = vadd.f32 %v988, %v1256
        %v1379 = vadd.f32 %v989, %v1261
        %v1380 = vadd.f32 %v990, %v1266
        %v1381 = vadd.f32 %v991, %v1271
        %v1382 = vadd.f32 %v992, %v1276
        %v1383 = vadd.f32 %v993, %v1281
        %v1384 = vadd.f32 %v994, %v1286
        %v1385 = vadd.f32 %v995, %v1291
        %v1386 = vadd.f32 %v996, %v1296
        %v1387 = vadd.f32 %v997, %v1301
        %v1388 = vadd.f32 %v998, %v1306
        %v1389 = vadd.f32 %v999, %v1311
        %v1390 = vadd.f32 %v1000, %v1316
        %v1391 = vadd.f32 %v1001, %v1321
        %v1392 = vadd.f32 %v1002, %v1326
        %v1393 = vadd.f32 %v1003, %v1331
        %v1394 = vadd.f32 %v1004, %v1336
        %v1395 = vadd.f32 %v1005, %v1341
        %v1396 = vadd.f32 %v1006, %v1346
        %v1397 = vadd.f32 %v1007, %v1351
        %v1398 = vadd.f32 %v1008, %v1356
        %v1399 = vadd.f32 %v1009, %v1361
        %v1400 = vadd.f32 %v1010, %v1366
        %s1401 = scalar_lea.vmem %s222, 24
        %v1402 = vld [vmem:[%s1401] sm:$0xff]
        %v1403 = vld [vmem:[%s1401 + $0x8] sm:$0xff]
        %v1404 = vld [vmem:[%s1401 + $0x18] sm:$0xff]
        %v1405 = vld [vmem:[%s1401 + $0x20] sm:$0xff]
        %v1406 = vld [vmem:[%s1401 + $0x30] sm:$0xff]
        %v1407 = vld [vmem:[%s1401 + $0x38] sm:$0xff]
        %v1408 = vld [vmem:[%s1401 + $0x48] sm:$0xff]
        %v1409 = vld [vmem:[%s1401 + $0x50] sm:$0xff]
        %v1410 = vld [vmem:[%s1401 + $0x60] sm:$0xff]
        %v1411 = vld [vmem:[%s1401 + $0x68] sm:$0xff]
        %v1412 = vld [vmem:[%s1401 + $0x78] sm:$0xff]
        %v1413 = vld [vmem:[%s1401 + $0x80] sm:$0xff]
        %v1414 = vld [vmem:[%s1401 + $0x90] sm:$0xff]
        %v1415 = vld [vmem:[%s1401 + $0x98] sm:$0xff]
        %v1416 = vld [vmem:[%s1401 + $0xa8] sm:$0xff]
        %v1417 = vld [vmem:[%s1401 + $0xb0] sm:$0xff]
        %v1418 = vld [vmem:[%s1401 + $0xc0] sm:$0xff]
        %v1419 = vld [vmem:[%s1401 + $0xc8] sm:$0xff]
        %v1420 = vld [vmem:[%s1401 + $0xd8] sm:$0xff]
        %v1421 = vld [vmem:[%s1401 + $0xe0] sm:$0xff]
        %v1422 = vld [vmem:[%s1401 + $0xf0] sm:$0xff]
        %v1423 = vld [vmem:[%s1401 + $0xf8] sm:$0xff]
        %v1424 = vld [vmem:[%s1401 + $0x108] sm:$0xff]
        %v1425 = vld [vmem:[%s1401 + $0x110] sm:$0xff]
        %v1426 = vld [vmem:[%s1401 + $0x120] sm:$0xff]
        %v1427 = vld [vmem:[%s1401 + $0x128] sm:$0xff]
        %v1428 = vld [vmem:[%s1401 + $0x138] sm:$0xff]
        %v1429 = vld [vmem:[%s1401 + $0x140] sm:$0xff]
        %v1430 = vld [vmem:[%s1401 + $0x150] sm:$0xff]
        %v1431 = vld [vmem:[%s1401 + $0x158] sm:$0xff]
        %v1432 = vld [vmem:[%s1401 + $0x168] sm:$0xff]
        %v1433 = vld [vmem:[%s1401 + $0x170] sm:$0xff]
        %s1434 = scalar_lea.vmem %s1, 12
        %v1435 = vld [vmem:[%s1434] sm:$0xf]
        %v1437 = vsel %vm263, %v1402, 0
        %v1440 = vsel %vm263, %v1403, 0
        %v1443 = vsel %vm263, %v1404, 0
        %v1446 = vsel %vm263, %v1405, 0
        %v1449 = vsel %vm263, %v1406, 0
        %v1452 = vsel %vm263, %v1407, 0
        %v1455 = vsel %vm263, %v1408, 0
        %v1458 = vsel %vm263, %v1409, 0
        %v1461 = vsel %vm263, %v1410, 0
        %v1464 = vsel %vm263, %v1411, 0
        %v1467 = vsel %vm263, %v1412, 0
        %v1470 = vsel %vm263, %v1413, 0
        %v1473 = vsel %vm263, %v1414, 0
        %v1476 = vsel %vm263, %v1415, 0
        %v1479 = vsel %vm263, %v1416, 0
        %v1482 = vsel %vm263, %v1417, 0
        %v1485 = vsel %vm263, %v1418, 0
        %v1488 = vsel %vm263, %v1419, 0
        %v1491 = vsel %vm263, %v1420, 0
        %v1494 = vsel %vm263, %v1421, 0
        %v1497 = vsel %vm263, %v1422, 0
        %v1500 = vsel %vm263, %v1423, 0
        %v1503 = vsel %vm263, %v1424, 0
        %v1506 = vsel %vm263, %v1425, 0
        %v1509 = vsel %vm263, %v1426, 0
        %v1512 = vsel %vm263, %v1427, 0
        %v1515 = vsel %vm263, %v1428, 0
        %v1518 = vsel %vm263, %v1429, 0
        %v1521 = vsel %vm263, %v1430, 0
        %v1524 = vsel %vm263, %v1431, 0
        %v1527 = vsel %vm263, %v1432, 0
        %v1530 = vsel %vm263, %v1433, 0
        %v1533 = vsel %vm360, %v1435, 0
        %1535 = vmatprep.subr.mxu0 0.0
        %1536 = vmatpush1.msra.mxu0 %v1533
        %1537 = vmatprep.subr.mxu0 0.0
        %1538 = vmatpush1.msra.mxu0 0.0
        %1539 = vmatprep.subr.mxu0 0.0
        %1540 = vmatpush1.msra.mxu0 0.0
        %1541 = vmatprep.subr.mxu0 0.0
        %1542 = vmatpush1.msra.mxu0 0.0
        %1543 = vmatprep.subr.mxu0 0.0
        %1544 = vmatpush1.msra.mxu0 0.0
        %1545 = vmatprep.subr.mxu0 0.0
        %1546 = vmatpush1.msra.mxu0 0.0
        %1547 = vmatprep.subr.mxu0 0.0
        %1548 = vmatpush1.msra.mxu0 0.0
        %1549 = vmatprep.subr.mxu0 0.0
        %1550 = vmatpush1.msra.mxu0 0.0
        %1551 = vmatprep.subr.mxu0 0.0
        %1552 = vmatpush1.msra.mxu0 0.0
        %1553 = vmatprep.subr.mxu0 0.0
        %1554 = vmatpush1.msra.mxu0 0.0
        %1555 = vmatprep.subr.mxu0 0.0
        %1556 = vmatpush1.msra.mxu0 0.0
        %1557 = vmatprep.subr.mxu0 0.0
        %1558 = vmatpush1.msra.mxu0 0.0
        %1559 = vmatprep.subr.mxu0 0.0
        %1560 = vmatpush1.msra.mxu0 0.0
        %1561 = vmatprep.subr.mxu0 0.0
        %1562 = vmatpush1.msra.mxu0 0.0
        %1563 = vmatprep.subr.mxu0 0.0
        %1564 = vmatpush1.msra.mxu0 0.0
        %1565 = vmatprep.subr.mxu0 0.0
        %1566 = vmatpush1.msra.mxu0 0.0
        %1567 = vmatprep.subr.mxu0 0.0
        %1568 = vmatpush1.msra.mxu0 0.0
        %1569 = vmatprep.subr.mxu0 0.0
        %1570 = vmatpush1.msra.mxu0 0.0
        %1571 = vmatprep.subr.mxu0 0.0
        %1572 = vmatpush1.msra.mxu0 0.0
        %1573 = vmatprep.subr.mxu0 0.0
        %1574 = vmatpush1.msra.mxu0 0.0
        %1575 = vmatprep.subr.mxu0 0.0
        %1576 = vmatpush1.msra.mxu0 0.0
        %1577 = vmatprep.subr.mxu0 0.0
        %1578 = vmatpush1.msra.mxu0 0.0
        %1579 = vmatprep.subr.mxu0 0.0
        %1580 = vmatpush1.msra.mxu0 0.0
        %1581 = vmatprep.subr.mxu0 0.0
        %1582 = vmatpush1.msra.mxu0 0.0
        %1583 = vmatprep.subr.mxu0 0.0
        %1584 = vmatpush1.msra.mxu0 0.0
        %1585 = vmatprep.subr.mxu0 0.0
        %1586 = vmatpush1.msra.mxu0 0.0
        %1587 = vmatprep.subr.mxu0 0.0
        %1588 = vmatpush1.msra.mxu0 0.0
        %1589 = vmatprep.subr.mxu0 0.0
        %1590 = vmatpush1.msra.mxu0 0.0
        %1591 = vmatprep.subr.mxu0 0.0
        %1592 = vmatpush1.msra.mxu0 0.0
        %1593 = vmatprep.subr.mxu0 0.0
        %1594 = vmatpush1.msra.mxu0 0.0
        %1595 = vmatprep.subr.mxu0 0.0
        %1596 = vmatpush1.msra.mxu0 0.0
        %1597 = vmatprep.subr.mxu0 0.0
        %1598 = vmatpush1.msra.mxu0 0.0
        %1599 = vmatprep.mubr.f32.mxu0 0.0
        %1600 = vmatmul.mubr.f32.gmra.mrb[0].mxu0 %v1437
        %v1601 = vpop.f32.mrb[0].mxu0
        %v1602 = vadd.f32 0.0, %v1601
        %v1603 = vpop.f32.mrb[0].mxu0
        %1604 = vmatprep.mubr.f32.mxu0 0.0
        %1605 = vmatmul.mubr.f32.gmra.mrb[0].mxu0 %v1440
        %v1606 = vpop.f32.mrb[0].mxu0
        %v1607 = vadd.f32 0.0, %v1606
        %v1608 = vpop.f32.mrb[0].mxu0
        %1609 = vmatprep.mubr.f32.mxu0 0.0
        %1610 = vmatmul.mubr.f32.gmra.mrb[0].mxu0 %v1443
        %v1611 = vpop.f32.mrb[0].mxu0
        %v1612 = vadd.f32 0.0, %v1611
        %v1613 = vpop.f32.mrb[0].mxu0
        %1614 = vmatprep.mubr.f32.mxu0 0.0
        %1615 = vmatmul.mubr.f32.gmra.mrb[0].mxu0 %v1446
        %v1616 = vpop.f32.mrb[0].mxu0
        %v1617 = vadd.f32 0.0, %v1616
        %v1618 = vpop.f32.mrb[0].mxu0
        %1619 = vmatprep.mubr.f32.mxu0 0.0
        %1620 = vmatmul.mubr.f32.gmra.mrb[0].mxu0 %v1449
        %v1621 = vpop.f32.mrb[0].mxu0
        %v1622 = vadd.f32 0.0, %v1621
        %v1623 = vpop.f32.mrb[0].mxu0
        %1624 = vmatprep.mubr.f32.mxu0 0.0
        %1625 = vmatmul.mubr.f32.gmra.mrb[0].mxu0 %v1452
        %v1626 = vpop.f32.mrb[0].mxu0
        %v1627 = vadd.f32 0.0, %v1626
        %v1628 = vpop.f32.mrb[0].mxu0
        %1629 = vmatprep.mubr.f32.mxu0 0.0
        %1630 = vmatmul.mubr.f32.gmra.mrb[0].mxu0 %v1455
        %v1631 = vpop.f32.mrb[0].mxu0
        %v1632 = vadd.f32 0.0, %v1631
        %v1633 = vpop.f32.mrb[0].mxu0
        %1634 = vmatprep.mubr.f32.mxu0 0.0
        %1635 = vmatmul.mubr.f32.gmra.mrb[0].mxu0 %v1458
        %v1636 = vpop.f32.mrb[0].mxu0
        %v1637 = vadd.f32 0.0, %v1636
        %v1638 = vpop.f32.mrb[0].mxu0
        %1639 = vmatprep.mubr.f32.mxu0 0.0
        %1640 = vmatmul.mubr.f32.gmra.mrb[0].mxu0 %v1461
        %v1641 = vpop.f32.mrb[0].mxu0
        %v1642 = vadd.f32 0.0, %v1641
        %v1643 = vpop.f32.mrb[0].mxu0
        %1644 = vmatprep.mubr.f32.mxu0 0.0
        %1645 = vmatmul.mubr.f32.gmra.mrb[0].mxu0 %v1464
        %v1646 = vpop.f32.mrb[0].mxu0
        %v1647 = vadd.f32 0.0, %v1646
        %v1648 = vpop.f32.mrb[0].mxu0
        %1649 = vmatprep.mubr.f32.mxu0 0.0
        %1650 = vmatmul.mubr.f32.gmra.mrb[0].mxu0 %v1467
        %v1651 = vpop.f32.mrb[0].mxu0
        %v1652 = vadd.f32 0.0, %v1651
        %v1653 = vpop.f32.mrb[0].mxu0
        %1654 = vmatprep.mubr.f32.mxu0 0.0
        %1655 = vmatmul.mubr.f32.gmra.mrb[0].mxu0 %v1470
        %v1656 = vpop.f32.mrb[0].mxu0
        %v1657 = vadd.f32 0.0, %v1656
        %v1658 = vpop.f32.mrb[0].mxu0
        %1659 = vmatprep.mubr.f32.mxu0 0.0
        %1660 = vmatmul.mubr.f32.gmra.mrb[0].mxu0 %v1473
        %v1661 = vpop.f32.mrb[0].mxu0
        %v1662 = vadd.f32 0.0, %v1661
        %v1663 = vpop.f32.mrb[0].mxu0
        %1664 = vmatprep.mubr.f32.mxu0 0.0
        %1665 = vmatmul.mubr.f32.gmra.mrb[0].mxu0 %v1476
        %v1666 = vpop.f32.mrb[0].mxu0
        %v1667 = vadd.f32 0.0, %v1666
        %v1668 = vpop.f32.mrb[0].mxu0
        %1669 = vmatprep.mubr.f32.mxu0 0.0
        %1670 = vmatmul.mubr.f32.gmra.mrb[0].mxu0 %v1479
        %v1671 = vpop.f32.mrb[0].mxu0
        %v1672 = vadd.f32 0.0, %v1671
        %v1673 = vpop.f32.mrb[0].mxu0
        %1674 = vmatprep.mubr.f32.mxu0 0.0
        %1675 = vmatmul.mubr.f32.gmra.mrb[0].mxu0 %v1482
        %v1676 = vpop.f32.mrb[0].mxu0
        %v1677 = vadd.f32 0.0, %v1676
        %v1678 = vpop.f32.mrb[0].mxu0
        %1679 = vmatprep.mubr.f32.mxu0 0.0
        %1680 = vmatmul.mubr.f32.gmra.mrb[0].mxu0 %v1485
        %v1681 = vpop.f32.mrb[0].mxu0
        %v1682 = vadd.f32 0.0, %v1681
        %v1683 = vpop.f32.mrb[0].mxu0
        %1684 = vmatprep.mubr.f32.mxu0 0.0
        %1685 = vmatmul.mubr.f32.gmra.mrb[0].mxu0 %v1488
        %v1686 = vpop.f32.mrb[0].mxu0
        %v1687 = vadd.f32 0.0, %v1686
        %v1688 = vpop.f32.mrb[0].mxu0
        %1689 = vmatprep.mubr.f32.mxu0 0.0
        %1690 = vmatmul.mubr.f32.gmra.mrb[0].mxu0 %v1491
        %v1691 = vpop.f32.mrb[0].mxu0
        %v1692 = vadd.f32 0.0, %v1691
        %v1693 = vpop.f32.mrb[0].mxu0
        %1694 = vmatprep.mubr.f32.mxu0 0.0
        %1695 = vmatmul.mubr.f32.gmra.mrb[0].mxu0 %v1494
        %v1696 = vpop.f32.mrb[0].mxu0
        %v1697 = vadd.f32 0.0, %v1696
        %v1698 = vpop.f32.mrb[0].mxu0
        %1699 = vmatprep.mubr.f32.mxu0 0.0
        %1700 = vmatmul.mubr.f32.gmra.mrb[0].mxu0 %v1497
        %v1701 = vpop.f32.mrb[0].mxu0
        %v1702 = vadd.f32 0.0, %v1701
        %v1703 = vpop.f32.mrb[0].mxu0
        %1704 = vmatprep.mubr.f32.mxu0 0.0
        %1705 = vmatmul.mubr.f32.gmra.mrb[0].mxu0 %v1500
        %v1706 = vpop.f32.mrb[0].mxu0
        %v1707 = vadd.f32 0.0, %v1706
        %v1708 = vpop.f32.mrb[0].mxu0
        %1709 = vmatprep.mubr.f32.mxu0 0.0
        %1710 = vmatmul.mubr.f32.gmra.mrb[0].mxu0 %v1503
        %v1711 = vpop.f32.mrb[0].mxu0
        %v1712 = vadd.f32 0.0, %v1711
        %v1713 = vpop.f32.mrb[0].mxu0
        %1714 = vmatprep.mubr.f32.mxu0 0.0
        %1715 = vmatmul.mubr.f32.gmra.mrb[0].mxu0 %v1506
        %v1716 = vpop.f32.mrb[0].mxu0
        %v1717 = vadd.f32 0.0, %v1716
        %v1718 = vpop.f32.mrb[0].mxu0
        %1719 = vmatprep.mubr.f32.mxu0 0.0
        %1720 = vmatmul.mubr.f32.gmra.mrb[0].mxu0 %v1509
        %v1721 = vpop.f32.mrb[0].mxu0
        %v1722 = vadd.f32 0.0, %v1721
        %v1723 = vpop.f32.mrb[0].mxu0
        %1724 = vmatprep.mubr.f32.mxu0 0.0
        %1725 = vmatmul.mubr.f32.gmra.mrb[0].mxu0 %v1512
        %v1726 = vpop.f32.mrb[0].mxu0
        %v1727 = vadd.f32 0.0, %v1726
        %v1728 = vpop.f32.mrb[0].mxu0
        %1729 = vmatprep.mubr.f32.mxu0 0.0
        %1730 = vmatmul.mubr.f32.gmra.mrb[0].mxu0 %v1515
        %v1731 = vpop.f32.mrb[0].mxu0
        %v1732 = vadd.f32 0.0, %v1731
        %v1733 = vpop.f32.mrb[0].mxu0
        %1734 = vmatprep.mubr.f32.mxu0 0.0
        %1735 = vmatmul.mubr.f32.gmra.mrb[0].mxu0 %v1518
        %v1736 = vpop.f32.mrb[0].mxu0
        %v1737 = vadd.f32 0.0, %v1736
        %v1738 = vpop.f32.mrb[0].mxu0
        %1739 = vmatprep.mubr.f32.mxu0 0.0
        %1740 = vmatmul.mubr.f32.gmra.mrb[0].mxu0 %v1521
        %v1741 = vpop.f32.mrb[0].mxu0
        %v1742 = vadd.f32 0.0, %v1741
        %v1743 = vpop.f32.mrb[0].mxu0
        %1744 = vmatprep.mubr.f32.mxu0 0.0
        %1745 = vmatmul.mubr.f32.gmra.mrb[0].mxu0 %v1524
        %v1746 = vpop.f32.mrb[0].mxu0
        %v1747 = vadd.f32 0.0, %v1746
        %v1748 = vpop.f32.mrb[0].mxu0
        %1749 = vmatprep.mubr.f32.mxu0 0.0
        %1750 = vmatmul.mubr.f32.gmra.mrb[0].mxu0 %v1527
        %v1751 = vpop.f32.mrb[0].mxu0
        %v1752 = vadd.f32 0.0, %v1751
        %v1753 = vpop.f32.mrb[0].mxu0
        %1754 = vmatprep.mubr.f32.mxu0 0.0
        %1755 = vmatmul.mubr.f32.gmra.mrb[0].mxu0 %v1530
        %v1756 = vpop.f32.mrb[0].mxu0
        %v1757 = vadd.f32 0.0, %v1756
        %v1758 = vpop.f32.mrb[0].mxu0
        %1759 = vdwg.mxu0
        %v1760 = vadd.f32 %v1369, %v1602
        %v1761 = vadd.f32 %v1370, %v1607
        %v1762 = vadd.f32 %v1371, %v1612
        %v1763 = vadd.f32 %v1372, %v1617
        %v1764 = vadd.f32 %v1373, %v1622
        %v1765 = vadd.f32 %v1374, %v1627
        %v1766 = vadd.f32 %v1375, %v1632
        %v1767 = vadd.f32 %v1376, %v1637
        %v1768 = vadd.f32 %v1377, %v1642
        %v1769 = vadd.f32 %v1378, %v1647
        %v1770 = vadd.f32 %v1379, %v1652
        %v1771 = vadd.f32 %v1380, %v1657
        %v1772 = vadd.f32 %v1381, %v1662
        %v1773 = vadd.f32 %v1382, %v1667
        %v1774 = vadd.f32 %v1383, %v1672
        %v1775 = vadd.f32 %v1384, %v1677
        %v1776 = vadd.f32 %v1385, %v1682
        %v1777 = vadd.f32 %v1386, %v1687
        %v1778 = vadd.f32 %v1387, %v1692
        %v1779 = vadd.f32 %v1388, %v1697
        %v1780 = vadd.f32 %v1389, %v1702
        %v1781 = vadd.f32 %v1390, %v1707
        %v1782 = vadd.f32 %v1391, %v1712
        %v1783 = vadd.f32 %v1392, %v1717
        %v1784 = vadd.f32 %v1393, %v1722
        %v1785 = vadd.f32 %v1394, %v1727
        %v1786 = vadd.f32 %v1395, %v1732
        %v1787 = vadd.f32 %v1396, %v1737
        %v1788 = vadd.f32 %v1397, %v1742
        %v1789 = vadd.f32 %v1398, %v1747
        %v1790 = vadd.f32 %v1399, %v1752
        %v1791 = vadd.f32 %v1400, %v1757
        %v1792 = vld [vmem:[%s1401 + $0x1] sm:$0xff]
        %v1793 = vld [vmem:[%s1401 + $0x9] sm:$0xff]
        %v1794 = vld [vmem:[%s1401 + $0x19] sm:$0xff]
        %v1795 = vld [vmem:[%s1401 + $0x21] sm:$0xff]
        %v1796 = vld [vmem:[%s1401 + $0x31] sm:$0xff]
        %v1797 = vld [vmem:[%s1401 + $0x39] sm:$0xff]
        %v1798 = vld [vmem:[%s1401 + $0x49] sm:$0xff]
        %v1799 = vld [vmem:[%s1401 + $0x51] sm:$0xff]
        %v1800 = vld [vmem:[%s1401 + $0x61] sm:$0xff]
        %v1801 = vld [vmem:[%s1401 + $0x69] sm:$0xff]
        %v1802 = vld [vmem:[%s1401 + $0x79] sm:$0xff]
        %v1803 = vld [vmem:[%s1401 + $0x81] sm:$0xff]
        %v1804 = vld [vmem:[%s1401 + $0x91] sm:$0xff]
        %v1805 = vld [vmem:[%s1401 + $0x99] sm:$0xff]
        %v1806 = vld [vmem:[%s1401 + $0xa9] sm:$0xff]
        %v1807 = vld [vmem:[%s1401 + $0xb1] sm:$0xff]
        %v1808 = vld [vmem:[%s1401 + $0xc1] sm:$0xff]
        %v1809 = vld [vmem:[%s1401 + $0xc9] sm:$0xff]
        %v1810 = vld [vmem:[%s1401 + $0xd9] sm:$0xff]
        %v1811 = vld [vmem:[%s1401 + $0xe1] sm:$0xff]
        %v1812 = vld [vmem:[%s1401 + $0xf1] sm:$0xff]
        %v1813 = vld [vmem:[%s1401 + $0xf9] sm:$0xff]
        %v1814 = vld [vmem:[%s1401 + $0x109] sm:$0xff]
        %v1815 = vld [vmem:[%s1401 + $0x111] sm:$0xff]
        %v1816 = vld [vmem:[%s1401 + $0x121] sm:$0xff]
        %v1817 = vld [vmem:[%s1401 + $0x129] sm:$0xff]
        %v1818 = vld [vmem:[%s1401 + $0x139] sm:$0xff]
        %v1819 = vld [vmem:[%s1401 + $0x141] sm:$0xff]
        %v1820 = vld [vmem:[%s1401 + $0x151] sm:$0xff]
        %v1821 = vld [vmem:[%s1401 + $0x159] sm:$0xff]
        %v1822 = vld [vmem:[%s1401 + $0x169] sm:$0xff]
        %v1823 = vld [vmem:[%s1401 + $0x171] sm:$0xff]
        %s1824 = scalar_lea.vmem %s1, 16
        %v1825 = vld [vmem:[%s1824] sm:$0xf]
        %v1827 = vsel %vm263, %v1792, 0
        %v1830 = vsel %vm263, %v1793, 0
        %v1833 = vsel %vm263, %v1794, 0
        %v1836 = vsel %vm263, %v1795, 0
        %v1839 = vsel %vm263, %v1796, 0
        %v1842 = vsel %vm263, %v1797, 0
        %v1845 = vsel %vm263, %v1798, 0
        %v1848 = vsel %vm263, %v1799, 0
        %v1851 = vsel %vm263, %v1800, 0
        %v1854 = vsel %vm263, %v1801, 0
        %v1857 = vsel %vm263, %v1802, 0
        %v1860 = vsel %vm263, %v1803, 0
        %v1863 = vsel %vm263, %v1804, 0
        %v1866 = vsel %vm263, %v1805, 0
        %v1869 = vsel %vm263, %v1806, 0
        %v1872 = vsel %vm263, %v1807, 0
        %v1875 = vsel %vm263, %v1808, 0
        %v1878 = vsel %vm263, %v1809, 0
        %v1881 = vsel %vm263, %v1810, 0
        %v1884 = vsel %vm263, %v1811, 0
        %v1887 = vsel %vm263, %v1812, 0
        %v1890 = vsel %vm263, %v1813, 0
        %v1893 = vsel %vm263, %v1814, 0
        %v1896 = vsel %vm263, %v1815, 0
        %v1899 = vsel %vm263, %v1816, 0
        %v1902 = vsel %vm263, %v1817, 0
        %v1905 = vsel %vm263, %v1818, 0
        %v1908 = vsel %vm263, %v1819, 0
        %v1911 = vsel %vm263, %v1820, 0
        %v1914 = vsel %vm263, %v1821, 0
        %v1917 = vsel %vm263, %v1822, 0
        %v1920 = vsel %vm263, %v1823, 0
        %v1923 = vsel %vm360, %v1825, 0
        %1925 = vmatprep.subr.mxu0 0.0
        %1926 = vmatpush1.msra.mxu0 %v1923
        %1927 = vmatprep.subr.mxu0 0.0
        %1928 = vmatpush1.msra.mxu0 0.0
        %1929 = vmatprep.subr.mxu0 0.0
        %1930 = vmatpush1.msra.mxu0 0.0
        %1931 = vmatprep.subr.mxu0 0.0
        %1932 = vmatpush1.msra.mxu0 0.0
        %1933 = vmatprep.subr.mxu0 0.0
        %1934 = vmatpush1.msra.mxu0 0.0
        %1935 = vmatprep.subr.mxu0 0.0
        %1936 = vmatpush1.msra.mxu0 0.0
        %1937 = vmatprep.subr.mxu0 0.0
        %1938 = vmatpush1.msra.mxu0 0.0
        %1939 = vmatprep.subr.mxu0 0.0
        %1940 = vmatpush1.msra.mxu0 0.0
        %1941 = vmatprep.subr.mxu0 0.0
        %1942 = vmatpush1.msra.mxu0 0.0
        %1943 = vmatprep.subr.mxu0 0.0
        %1944 = vmatpush1.msra.mxu0 0.0
        %1945 = vmatprep.subr.mxu0 0.0
        %1946 = vmatpush1.msra.mxu0 0.0
        %1947 = vmatprep.subr.mxu0 0.0
        %1948 = vmatpush1.msra.mxu0 0.0
        %1949 = vmatprep.subr.mxu0 0.0
        %1950 = vmatpush1.msra.mxu0 0.0
        %1951 = vmatprep.subr.mxu0 0.0
        %1952 = vmatpush1.msra.mxu0 0.0
        %1953 = vmatprep.subr.mxu0 0.0
        %1954 = vmatpush1.msra.mxu0 0.0
        %1955 = vmatprep.subr.mxu0 0.0
        %1956 = vmatpush1.msra.mxu0 0.0
        %1957 = vmatprep.subr.mxu0 0.0
        %1958 = vmatpush1.msra.mxu0 0.0
        %1959 = vmatprep.subr.mxu0 0.0
        %1960 = vmatpush1.msra.mxu0 0.0
        %1961 = vmatprep.subr.mxu0 0.0
        %1962 = vmatpush1.msra.mxu0 0.0
        %1963 = vmatprep.subr.mxu0 0.0
        %1964 = vmatpush1.msra.mxu0 0.0
        %1965 = vmatprep.subr.mxu0 0.0
        %1966 = vmatpush1.msra.mxu0 0.0
        %1967 = vmatprep.subr.mxu0 0.0
        %1968 = vmatpush1.msra.mxu0 0.0
        %1969 = vmatprep.subr.mxu0 0.0
        %1970 = vmatpush1.msra.mxu0 0.0
        %1971 = vmatprep.subr.mxu0 0.0
        %1972 = vmatpush1.msra.mxu0 0.0
        %1973 = vmatprep.subr.mxu0 0.0
        %1974 = vmatpush1.msra.mxu0 0.0
        %1975 = vmatprep.subr.mxu0 0.0
        %1976 = vmatpush1.msra.mxu0 0.0
        %1977 = vmatprep.subr.mxu0 0.0
        %1978 = vmatpush1.msra.mxu0 0.0
        %1979 = vmatprep.subr.mxu0 0.0
        %1980 = vmatpush1.msra.mxu0 0.0
        %1981 = vmatprep.subr.mxu0 0.0
        %1982 = vmatpush1.msra.mxu0 0.0
        %1983 = vmatprep.subr.mxu0 0.0
        %1984 = vmatpush1.msra.mxu0 0.0
        %1985 = vmatprep.subr.mxu0 0.0
        %1986 = vmatpush1.msra.mxu0 0.0
        %1987 = vmatprep.subr.mxu0 0.0
        %1988 = vmatpush1.msra.mxu0 0.0
        %1989 = vmatprep.mubr.f32.mxu0 0.0
        %1990 = vmatmul.mubr.f32.gmra.mrb[0].mxu0 %v1827
        %v1991 = vpop.f32.mrb[0].mxu0
        %v1992 = vadd.f32 0.0, %v1991
        %v1993 = vpop.f32.mrb[0].mxu0
        %1994 = vmatprep.mubr.f32.mxu0 0.0
        %1995 = vmatmul.mubr.f32.gmra.mrb[0].mxu0 %v1830
        %v1996 = vpop.f32.mrb[0].mxu0
        %v1997 = vadd.f32 0.0, %v1996
        %v1998 = vpop.f32.mrb[0].mxu0
        %1999 = vmatprep.mubr.f32.mxu0 0.0
        %2000 = vmatmul.mubr.f32.gmra.mrb[0].mxu0 %v1833
        %v2001 = vpop.f32.mrb[0].mxu0
        %v2002 = vadd.f32 0.0, %v2001
        %v2003 = vpop.f32.mrb[0].mxu0
        %2004 = vmatprep.mubr.f32.mxu0 0.0
        %2005 = vmatmul.mubr.f32.gmra.mrb[0].mxu0 %v1836
        %v2006 = vpop.f32.mrb[0].mxu0
        %v2007 = vadd.f32 0.0, %v2006
        %v2008 = vpop.f32.mrb[0].mxu0
        %2009 = vmatprep.mubr.f32.mxu0 0.0
        %2010 = vmatmul.mubr.f32.gmra.mrb[0].mxu0 %v1839
        %v2011 = vpop.f32.mrb[0].mxu0
        %v2012 = vadd.f32 0.0, %v2011
        %v2013 = vpop.f32.mrb[0].mxu0
        %2014 = vmatprep.mubr.f32.mxu0 0.0
        %2015 = vmatmul.mubr.f32.gmra.mrb[0].mxu0 %v1842
        %v2016 = vpop.f32.mrb[0].mxu0
        %v2017 = vadd.f32 0.0, %v2016
        %v2018 = vpop.f32.mrb[0].mxu0
        %2019 = vmatprep.mubr.f32.mxu0 0.0
        %2020 = vmatmul.mubr.f32.gmra.mrb[0].mxu0 %v1845
        %v2021 = vpop.f32.mrb[0].mxu0
        %v2022 = vadd.f32 0.0, %v2021
        %v2023 = vpop.f32.mrb[0].mxu0
        %2024 = vmatprep.mubr.f32.mxu0 0.0
        %2025 = vmatmul.mubr.f32.gmra.mrb[0].mxu0 %v1848
        %v2026 = vpop.f32.mrb[0].mxu0
        %v2027 = vadd.f32 0.0, %v2026
        %v2028 = vpop.f32.mrb[0].mxu0
        %2029 = vmatprep.mubr.f32.mxu0 0.0
        %2030 = vmatmul.mubr.f32.gmra.mrb[0].mxu0 %v1851
        %v2031 = vpop.f32.mrb[0].mxu0
        %v2032 = vadd.f32 0.0, %v2031
        %v2033 = vpop.f32.mrb[0].mxu0
        %2034 = vmatprep.mubr.f32.mxu0 0.0
        %2035 = vmatmul.mubr.f32.gmra.mrb[0].mxu0 %v1854
        %v2036 = vpop.f32.mrb[0].mxu0
        %v2037 = vadd.f32 0.0, %v2036
        %v2038 = vpop.f32.mrb[0].mxu0
        %2039 = vmatprep.mubr.f32.mxu0 0.0
        %2040 = vmatmul.mubr.f32.gmra.mrb[0].mxu0 %v1857
        %v2041 = vpop.f32.mrb[0].mxu0
        %v2042 = vadd.f32 0.0, %v2041
        %v2043 = vpop.f32.mrb[0].mxu0
        %2044 = vmatprep.mubr.f32.mxu0 0.0
        %2045 = vmatmul.mubr.f32.gmra.mrb[0].mxu0 %v1860
        %v2046 = vpop.f32.mrb[0].mxu0
        %v2047 = vadd.f32 0.0, %v2046
        %v2048 = vpop.f32.mrb[0].mxu0
        %2049 = vmatprep.mubr.f32.mxu0 0.0
        %2050 = vmatmul.mubr.f32.gmra.mrb[0].mxu0 %v1863
        %v2051 = vpop.f32.mrb[0].mxu0
        %v2052 = vadd.f32 0.0, %v2051
        %v2053 = vpop.f32.mrb[0].mxu0
        %2054 = vmatprep.mubr.f32.mxu0 0.0
        %2055 = vmatmul.mubr.f32.gmra.mrb[0].mxu0 %v1866
        %v2056 = vpop.f32.mrb[0].mxu0
        %v2057 = vadd.f32 0.0, %v2056
        %v2058 = vpop.f32.mrb[0].mxu0
        %2059 = vmatprep.mubr.f32.mxu0 0.0
        %2060 = vmatmul.mubr.f32.gmra.mrb[0].mxu0 %v1869
        %v2061 = vpop.f32.mrb[0].mxu0
        %v2062 = vadd.f32 0.0, %v2061
        %v2063 = vpop.f32.mrb[0].mxu0
        %2064 = vmatprep.mubr.f32.mxu0 0.0
        %2065 = vmatmul.mubr.f32.gmra.mrb[0].mxu0 %v1872
        %v2066 = vpop.f32.mrb[0].mxu0
        %v2067 = vadd.f32 0.0, %v2066
        %v2068 = vpop.f32.mrb[0].mxu0
        %2069 = vmatprep.mubr.f32.mxu0 0.0
        %2070 = vmatmul.mubr.f32.gmra.mrb[0].mxu0 %v1875
        %v2071 = vpop.f32.mrb[0].mxu0
        %v2072 = vadd.f32 0.0, %v2071
        %v2073 = vpop.f32.mrb[0].mxu0
        %2074 = vmatprep.mubr.f32.mxu0 0.0
        %2075 = vmatmul.mubr.f32.gmra.mrb[0].mxu0 %v1878
        %v2076 = vpop.f32.mrb[0].mxu0
        %v2077 = vadd.f32 0.0, %v2076
        %v2078 = vpop.f32.mrb[0].mxu0
        %2079 = vmatprep.mubr.f32.mxu0 0.0
        %2080 = vmatmul.mubr.f32.gmra.mrb[0].mxu0 %v1881
        %v2081 = vpop.f32.mrb[0].mxu0
        %v2082 = vadd.f32 0.0, %v2081
        %v2083 = vpop.f32.mrb[0].mxu0
        %2084 = vmatprep.mubr.f32.mxu0 0.0
        %2085 = vmatmul.mubr.f32.gmra.mrb[0].mxu0 %v1884
        %v2086 = vpop.f32.mrb[0].mxu0
        %v2087 = vadd.f32 0.0, %v2086
        %v2088 = vpop.f32.mrb[0].mxu0
        %2089 = vmatprep.mubr.f32.mxu0 0.0
        %2090 = vmatmul.mubr.f32.gmra.mrb[0].mxu0 %v1887
        %v2091 = vpop.f32.mrb[0].mxu0
        %v2092 = vadd.f32 0.0, %v2091
        %v2093 = vpop.f32.mrb[0].mxu0
        %2094 = vmatprep.mubr.f32.mxu0 0.0
        %2095 = vmatmul.mubr.f32.gmra.mrb[0].mxu0 %v1890
        %v2096 = vpop.f32.mrb[0].mxu0
        %v2097 = vadd.f32 0.0, %v2096
        %v2098 = vpop.f32.mrb[0].mxu0
        %2099 = vmatprep.mubr.f32.mxu0 0.0
        %2100 = vmatmul.mubr.f32.gmra.mrb[0].mxu0 %v1893
        %v2101 = vpop.f32.mrb[0].mxu0
        %v2102 = vadd.f32 0.0, %v2101
        %v2103 = vpop.f32.mrb[0].mxu0
        %2104 = vmatprep.mubr.f32.mxu0 0.0
        %2105 = vmatmul.mubr.f32.gmra.mrb[0].mxu0 %v1896
        %v2106 = vpop.f32.mrb[0].mxu0
        %v2107 = vadd.f32 0.0, %v2106
        %v2108 = vpop.f32.mrb[0].mxu0
        %2109 = vmatprep.mubr.f32.mxu0 0.0
        %2110 = vmatmul.mubr.f32.gmra.mrb[0].mxu0 %v1899
        %v2111 = vpop.f32.mrb[0].mxu0
        %v2112 = vadd.f32 0.0, %v2111
        %v2113 = vpop.f32.mrb[0].mxu0
        %2114 = vmatprep.mubr.f32.mxu0 0.0
        %2115 = vmatmul.mubr.f32.gmra.mrb[0].mxu0 %v1902
        %v2116 = vpop.f32.mrb[0].mxu0
        %v2117 = vadd.f32 0.0, %v2116
        %v2118 = vpop.f32.mrb[0].mxu0
        %2119 = vmatprep.mubr.f32.mxu0 0.0
        %2120 = vmatmul.mubr.f32.gmra.mrb[0].mxu0 %v1905
        %v2121 = vpop.f32.mrb[0].mxu0
        %v2122 = vadd.f32 0.0, %v2121
        %v2123 = vpop.f32.mrb[0].mxu0
        %2124 = vmatprep.mubr.f32.mxu0 0.0
        %2125 = vmatmul.mubr.f32.gmra.mrb[0].mxu0 %v1908
        %v2126 = vpop.f32.mrb[0].mxu0
        %v2127 = vadd.f32 0.0, %v2126
        %v2128 = vpop.f32.mrb[0].mxu0
        %2129 = vmatprep.mubr.f32.mxu0 0.0
        %2130 = vmatmul.mubr.f32.gmra.mrb[0].mxu0 %v1911
        %v2131 = vpop.f32.mrb[0].mxu0
        %v2132 = vadd.f32 0.0, %v2131
        %v2133 = vpop.f32.mrb[0].mxu0
        %2134 = vmatprep.mubr.f32.mxu0 0.0
        %2135 = vmatmul.mubr.f32.gmra.mrb[0].mxu0 %v1914
        %v2136 = vpop.f32.mrb[0].mxu0
        %v2137 = vadd.f32 0.0, %v2136
        %v2138 = vpop.f32.mrb[0].mxu0
        %2139 = vmatprep.mubr.f32.mxu0 0.0
        %2140 = vmatmul.mubr.f32.gmra.mrb[0].mxu0 %v1917
        %v2141 = vpop.f32.mrb[0].mxu0
        %v2142 = vadd.f32 0.0, %v2141
        %v2143 = vpop.f32.mrb[0].mxu0
        %2144 = vmatprep.mubr.f32.mxu0 0.0
        %2145 = vmatmul.mubr.f32.gmra.mrb[0].mxu0 %v1920
        %v2146 = vpop.f32.mrb[0].mxu0
        %v2147 = vadd.f32 0.0, %v2146
        %v2148 = vpop.f32.mrb[0].mxu0
        %2149 = vdwg.mxu0
        %v2150 = vadd.f32 %v1760, %v1992
        %v2151 = vadd.f32 %v1761, %v1997
        %v2152 = vadd.f32 %v1762, %v2002
        %v2153 = vadd.f32 %v1763, %v2007
        %v2154 = vadd.f32 %v1764, %v2012
        %v2155 = vadd.f32 %v1765, %v2017
        %v2156 = vadd.f32 %v1766, %v2022
        %v2157 = vadd.f32 %v1767, %v2027
        %v2158 = vadd.f32 %v1768, %v2032
        %v2159 = vadd.f32 %v1769, %v2037
        %v2160 = vadd.f32 %v1770, %v2042
        %v2161 = vadd.f32 %v1771, %v2047
        %v2162 = vadd.f32 %v1772, %v2052
        %v2163 = vadd.f32 %v1773, %v2057
        %v2164 = vadd.f32 %v1774, %v2062
        %v2165 = vadd.f32 %v1775, %v2067
        %v2166 = vadd.f32 %v1776, %v2072
        %v2167 = vadd.f32 %v1777, %v2077
        %v2168 = vadd.f32 %v1778, %v2082
        %v2169 = vadd.f32 %v1779, %v2087
        %v2170 = vadd.f32 %v1780, %v2092
        %v2171 = vadd.f32 %v1781, %v2097
        %v2172 = vadd.f32 %v1782, %v2102
        %v2173 = vadd.f32 %v1783, %v2107
        %v2174 = vadd.f32 %v1784, %v2112
        %v2175 = vadd.f32 %v1785, %v2117
        %v2176 = vadd.f32 %v1786, %v2122
        %v2177 = vadd.f32 %v1787, %v2127
        %v2178 = vadd.f32 %v1788, %v2132
        %v2179 = vadd.f32 %v1789, %v2137
        %v2180 = vadd.f32 %v1790, %v2142
        %v2181 = vadd.f32 %v1791, %v2147
        %v2182 = vld [vmem:[%s1401 + $0x2] sm:$0xff]
        %v2183 = vld [vmem:[%s1401 + $0xa] sm:$0xff]
        %v2184 = vld [vmem:[%s1401 + $0x1a] sm:$0xff]
        %v2185 = vld [vmem:[%s1401 + $0x22] sm:$0xff]
        %v2186 = vld [vmem:[%s1401 + $0x32] sm:$0xff]
        %v2187 = vld [vmem:[%s1401 + $0x3a] sm:$0xff]
        %v2188 = vld [vmem:[%s1401 + $0x4a] sm:$0xff]
        %v2189 = vld [vmem:[%s1401 + $0x52] sm:$0xff]
        %v2190 = vld [vmem:[%s1401 + $0x62] sm:$0xff]
        %v2191 = vld [vmem:[%s1401 + $0x6a] sm:$0xff]
        %v2192 = vld [vmem:[%s1401 + $0x7a] sm:$0xff]
        %v2193 = vld [vmem:[%s1401 + $0x82] sm:$0xff]
        %v2194 = vld [vmem:[%s1401 + $0x92] sm:$0xff]
        %v2195 = vld [vmem:[%s1401 + $0x9a] sm:$0xff]
        %v2196 = vld [vmem:[%s1401 + $0xaa] sm:$0xff]
        %v2197 = vld [vmem:[%s1401 + $0xb2] sm:$0xff]
        %v2198 = vld [vmem:[%s1401 + $0xc2] sm:$0xff]
        %v2199 = vld [vmem:[%s1401 + $0xca] sm:$0xff]
        %v2200 = vld [vmem:[%s1401 + $0xda] sm:$0xff]
        %v2201 = vld [vmem:[%s1401 + $0xe2] sm:$0xff]
        %v2202 = vld [vmem:[%s1401 + $0xf2] sm:$0xff]
        %v2203 = vld [vmem:[%s1401 + $0xfa] sm:$0xff]
        %v2204 = vld [vmem:[%s1401 + $0x10a] sm:$0xff]
        %v2205 = vld [vmem:[%s1401 + $0x112] sm:$0xff]
        %v2206 = vld [vmem:[%s1401 + $0x122] sm:$0xff]
        %v2207 = vld [vmem:[%s1401 + $0x12a] sm:$0xff]
        %v2208 = vld [vmem:[%s1401 + $0x13a] sm:$0xff]
        %v2209 = vld [vmem:[%s1401 + $0x142] sm:$0xff]
        %v2210 = vld [vmem:[%s1401 + $0x152] sm:$0xff]
        %v2211 = vld [vmem:[%s1401 + $0x15a] sm:$0xff]
        %v2212 = vld [vmem:[%s1401 + $0x16a] sm:$0xff]
        %v2213 = vld [vmem:[%s1401 + $0x172] sm:$0xff]
        %s2214 = scalar_lea.vmem %s1, 20
        %v2215 = vld [vmem:[%s2214] sm:$0xf]
        %v2217 = vsel %vm263, %v2182, 0
        %v2220 = vsel %vm263, %v2183, 0
        %v2223 = vsel %vm263, %v2184, 0
        %v2226 = vsel %vm263, %v2185, 0
        %v2229 = vsel %vm263, %v2186, 0
        %v2232 = vsel %vm263, %v2187, 0
        %v2235 = vsel %vm263, %v2188, 0
        %v2238 = vsel %vm263, %v2189, 0
        %v2241 = vsel %vm263, %v2190, 0
        %v2244 = vsel %vm263, %v2191, 0
        %v2247 = vsel %vm263, %v2192, 0
        %v2250 = vsel %vm263, %v2193, 0
        %v2253 = vsel %vm263, %v2194, 0
        %v2256 = vsel %vm263, %v2195, 0
        %v2259 = vsel %vm263, %v2196, 0
        %v2262 = vsel %vm263, %v2197, 0
        %v2265 = vsel %vm263, %v2198, 0
        %v2268 = vsel %vm263, %v2199, 0
        %v2271 = vsel %vm263, %v2200, 0
        %v2274 = vsel %vm263, %v2201, 0
        %v2277 = vsel %vm263, %v2202, 0
        %v2280 = vsel %vm263, %v2203, 0
        %v2283 = vsel %vm263, %v2204, 0
        %v2286 = vsel %vm263, %v2205, 0
        %v2289 = vsel %vm263, %v2206, 0
        %v2292 = vsel %vm263, %v2207, 0
        %v2295 = vsel %vm263, %v2208, 0
        %v2298 = vsel %vm263, %v2209, 0
        %v2301 = vsel %vm263, %v2210, 0
        %v2304 = vsel %vm263, %v2211, 0
        %v2307 = vsel %vm263, %v2212, 0
        %v2310 = vsel %vm263, %v2213, 0
        %v2313 = vsel %vm360, %v2215, 0
        %2315 = vmatprep.subr.mxu0 0.0
        %2316 = vmatpush1.msra.mxu0 %v2313
        %2317 = vmatprep.subr.mxu0 0.0
        %2318 = vmatpush1.msra.mxu0 0.0
        %2319 = vmatprep.subr.mxu0 0.0
        %2320 = vmatpush1.msra.mxu0 0.0
        %2321 = vmatprep.subr.mxu0 0.0
        %2322 = vmatpush1.msra.mxu0 0.0
        %2323 = vmatprep.subr.mxu0 0.0
        %2324 = vmatpush1.msra.mxu0 0.0
        %2325 = vmatprep.subr.mxu0 0.0
        %2326 = vmatpush1.msra.mxu0 0.0
        %2327 = vmatprep.subr.mxu0 0.0
        %2328 = vmatpush1.msra.mxu0 0.0
        %2329 = vmatprep.subr.mxu0 0.0
        %2330 = vmatpush1.msra.mxu0 0.0
        %2331 = vmatprep.subr.mxu0 0.0
        %2332 = vmatpush1.msra.mxu0 0.0
        %2333 = vmatprep.subr.mxu0 0.0
        %2334 = vmatpush1.msra.mxu0 0.0
        %2335 = vmatprep.subr.mxu0 0.0
        %2336 = vmatpush1.msra.mxu0 0.0
        %2337 = vmatprep.subr.mxu0 0.0
        %2338 = vmatpush1.msra.mxu0 0.0
        %2339 = vmatprep.subr.mxu0 0.0
        %2340 = vmatpush1.msra.mxu0 0.0
        %2341 = vmatprep.subr.mxu0 0.0
        %2342 = vmatpush1.msra.mxu0 0.0
        %2343 = vmatprep.subr.mxu0 0.0
        %2344 = vmatpush1.msra.mxu0 0.0
        %2345 = vmatprep.subr.mxu0 0.0
        %2346 = vmatpush1.msra.mxu0 0.0
        %2347 = vmatprep.subr.mxu0 0.0
        %2348 = vmatpush1.msra.mxu0 0.0
        %2349 = vmatprep.subr.mxu0 0.0
        %2350 = vmatpush1.msra.mxu0 0.0
        %2351 = vmatprep.subr.mxu0 0.0
        %2352 = vmatpush1.msra.mxu0 0.0
        %2353 = vmatprep.subr.mxu0 0.0
        %2354 = vmatpush1.msra.mxu0 0.0
        %2355 = vmatprep.subr.mxu0 0.0
        %2356 = vmatpush1.msra.mxu0 0.0
        %2357 = vmatprep.subr.mxu0 0.0
        %2358 = vmatpush1.msra.mxu0 0.0
        %2359 = vmatprep.subr.mxu0 0.0
        %2360 = vmatpush1.msra.mxu0 0.0
        %2361 = vmatprep.subr.mxu0 0.0
        %2362 = vmatpush1.msra.mxu0 0.0
        %2363 = vmatprep.subr.mxu0 0.0
        %2364 = vmatpush1.msra.mxu0 0.0
        %2365 = vmatprep.subr.mxu0 0.0
        %2366 = vmatpush1.msra.mxu0 0.0
        %2367 = vmatprep.subr.mxu0 0.0
        %2368 = vmatpush1.msra.mxu0 0.0
        %2369 = vmatprep.subr.mxu0 0.0
        %2370 = vmatpush1.msra.mxu0 0.0
        %2371 = vmatprep.subr.mxu0 0.0
        %2372 = vmatpush1.msra.mxu0 0.0
        %2373 = vmatprep.subr.mxu0 0.0
        %2374 = vmatpush1.msra.mxu0 0.0
        %2375 = vmatprep.subr.mxu0 0.0
        %2376 = vmatpush1.msra.mxu0 0.0
        %2377 = vmatprep.subr.mxu0 0.0
        %2378 = vmatpush1.msra.mxu0 0.0
        %2379 = vmatprep.mubr.f32.mxu0 0.0
        %2380 = vmatmul.mubr.f32.gmra.mrb[0].mxu0 %v2217
        %v2381 = vpop.f32.mrb[0].mxu0
        %v2382 = vadd.f32 0.0, %v2381
        %v2383 = vpop.f32.mrb[0].mxu0
        %2384 = vmatprep.mubr.f32.mxu0 0.0
        %2385 = vmatmul.mubr.f32.gmra.mrb[0].mxu0 %v2220
        %v2386 = vpop.f32.mrb[0].mxu0
        %v2387 = vadd.f32 0.0, %v2386
        %v2388 = vpop.f32.mrb[0].mxu0
        %2389 = vmatprep.mubr.f32.mxu0 0.0
        %2390 = vmatmul.mubr.f32.gmra.mrb[0].mxu0 %v2223
        %v2391 = vpop.f32.mrb[0].mxu0
        %v2392 = vadd.f32 0.0, %v2391
        %v2393 = vpop.f32.mrb[0].mxu0
        %2394 = vmatprep.mubr.f32.mxu0 0.0
        %2395 = vmatmul.mubr.f32.gmra.mrb[0].mxu0 %v2226
        %v2396 = vpop.f32.mrb[0].mxu0
        %v2397 = vadd.f32 0.0, %v2396
        %v2398 = vpop.f32.mrb[0].mxu0
        %2399 = vmatprep.mubr.f32.mxu0 0.0
        %2400 = vmatmul.mubr.f32.gmra.mrb[0].mxu0 %v2229
        %v2401 = vpop.f32.mrb[0].mxu0
        %v2402 = vadd.f32 0.0, %v2401
        %v2403 = vpop.f32.mrb[0].mxu0
        %2404 = vmatprep.mubr.f32.mxu0 0.0
        %2405 = vmatmul.mubr.f32.gmra.mrb[0].mxu0 %v2232
        %v2406 = vpop.f32.mrb[0].mxu0
        %v2407 = vadd.f32 0.0, %v2406
        %v2408 = vpop.f32.mrb[0].mxu0
        %2409 = vmatprep.mubr.f32.mxu0 0.0
        %2410 = vmatmul.mubr.f32.gmra.mrb[0].mxu0 %v2235
        %v2411 = vpop.f32.mrb[0].mxu0
        %v2412 = vadd.f32 0.0, %v2411
        %v2413 = vpop.f32.mrb[0].mxu0
        %2414 = vmatprep.mubr.f32.mxu0 0.0
        %2415 = vmatmul.mubr.f32.gmra.mrb[0].mxu0 %v2238
        %v2416 = vpop.f32.mrb[0].mxu0
        %v2417 = vadd.f32 0.0, %v2416
        %v2418 = vpop.f32.mrb[0].mxu0
        %2419 = vmatprep.mubr.f32.mxu0 0.0
        %2420 = vmatmul.mubr.f32.gmra.mrb[0].mxu0 %v2241
        %v2421 = vpop.f32.mrb[0].mxu0
        %v2422 = vadd.f32 0.0, %v2421
        %v2423 = vpop.f32.mrb[0].mxu0
        %2424 = vmatprep.mubr.f32.mxu0 0.0
        %2425 = vmatmul.mubr.f32.gmra.mrb[0].mxu0 %v2244
        %v2426 = vpop.f32.mrb[0].mxu0
        %v2427 = vadd.f32 0.0, %v2426
        %v2428 = vpop.f32.mrb[0].mxu0
        %2429 = vmatprep.mubr.f32.mxu0 0.0
        %2430 = vmatmul.mubr.f32.gmra.mrb[0].mxu0 %v2247
        %v2431 = vpop.f32.mrb[0].mxu0
        %v2432 = vadd.f32 0.0, %v2431
        %v2433 = vpop.f32.mrb[0].mxu0
        %2434 = vmatprep.mubr.f32.mxu0 0.0
        %2435 = vmatmul.mubr.f32.gmra.mrb[0].mxu0 %v2250
        %v2436 = vpop.f32.mrb[0].mxu0
        %v2437 = vadd.f32 0.0, %v2436
        %v2438 = vpop.f32.mrb[0].mxu0
        %2439 = vmatprep.mubr.f32.mxu0 0.0
        %2440 = vmatmul.mubr.f32.gmra.mrb[0].mxu0 %v2253
        %v2441 = vpop.f32.mrb[0].mxu0
        %v2442 = vadd.f32 0.0, %v2441
        %v2443 = vpop.f32.mrb[0].mxu0
        %2444 = vmatprep.mubr.f32.mxu0 0.0
        %2445 = vmatmul.mubr.f32.gmra.mrb[0].mxu0 %v2256
        %v2446 = vpop.f32.mrb[0].mxu0
        %v2447 = vadd.f32 0.0, %v2446
        %v2448 = vpop.f32.mrb[0].mxu0
        %2449 = vmatprep.mubr.f32.mxu0 0.0
        %2450 = vmatmul.mubr.f32.gmra.mrb[0].mxu0 %v2259
        %v2451 = vpop.f32.mrb[0].mxu0
        %v2452 = vadd.f32 0.0, %v2451
        %v2453 = vpop.f32.mrb[0].mxu0
        %2454 = vmatprep.mubr.f32.mxu0 0.0
        %2455 = vmatmul.mubr.f32.gmra.mrb[0].mxu0 %v2262
        %v2456 = vpop.f32.mrb[0].mxu0
        %v2457 = vadd.f32 0.0, %v2456
        %v2458 = vpop.f32.mrb[0].mxu0
        %2459 = vmatprep.mubr.f32.mxu0 0.0
        %2460 = vmatmul.mubr.f32.gmra.mrb[0].mxu0 %v2265
        %v2461 = vpop.f32.mrb[0].mxu0
        %v2462 = vadd.f32 0.0, %v2461
        %v2463 = vpop.f32.mrb[0].mxu0
        %2464 = vmatprep.mubr.f32.mxu0 0.0
        %2465 = vmatmul.mubr.f32.gmra.mrb[0].mxu0 %v2268
        %v2466 = vpop.f32.mrb[0].mxu0
        %v2467 = vadd.f32 0.0, %v2466
        %v2468 = vpop.f32.mrb[0].mxu0
        %2469 = vmatprep.mubr.f32.mxu0 0.0
        %2470 = vmatmul.mubr.f32.gmra.mrb[0].mxu0 %v2271
        %v2471 = vpop.f32.mrb[0].mxu0
        %v2472 = vadd.f32 0.0, %v2471
        %v2473 = vpop.f32.mrb[0].mxu0
        %2474 = vmatprep.mubr.f32.mxu0 0.0
        %2475 = vmatmul.mubr.f32.gmra.mrb[0].mxu0 %v2274
        %v2476 = vpop.f32.mrb[0].mxu0
        %v2477 = vadd.f32 0.0, %v2476
        %v2478 = vpop.f32.mrb[0].mxu0
        %2479 = vmatprep.mubr.f32.mxu0 0.0
        %2480 = vmatmul.mubr.f32.gmra.mrb[0].mxu0 %v2277
        %v2481 = vpop.f32.mrb[0].mxu0
        %v2482 = vadd.f32 0.0, %v2481
        %v2483 = vpop.f32.mrb[0].mxu0
        %2484 = vmatprep.mubr.f32.mxu0 0.0
        %2485 = vmatmul.mubr.f32.gmra.mrb[0].mxu0 %v2280
        %v2486 = vpop.f32.mrb[0].mxu0
        %v2487 = vadd.f32 0.0, %v2486
        %v2488 = vpop.f32.mrb[0].mxu0
        %2489 = vmatprep.mubr.f32.mxu0 0.0
        %2490 = vmatmul.mubr.f32.gmra.mrb[0].mxu0 %v2283
        %v2491 = vpop.f32.mrb[0].mxu0
        %v2492 = vadd.f32 0.0, %v2491
        %v2493 = vpop.f32.mrb[0].mxu0
        %2494 = vmatprep.mubr.f32.mxu0 0.0
        %2495 = vmatmul.mubr.f32.gmra.mrb[0].mxu0 %v2286
        %v2496 = vpop.f32.mrb[0].mxu0
        %v2497 = vadd.f32 0.0, %v2496
        %v2498 = vpop.f32.mrb[0].mxu0
        %2499 = vmatprep.mubr.f32.mxu0 0.0
        %2500 = vmatmul.mubr.f32.gmra.mrb[0].mxu0 %v2289
        %v2501 = vpop.f32.mrb[0].mxu0
        %v2502 = vadd.f32 0.0, %v2501
        %v2503 = vpop.f32.mrb[0].mxu0
        %2504 = vmatprep.mubr.f32.mxu0 0.0
        %2505 = vmatmul.mubr.f32.gmra.mrb[0].mxu0 %v2292
        %v2506 = vpop.f32.mrb[0].mxu0
        %v2507 = vadd.f32 0.0, %v2506
        %v2508 = vpop.f32.mrb[0].mxu0
        %2509 = vmatprep.mubr.f32.mxu0 0.0
        %2510 = vmatmul.mubr.f32.gmra.mrb[0].mxu0 %v2295
        %v2511 = vpop.f32.mrb[0].mxu0
        %v2512 = vadd.f32 0.0, %v2511
        %v2513 = vpop.f32.mrb[0].mxu0
        %2514 = vmatprep.mubr.f32.mxu0 0.0
        %2515 = vmatmul.mubr.f32.gmra.mrb[0].mxu0 %v2298
        %v2516 = vpop.f32.mrb[0].mxu0
        %v2517 = vadd.f32 0.0, %v2516
        %v2518 = vpop.f32.mrb[0].mxu0
        %2519 = vmatprep.mubr.f32.mxu0 0.0
        %2520 = vmatmul.mubr.f32.gmra.mrb[0].mxu0 %v2301
        %v2521 = vpop.f32.mrb[0].mxu0
        %v2522 = vadd.f32 0.0, %v2521
        %v2523 = vpop.f32.mrb[0].mxu0
        %2524 = vmatprep.mubr.f32.mxu0 0.0
        %2525 = vmatmul.mubr.f32.gmra.mrb[0].mxu0 %v2304
        %v2526 = vpop.f32.mrb[0].mxu0
        %v2527 = vadd.f32 0.0, %v2526
        %v2528 = vpop.f32.mrb[0].mxu0
        %2529 = vmatprep.mubr.f32.mxu0 0.0
        %2530 = vmatmul.mubr.f32.gmra.mrb[0].mxu0 %v2307
        %v2531 = vpop.f32.mrb[0].mxu0
        %v2532 = vadd.f32 0.0, %v2531
        %v2533 = vpop.f32.mrb[0].mxu0
        %2534 = vmatprep.mubr.f32.mxu0 0.0
        %2535 = vmatmul.mubr.f32.gmra.mrb[0].mxu0 %v2310
        %v2536 = vpop.f32.mrb[0].mxu0
        %v2537 = vadd.f32 0.0, %v2536
        %v2538 = vpop.f32.mrb[0].mxu0
        %2539 = vdwg.mxu0
        %v2540 = vadd.f32 %v2150, %v2382
        %v2541 = vadd.f32 %v2151, %v2387
        %v2542 = vadd.f32 %v2152, %v2392
        %v2543 = vadd.f32 %v2153, %v2397
        %v2544 = vadd.f32 %v2154, %v2402
        %v2545 = vadd.f32 %v2155, %v2407
        %v2546 = vadd.f32 %v2156, %v2412
        %v2547 = vadd.f32 %v2157, %v2417
        %v2548 = vadd.f32 %v2158, %v2422
        %v2549 = vadd.f32 %v2159, %v2427
        %v2550 = vadd.f32 %v2160, %v2432
        %v2551 = vadd.f32 %v2161, %v2437
        %v2552 = vadd.f32 %v2162, %v2442
        %v2553 = vadd.f32 %v2163, %v2447
        %v2554 = vadd.f32 %v2164, %v2452
        %v2555 = vadd.f32 %v2165, %v2457
        %v2556 = vadd.f32 %v2166, %v2462
        %v2557 = vadd.f32 %v2167, %v2467
        %v2558 = vadd.f32 %v2168, %v2472
        %v2559 = vadd.f32 %v2169, %v2477
        %v2560 = vadd.f32 %v2170, %v2482
        %v2561 = vadd.f32 %v2171, %v2487
        %v2562 = vadd.f32 %v2172, %v2492
        %v2563 = vadd.f32 %v2173, %v2497
        %v2564 = vadd.f32 %v2174, %v2502
        %v2565 = vadd.f32 %v2175, %v2507
        %v2566 = vadd.f32 %v2176, %v2512
        %v2567 = vadd.f32 %v2177, %v2517
        %v2568 = vadd.f32 %v2178, %v2522
        %v2569 = vadd.f32 %v2179, %v2527
        %v2570 = vadd.f32 %v2180, %v2532
        %v2571 = vadd.f32 %v2181, %v2537
        %s2572 = scalar_lea.vmem %s222, 48
        %v2573 = vld [vmem:[%s2572] sm:$0xff]
        %v2574 = vld [vmem:[%s2572 + $0x8] sm:$0xff]
        %v2575 = vld [vmem:[%s2572 + $0x18] sm:$0xff]
        %v2576 = vld [vmem:[%s2572 + $0x20] sm:$0xff]
        %v2577 = vld [vmem:[%s2572 + $0x30] sm:$0xff]
        %v2578 = vld [vmem:[%s2572 + $0x38] sm:$0xff]
        %v2579 = vld [vmem:[%s2572 + $0x48] sm:$0xff]
        %v2580 = vld [vmem:[%s2572 + $0x50] sm:$0xff]
        %v2581 = vld [vmem:[%s2572 + $0x60] sm:$0xff]
        %v2582 = vld [vmem:[%s2572 + $0x68] sm:$0xff]
        %v2583 = vld [vmem:[%s2572 + $0x78] sm:$0xff]
        %v2584 = vld [vmem:[%s2572 + $0x80] sm:$0xff]
        %v2585 = vld [vmem:[%s2572 + $0x90] sm:$0xff]
        %v2586 = vld [vmem:[%s2572 + $0x98] sm:$0xff]
        %v2587 = vld [vmem:[%s2572 + $0xa8] sm:$0xff]
        %v2588 = vld [vmem:[%s2572 + $0xb0] sm:$0xff]
        %v2589 = vld [vmem:[%s2572 + $0xc0] sm:$0xff]
        %v2590 = vld [vmem:[%s2572 + $0xc8] sm:$0xff]
        %v2591 = vld [vmem:[%s2572 + $0xd8] sm:$0xff]
        %v2592 = vld [vmem:[%s2572 + $0xe0] sm:$0xff]
        %v2593 = vld [vmem:[%s2572 + $0xf0] sm:$0xff]
        %v2594 = vld [vmem:[%s2572 + $0xf8] sm:$0xff]
        %v2595 = vld [vmem:[%s2572 + $0x108] sm:$0xff]
        %v2596 = vld [vmem:[%s2572 + $0x110] sm:$0xff]
        %v2597 = vld [vmem:[%s2572 + $0x120] sm:$0xff]
        %v2598 = vld [vmem:[%s2572 + $0x128] sm:$0xff]
        %v2599 = vld [vmem:[%s2572 + $0x138] sm:$0xff]
        %v2600 = vld [vmem:[%s2572 + $0x140] sm:$0xff]
        %v2601 = vld [vmem:[%s2572 + $0x150] sm:$0xff]
        %v2602 = vld [vmem:[%s2572 + $0x158] sm:$0xff]
        %v2603 = vld [vmem:[%s2572 + $0x168] sm:$0xff]
        %v2604 = vld [vmem:[%s2572 + $0x170] sm:$0xff]
        %s2605 = scalar_lea.vmem %s1, 24
        %v2606 = vld [vmem:[%s2605] sm:$0xf]
        %v2608 = vsel %vm263, %v2573, 0
        %v2611 = vsel %vm263, %v2574, 0
        %v2614 = vsel %vm263, %v2575, 0
        %v2617 = vsel %vm263, %v2576, 0
        %v2620 = vsel %vm263, %v2577, 0
        %v2623 = vsel %vm263, %v2578, 0
        %v2626 = vsel %vm263, %v2579, 0
        %v2629 = vsel %vm263, %v2580, 0
        %v2632 = vsel %vm263, %v2581, 0
        %v2635 = vsel %vm263, %v2582, 0
        %v2638 = vsel %vm263, %v2583, 0
        %v2641 = vsel %vm263, %v2584, 0
        %v2644 = vsel %vm263, %v2585, 0
        %v2647 = vsel %vm263, %v2586, 0
        %v2650 = vsel %vm263, %v2587, 0
        %v2653 = vsel %vm263, %v2588, 0
        %v2656 = vsel %vm263, %v2589, 0
        %v2659 = vsel %vm263, %v2590, 0
        %v2662 = vsel %vm263, %v2591, 0
        %v2665 = vsel %vm263, %v2592, 0
        %v2668 = vsel %vm263, %v2593, 0
        %v2671 = vsel %vm263, %v2594, 0
        %v2674 = vsel %vm263, %v2595, 0
        %v2677 = vsel %vm263, %v2596, 0
        %v2680 = vsel %vm263, %v2597, 0
        %v2683 = vsel %vm263, %v2598, 0
        %v2686 = vsel %vm263, %v2599, 0
        %v2689 = vsel %vm263, %v2600, 0
        %v2692 = vsel %vm263, %v2601, 0
        %v2695 = vsel %vm263, %v2602, 0
        %v2698 = vsel %vm263, %v2603, 0
        %v2701 = vsel %vm263, %v2604, 0
        %v2704 = vsel %vm360, %v2606, 0
        %2706 = vmatprep.subr.mxu0 0.0
        %2707 = vmatpush1.msra.mxu0 %v2704
        %2708 = vmatprep.subr.mxu0 0.0
        %2709 = vmatpush1.msra.mxu0 0.0
        %2710 = vmatprep.subr.mxu0 0.0
        %2711 = vmatpush1.msra.mxu0 0.0
        %2712 = vmatprep.subr.mxu0 0.0
        %2713 = vmatpush1.msra.mxu0 0.0
        %2714 = vmatprep.subr.mxu0 0.0
        %2715 = vmatpush1.msra.mxu0 0.0
        %2716 = vmatprep.subr.mxu0 0.0
        %2717 = vmatpush1.msra.mxu0 0.0
        %2718 = vmatprep.subr.mxu0 0.0
        %2719 = vmatpush1.msra.mxu0 0.0
        %2720 = vmatprep.subr.mxu0 0.0
        %2721 = vmatpush1.msra.mxu0 0.0
        %2722 = vmatprep.subr.mxu0 0.0
        %2723 = vmatpush1.msra.mxu0 0.0
        %2724 = vmatprep.subr.mxu0 0.0
        %2725 = vmatpush1.msra.mxu0 0.0
        %2726 = vmatprep.subr.mxu0 0.0
        %2727 = vmatpush1.msra.mxu0 0.0
        %2728 = vmatprep.subr.mxu0 0.0
        %2729 = vmatpush1.msra.mxu0 0.0
        %2730 = vmatprep.subr.mxu0 0.0
        %2731 = vmatpush1.msra.mxu0 0.0
        %2732 = vmatprep.subr.mxu0 0.0
        %2733 = vmatpush1.msra.mxu0 0.0
        %2734 = vmatprep.subr.mxu0 0.0
        %2735 = vmatpush1.msra.mxu0 0.0
        %2736 = vmatprep.subr.mxu0 0.0
        %2737 = vmatpush1.msra.mxu0 0.0
        %2738 = vmatprep.subr.mxu0 0.0
        %2739 = vmatpush1.msra.mxu0 0.0
        %2740 = vmatprep.subr.mxu0 0.0
        %2741 = vmatpush1.msra.mxu0 0.0
        %2742 = vmatprep.subr.mxu0 0.0
        %2743 = vmatpush1.msra.mxu0 0.0
        %2744 = vmatprep.subr.mxu0 0.0
        %2745 = vmatpush1.msra.mxu0 0.0
        %2746 = vmatprep.subr.mxu0 0.0
        %2747 = vmatpush1.msra.mxu0 0.0
        %2748 = vmatprep.subr.mxu0 0.0
        %2749 = vmatpush1.msra.mxu0 0.0
        %2750 = vmatprep.subr.mxu0 0.0
        %2751 = vmatpush1.msra.mxu0 0.0
        %2752 = vmatprep.subr.mxu0 0.0
        %2753 = vmatpush1.msra.mxu0 0.0
        %2754 = vmatprep.subr.mxu0 0.0
        %2755 = vmatpush1.msra.mxu0 0.0
        %2756 = vmatprep.subr.mxu0 0.0
        %2757 = vmatpush1.msra.mxu0 0.0
        %2758 = vmatprep.subr.mxu0 0.0
        %2759 = vmatpush1.msra.mxu0 0.0
        %2760 = vmatprep.subr.mxu0 0.0
        %2761 = vmatpush1.msra.mxu0 0.0
        %2762 = vmatprep.subr.mxu0 0.0
        %2763 = vmatpush1.msra.mxu0 0.0
        %2764 = vmatprep.subr.mxu0 0.0
        %2765 = vmatpush1.msra.mxu0 0.0
        %2766 = vmatprep.subr.mxu0 0.0
        %2767 = vmatpush1.msra.mxu0 0.0
        %2768 = vmatprep.subr.mxu0 0.0
        %2769 = vmatpush1.msra.mxu0 0.0
        %2770 = vmatprep.mubr.f32.mxu0 0.0
        %2771 = vmatmul.mubr.f32.gmra.mrb[0].mxu0 %v2608
        %v2772 = vpop.f32.mrb[0].mxu0
        %v2773 = vadd.f32 0.0, %v2772
        %v2774 = vpop.f32.mrb[0].mxu0
        %2775 = vmatprep.mubr.f32.mxu0 0.0
        %2776 = vmatmul.mubr.f32.gmra.mrb[0].mxu0 %v2611
        %v2777 = vpop.f32.mrb[0].mxu0
        %v2778 = vadd.f32 0.0, %v2777
        %v2779 = vpop.f32.mrb[0].mxu0
        %2780 = vmatprep.mubr.f32.mxu0 0.0
        %2781 = vmatmul.mubr.f32.gmra.mrb[0].mxu0 %v2614
        %v2782 = vpop.f32.mrb[0].mxu0
        %v2783 = vadd.f32 0.0, %v2782
        %v2784 = vpop.f32.mrb[0].mxu0
        %2785 = vmatprep.mubr.f32.mxu0 0.0
        %2786 = vmatmul.mubr.f32.gmra.mrb[0].mxu0 %v2617
        %v2787 = vpop.f32.mrb[0].mxu0
        %v2788 = vadd.f32 0.0, %v2787
        %v2789 = vpop.f32.mrb[0].mxu0
        %2790 = vmatprep.mubr.f32.mxu0 0.0
        %2791 = vmatmul.mubr.f32.gmra.mrb[0].mxu0 %v2620
        %v2792 = vpop.f32.mrb[0].mxu0
        %v2793 = vadd.f32 0.0, %v2792
        %v2794 = vpop.f32.mrb[0].mxu0
        %2795 = vmatprep.mubr.f32.mxu0 0.0
        %2796 = vmatmul.mubr.f32.gmra.mrb[0].mxu0 %v2623
        %v2797 = vpop.f32.mrb[0].mxu0
        %v2798 = vadd.f32 0.0, %v2797
        %v2799 = vpop.f32.mrb[0].mxu0
        %2800 = vmatprep.mubr.f32.mxu0 0.0
        %2801 = vmatmul.mubr.f32.gmra.mrb[0].mxu0 %v2626
        %v2802 = vpop.f32.mrb[0].mxu0
        %v2803 = vadd.f32 0.0, %v2802
        %v2804 = vpop.f32.mrb[0].mxu0
        %2805 = vmatprep.mubr.f32.mxu0 0.0
        %2806 = vmatmul.mubr.f32.gmra.mrb[0].mxu0 %v2629
        %v2807 = vpop.f32.mrb[0].mxu0
        %v2808 = vadd.f32 0.0, %v2807
        %v2809 = vpop.f32.mrb[0].mxu0
        %2810 = vmatprep.mubr.f32.mxu0 0.0
        %2811 = vmatmul.mubr.f32.gmra.mrb[0].mxu0 %v2632
        %v2812 = vpop.f32.mrb[0].mxu0
        %v2813 = vadd.f32 0.0, %v2812
        %v2814 = vpop.f32.mrb[0].mxu0
        %2815 = vmatprep.mubr.f32.mxu0 0.0
        %2816 = vmatmul.mubr.f32.gmra.mrb[0].mxu0 %v2635
        %v2817 = vpop.f32.mrb[0].mxu0
        %v2818 = vadd.f32 0.0, %v2817
        %v2819 = vpop.f32.mrb[0].mxu0
        %2820 = vmatprep.mubr.f32.mxu0 0.0
        %2821 = vmatmul.mubr.f32.gmra.mrb[0].mxu0 %v2638
        %v2822 = vpop.f32.mrb[0].mxu0
        %v2823 = vadd.f32 0.0, %v2822
        %v2824 = vpop.f32.mrb[0].mxu0
        %2825 = vmatprep.mubr.f32.mxu0 0.0
        %2826 = vmatmul.mubr.f32.gmra.mrb[0].mxu0 %v2641
        %v2827 = vpop.f32.mrb[0].mxu0
        %v2828 = vadd.f32 0.0, %v2827
        %v2829 = vpop.f32.mrb[0].mxu0
        %2830 = vmatprep.mubr.f32.mxu0 0.0
        %2831 = vmatmul.mubr.f32.gmra.mrb[0].mxu0 %v2644
        %v2832 = vpop.f32.mrb[0].mxu0
        %v2833 = vadd.f32 0.0, %v2832
        %v2834 = vpop.f32.mrb[0].mxu0
        %2835 = vmatprep.mubr.f32.mxu0 0.0
        %2836 = vmatmul.mubr.f32.gmra.mrb[0].mxu0 %v2647
        %v2837 = vpop.f32.mrb[0].mxu0
        %v2838 = vadd.f32 0.0, %v2837
        %v2839 = vpop.f32.mrb[0].mxu0
        %2840 = vmatprep.mubr.f32.mxu0 0.0
        %2841 = vmatmul.mubr.f32.gmra.mrb[0].mxu0 %v2650
        %v2842 = vpop.f32.mrb[0].mxu0
        %v2843 = vadd.f32 0.0, %v2842
        %v2844 = vpop.f32.mrb[0].mxu0
        %2845 = vmatprep.mubr.f32.mxu0 0.0
        %2846 = vmatmul.mubr.f32.gmra.mrb[0].mxu0 %v2653
        %v2847 = vpop.f32.mrb[0].mxu0
        %v2848 = vadd.f32 0.0, %v2847
        %v2849 = vpop.f32.mrb[0].mxu0
        %2850 = vmatprep.mubr.f32.mxu0 0.0
        %2851 = vmatmul.mubr.f32.gmra.mrb[0].mxu0 %v2656
        %v2852 = vpop.f32.mrb[0].mxu0
        %v2853 = vadd.f32 0.0, %v2852
        %v2854 = vpop.f32.mrb[0].mxu0
        %2855 = vmatprep.mubr.f32.mxu0 0.0
        %2856 = vmatmul.mubr.f32.gmra.mrb[0].mxu0 %v2659
        %v2857 = vpop.f32.mrb[0].mxu0
        %v2858 = vadd.f32 0.0, %v2857
        %v2859 = vpop.f32.mrb[0].mxu0
        %2860 = vmatprep.mubr.f32.mxu0 0.0
        %2861 = vmatmul.mubr.f32.gmra.mrb[0].mxu0 %v2662
        %v2862 = vpop.f32.mrb[0].mxu0
        %v2863 = vadd.f32 0.0, %v2862
        %v2864 = vpop.f32.mrb[0].mxu0
        %2865 = vmatprep.mubr.f32.mxu0 0.0
        %2866 = vmatmul.mubr.f32.gmra.mrb[0].mxu0 %v2665
        %v2867 = vpop.f32.mrb[0].mxu0
        %v2868 = vadd.f32 0.0, %v2867
        %v2869 = vpop.f32.mrb[0].mxu0
        %2870 = vmatprep.mubr.f32.mxu0 0.0
        %2871 = vmatmul.mubr.f32.gmra.mrb[0].mxu0 %v2668
        %v2872 = vpop.f32.mrb[0].mxu0
        %v2873 = vadd.f32 0.0, %v2872
        %v2874 = vpop.f32.mrb[0].mxu0
        %2875 = vmatprep.mubr.f32.mxu0 0.0
        %2876 = vmatmul.mubr.f32.gmra.mrb[0].mxu0 %v2671
        %v2877 = vpop.f32.mrb[0].mxu0
        %v2878 = vadd.f32 0.0, %v2877
        %v2879 = vpop.f32.mrb[0].mxu0
        %2880 = vmatprep.mubr.f32.mxu0 0.0
        %2881 = vmatmul.mubr.f32.gmra.mrb[0].mxu0 %v2674
        %v2882 = vpop.f32.mrb[0].mxu0
        %v2883 = vadd.f32 0.0, %v2882
        %v2884 = vpop.f32.mrb[0].mxu0
        %2885 = vmatprep.mubr.f32.mxu0 0.0
        %2886 = vmatmul.mubr.f32.gmra.mrb[0].mxu0 %v2677
        %v2887 = vpop.f32.mrb[0].mxu0
        %v2888 = vadd.f32 0.0, %v2887
        %v2889 = vpop.f32.mrb[0].mxu0
        %2890 = vmatprep.mubr.f32.mxu0 0.0
        %2891 = vmatmul.mubr.f32.gmra.mrb[0].mxu0 %v2680
        %v2892 = vpop.f32.mrb[0].mxu0
        %v2893 = vadd.f32 0.0, %v2892
        %v2894 = vpop.f32.mrb[0].mxu0
        %2895 = vmatprep.mubr.f32.mxu0 0.0
        %2896 = vmatmul.mubr.f32.gmra.mrb[0].mxu0 %v2683
        %v2897 = vpop.f32.mrb[0].mxu0
        %v2898 = vadd.f32 0.0, %v2897
        %v2899 = vpop.f32.mrb[0].mxu0
        %2900 = vmatprep.mubr.f32.mxu0 0.0
        %2901 = vmatmul.mubr.f32.gmra.mrb[0].mxu0 %v2686
        %v2902 = vpop.f32.mrb[0].mxu0
        %v2903 = vadd.f32 0.0, %v2902
        %v2904 = vpop.f32.mrb[0].mxu0
        %2905 = vmatprep.mubr.f32.mxu0 0.0
        %2906 = vmatmul.mubr.f32.gmra.mrb[0].mxu0 %v2689
        %v2907 = vpop.f32.mrb[0].mxu0
        %v2908 = vadd.f32 0.0, %v2907
        %v2909 = vpop.f32.mrb[0].mxu0
        %2910 = vmatprep.mubr.f32.mxu0 0.0
        %2911 = vmatmul.mubr.f32.gmra.mrb[0].mxu0 %v2692
        %v2912 = vpop.f32.mrb[0].mxu0
        %v2913 = vadd.f32 0.0, %v2912
        %v2914 = vpop.f32.mrb[0].mxu0
        %2915 = vmatprep.mubr.f32.mxu0 0.0
        %2916 = vmatmul.mubr.f32.gmra.mrb[0].mxu0 %v2695
        %v2917 = vpop.f32.mrb[0].mxu0
        %v2918 = vadd.f32 0.0, %v2917
        %v2919 = vpop.f32.mrb[0].mxu0
        %2920 = vmatprep.mubr.f32.mxu0 0.0
        %2921 = vmatmul.mubr.f32.gmra.mrb[0].mxu0 %v2698
        %v2922 = vpop.f32.mrb[0].mxu0
        %v2923 = vadd.f32 0.0, %v2922
        %v2924 = vpop.f32.mrb[0].mxu0
        %2925 = vmatprep.mubr.f32.mxu0 0.0
        %2926 = vmatmul.mubr.f32.gmra.mrb[0].mxu0 %v2701
        %v2927 = vpop.f32.mrb[0].mxu0
        %v2928 = vadd.f32 0.0, %v2927
        %v2929 = vpop.f32.mrb[0].mxu0
        %2930 = vdwg.mxu0
        %v2931 = vadd.f32 %v2540, %v2773
        %v2932 = vadd.f32 %v2541, %v2778
        %v2933 = vadd.f32 %v2542, %v2783
        %v2934 = vadd.f32 %v2543, %v2788
        %v2935 = vadd.f32 %v2544, %v2793
        %v2936 = vadd.f32 %v2545, %v2798
        %v2937 = vadd.f32 %v2546, %v2803
        %v2938 = vadd.f32 %v2547, %v2808
        %v2939 = vadd.f32 %v2548, %v2813
        %v2940 = vadd.f32 %v2549, %v2818
        %v2941 = vadd.f32 %v2550, %v2823
        %v2942 = vadd.f32 %v2551, %v2828
        %v2943 = vadd.f32 %v2552, %v2833
        %v2944 = vadd.f32 %v2553, %v2838
        %v2945 = vadd.f32 %v2554, %v2843
        %v2946 = vadd.f32 %v2555, %v2848
        %v2947 = vadd.f32 %v2556, %v2853
        %v2948 = vadd.f32 %v2557, %v2858
        %v2949 = vadd.f32 %v2558, %v2863
        %v2950 = vadd.f32 %v2559, %v2868
        %v2951 = vadd.f32 %v2560, %v2873
        %v2952 = vadd.f32 %v2561, %v2878
        %v2953 = vadd.f32 %v2562, %v2883
        %v2954 = vadd.f32 %v2563, %v2888
        %v2955 = vadd.f32 %v2564, %v2893
        %v2956 = vadd.f32 %v2565, %v2898
        %v2957 = vadd.f32 %v2566, %v2903
        %v2958 = vadd.f32 %v2567, %v2908
        %v2959 = vadd.f32 %v2568, %v2913
        %v2960 = vadd.f32 %v2569, %v2918
        %v2961 = vadd.f32 %v2570, %v2923
        %v2962 = vadd.f32 %v2571, %v2928
        %v2963 = vld [vmem:[%s2572 + $0x1] sm:$0xff]
        %v2964 = vld [vmem:[%s2572 + $0x9] sm:$0xff]
        %v2965 = vld [vmem:[%s2572 + $0x19] sm:$0xff]
        %v2966 = vld [vmem:[%s2572 + $0x21] sm:$0xff]
        %v2967 = vld [vmem:[%s2572 + $0x31] sm:$0xff]
        %v2968 = vld [vmem:[%s2572 + $0x39] sm:$0xff]
        %v2969 = vld [vmem:[%s2572 + $0x49] sm:$0xff]
        %v2970 = vld [vmem:[%s2572 + $0x51] sm:$0xff]
        %v2971 = vld [vmem:[%s2572 + $0x61] sm:$0xff]
        %v2972 = vld [vmem:[%s2572 + $0x69] sm:$0xff]
        %v2973 = vld [vmem:[%s2572 + $0x79] sm:$0xff]
        %v2974 = vld [vmem:[%s2572 + $0x81] sm:$0xff]
        %v2975 = vld [vmem:[%s2572 + $0x91] sm:$0xff]
        %v2976 = vld [vmem:[%s2572 + $0x99] sm:$0xff]
        %v2977 = vld [vmem:[%s2572 + $0xa9] sm:$0xff]
        %v2978 = vld [vmem:[%s2572 + $0xb1] sm:$0xff]
        %v2979 = vld [vmem:[%s2572 + $0xc1] sm:$0xff]
        %v2980 = vld [vmem:[%s2572 + $0xc9] sm:$0xff]
        %v2981 = vld [vmem:[%s2572 + $0xd9] sm:$0xff]
        %v2982 = vld [vmem:[%s2572 + $0xe1] sm:$0xff]
        %v2983 = vld [vmem:[%s2572 + $0xf1] sm:$0xff]
        %v2984 = vld [vmem:[%s2572 + $0xf9] sm:$0xff]
        %v2985 = vld [vmem:[%s2572 + $0x109] sm:$0xff]
        %v2986 = vld [vmem:[%s2572 + $0x111] sm:$0xff]
        %v2987 = vld [vmem:[%s2572 + $0x121] sm:$0xff]
        %v2988 = vld [vmem:[%s2572 + $0x129] sm:$0xff]
        %v2989 = vld [vmem:[%s2572 + $0x139] sm:$0xff]
        %v2990 = vld [vmem:[%s2572 + $0x141] sm:$0xff]
        %v2991 = vld [vmem:[%s2572 + $0x151] sm:$0xff]
        %v2992 = vld [vmem:[%s2572 + $0x159] sm:$0xff]
        %v2993 = vld [vmem:[%s2572 + $0x169] sm:$0xff]
        %v2994 = vld [vmem:[%s2572 + $0x171] sm:$0xff]
        %s2995 = scalar_lea.vmem %s1, 28
        %v2996 = vld [vmem:[%s2995] sm:$0xf]
        %v2998 = vsel %vm263, %v2963, 0
        %v3001 = vsel %vm263, %v2964, 0
        %v3004 = vsel %vm263, %v2965, 0
        %v3007 = vsel %vm263, %v2966, 0
        %v3010 = vsel %vm263, %v2967, 0
        %v3013 = vsel %vm263, %v2968, 0
        %v3016 = vsel %vm263, %v2969, 0
        %v3019 = vsel %vm263, %v2970, 0
        %v3022 = vsel %vm263, %v2971, 0
        %v3025 = vsel %vm263, %v2972, 0
        %v3028 = vsel %vm263, %v2973, 0
        %v3031 = vsel %vm263, %v2974, 0
        %v3034 = vsel %vm263, %v2975, 0
        %v3037 = vsel %vm263, %v2976, 0
        %v3040 = vsel %vm263, %v2977, 0
        %v3043 = vsel %vm263, %v2978, 0
        %v3046 = vsel %vm263, %v2979, 0
        %v3049 = vsel %vm263, %v2980, 0
        %v3052 = vsel %vm263, %v2981, 0
        %v3055 = vsel %vm263, %v2982, 0
        %v3058 = vsel %vm263, %v2983, 0
        %v3061 = vsel %vm263, %v2984, 0
        %v3064 = vsel %vm263, %v2985, 0
        %v3067 = vsel %vm263, %v2986, 0
        %v3070 = vsel %vm263, %v2987, 0
        %v3073 = vsel %vm263, %v2988, 0
        %v3076 = vsel %vm263, %v2989, 0
        %v3079 = vsel %vm263, %v2990, 0
        %v3082 = vsel %vm263, %v2991, 0
        %v3085 = vsel %vm263, %v2992, 0
        %v3088 = vsel %vm263, %v2993, 0
        %v3091 = vsel %vm263, %v2994, 0
        %v3094 = vsel %vm360, %v2996, 0
        %3096 = vmatprep.subr.mxu0 0.0
        %3097 = vmatpush1.msra.mxu0 %v3094
        %3098 = vmatprep.subr.mxu0 0.0
        %3099 = vmatpush1.msra.mxu0 0.0
        %3100 = vmatprep.subr.mxu0 0.0
        %3101 = vmatpush1.msra.mxu0 0.0
        %3102 = vmatprep.subr.mxu0 0.0
        %3103 = vmatpush1.msra.mxu0 0.0
        %3104 = vmatprep.subr.mxu0 0.0
        %3105 = vmatpush1.msra.mxu0 0.0
        %3106 = vmatprep.subr.mxu0 0.0
        %3107 = vmatpush1.msra.mxu0 0.0
        %3108 = vmatprep.subr.mxu0 0.0
        %3109 = vmatpush1.msra.mxu0 0.0
        %3110 = vmatprep.subr.mxu0 0.0
        %3111 = vmatpush1.msra.mxu0 0.0
        %3112 = vmatprep.subr.mxu0 0.0
        %3113 = vmatpush1.msra.mxu0 0.0
        %3114 = vmatprep.subr.mxu0 0.0
        %3115 = vmatpush1.msra.mxu0 0.0
        %3116 = vmatprep.subr.mxu0 0.0
        %3117 = vmatpush1.msra.mxu0 0.0
        %3118 = vmatprep.subr.mxu0 0.0
        %3119 = vmatpush1.msra.mxu0 0.0
        %3120 = vmatprep.subr.mxu0 0.0
        %3121 = vmatpush1.msra.mxu0 0.0
        %3122 = vmatprep.subr.mxu0 0.0
        %3123 = vmatpush1.msra.mxu0 0.0
        %3124 = vmatprep.subr.mxu0 0.0
        %3125 = vmatpush1.msra.mxu0 0.0
        %3126 = vmatprep.subr.mxu0 0.0
        %3127 = vmatpush1.msra.mxu0 0.0
        %3128 = vmatprep.subr.mxu0 0.0
        %3129 = vmatpush1.msra.mxu0 0.0
        %3130 = vmatprep.subr.mxu0 0.0
        %3131 = vmatpush1.msra.mxu0 0.0
        %3132 = vmatprep.subr.mxu0 0.0
        %3133 = vmatpush1.msra.mxu0 0.0
        %3134 = vmatprep.subr.mxu0 0.0
        %3135 = vmatpush1.msra.mxu0 0.0
        %3136 = vmatprep.subr.mxu0 0.0
        %3137 = vmatpush1.msra.mxu0 0.0
        %3138 = vmatprep.subr.mxu0 0.0
        %3139 = vmatpush1.msra.mxu0 0.0
        %3140 = vmatprep.subr.mxu0 0.0
        %3141 = vmatpush1.msra.mxu0 0.0
        %3142 = vmatprep.subr.mxu0 0.0
        %3143 = vmatpush1.msra.mxu0 0.0
        %3144 = vmatprep.subr.mxu0 0.0
        %3145 = vmatpush1.msra.mxu0 0.0
        %3146 = vmatprep.subr.mxu0 0.0
        %3147 = vmatpush1.msra.mxu0 0.0
        %3148 = vmatprep.subr.mxu0 0.0
        %3149 = vmatpush1.msra.mxu0 0.0
        %3150 = vmatprep.subr.mxu0 0.0
        %3151 = vmatpush1.msra.mxu0 0.0
        %3152 = vmatprep.subr.mxu0 0.0
        %3153 = vmatpush1.msra.mxu0 0.0
        %3154 = vmatprep.subr.mxu0 0.0
        %3155 = vmatpush1.msra.mxu0 0.0
        %3156 = vmatprep.subr.mxu0 0.0
        %3157 = vmatpush1.msra.mxu0 0.0
        %3158 = vmatprep.subr.mxu0 0.0
        %3159 = vmatpush1.msra.mxu0 0.0
        %3160 = vmatprep.mubr.f32.mxu0 0.0
        %3161 = vmatmul.mubr.f32.gmra.mrb[0].mxu0 %v2998
        %v3162 = vpop.f32.mrb[0].mxu0
        %v3163 = vadd.f32 0.0, %v3162
        %v3164 = vpop.f32.mrb[0].mxu0
        %3165 = vmatprep.mubr.f32.mxu0 0.0
        %3166 = vmatmul.mubr.f32.gmra.mrb[0].mxu0 %v3001
        %v3167 = vpop.f32.mrb[0].mxu0
        %v3168 = vadd.f32 0.0, %v3167
        %v3169 = vpop.f32.mrb[0].mxu0
        %3170 = vmatprep.mubr.f32.mxu0 0.0
        %3171 = vmatmul.mubr.f32.gmra.mrb[0].mxu0 %v3004
        %v3172 = vpop.f32.mrb[0].mxu0
        %v3173 = vadd.f32 0.0, %v3172
        %v3174 = vpop.f32.mrb[0].mxu0
        %3175 = vmatprep.mubr.f32.mxu0 0.0
        %3176 = vmatmul.mubr.f32.gmra.mrb[0].mxu0 %v3007
        %v3177 = vpop.f32.mrb[0].mxu0
        %v3178 = vadd.f32 0.0, %v3177
        %v3179 = vpop.f32.mrb[0].mxu0
        %3180 = vmatprep.mubr.f32.mxu0 0.0
        %3181 = vmatmul.mubr.f32.gmra.mrb[0].mxu0 %v3010
        %v3182 = vpop.f32.mrb[0].mxu0
        %v3183 = vadd.f32 0.0, %v3182
        %v3184 = vpop.f32.mrb[0].mxu0
        %3185 = vmatprep.mubr.f32.mxu0 0.0
        %3186 = vmatmul.mubr.f32.gmra.mrb[0].mxu0 %v3013
        %v3187 = vpop.f32.mrb[0].mxu0
        %v3188 = vadd.f32 0.0, %v3187
        %v3189 = vpop.f32.mrb[0].mxu0
        %3190 = vmatprep.mubr.f32.mxu0 0.0
        %3191 = vmatmul.mubr.f32.gmra.mrb[0].mxu0 %v3016
        %v3192 = vpop.f32.mrb[0].mxu0
        %v3193 = vadd.f32 0.0, %v3192
        %v3194 = vpop.f32.mrb[0].mxu0
        %3195 = vmatprep.mubr.f32.mxu0 0.0
        %3196 = vmatmul.mubr.f32.gmra.mrb[0].mxu0 %v3019
        %v3197 = vpop.f32.mrb[0].mxu0
        %v3198 = vadd.f32 0.0, %v3197
        %v3199 = vpop.f32.mrb[0].mxu0
        %3200 = vmatprep.mubr.f32.mxu0 0.0
        %3201 = vmatmul.mubr.f32.gmra.mrb[0].mxu0 %v3022
        %v3202 = vpop.f32.mrb[0].mxu0
        %v3203 = vadd.f32 0.0, %v3202
        %v3204 = vpop.f32.mrb[0].mxu0
        %3205 = vmatprep.mubr.f32.mxu0 0.0
        %3206 = vmatmul.mubr.f32.gmra.mrb[0].mxu0 %v3025
        %v3207 = vpop.f32.mrb[0].mxu0
        %v3208 = vadd.f32 0.0, %v3207
        %v3209 = vpop.f32.mrb[0].mxu0
        %3210 = vmatprep.mubr.f32.mxu0 0.0
        %3211 = vmatmul.mubr.f32.gmra.mrb[0].mxu0 %v3028
        %v3212 = vpop.f32.mrb[0].mxu0
        %v3213 = vadd.f32 0.0, %v3212
        %v3214 = vpop.f32.mrb[0].mxu0
        %3215 = vmatprep.mubr.f32.mxu0 0.0
        %3216 = vmatmul.mubr.f32.gmra.mrb[0].mxu0 %v3031
        %v3217 = vpop.f32.mrb[0].mxu0
        %v3218 = vadd.f32 0.0, %v3217
        %v3219 = vpop.f32.mrb[0].mxu0
        %3220 = vmatprep.mubr.f32.mxu0 0.0
        %3221 = vmatmul.mubr.f32.gmra.mrb[0].mxu0 %v3034
        %v3222 = vpop.f32.mrb[0].mxu0
        %v3223 = vadd.f32 0.0, %v3222
        %v3224 = vpop.f32.mrb[0].mxu0
        %3225 = vmatprep.mubr.f32.mxu0 0.0
        %3226 = vmatmul.mubr.f32.gmra.mrb[0].mxu0 %v3037
        %v3227 = vpop.f32.mrb[0].mxu0
        %v3228 = vadd.f32 0.0, %v3227
        %v3229 = vpop.f32.mrb[0].mxu0
        %3230 = vmatprep.mubr.f32.mxu0 0.0
        %3231 = vmatmul.mubr.f32.gmra.mrb[0].mxu0 %v3040
        %v3232 = vpop.f32.mrb[0].mxu0
        %v3233 = vadd.f32 0.0, %v3232
        %v3234 = vpop.f32.mrb[0].mxu0
        %3235 = vmatprep.mubr.f32.mxu0 0.0
        %3236 = vmatmul.mubr.f32.gmra.mrb[0].mxu0 %v3043
        %v3237 = vpop.f32.mrb[0].mxu0
        %v3238 = vadd.f32 0.0, %v3237
        %v3239 = vpop.f32.mrb[0].mxu0
        %3240 = vmatprep.mubr.f32.mxu0 0.0
        %3241 = vmatmul.mubr.f32.gmra.mrb[0].mxu0 %v3046
        %v3242 = vpop.f32.mrb[0].mxu0
        %v3243 = vadd.f32 0.0, %v3242
        %v3244 = vpop.f32.mrb[0].mxu0
        %3245 = vmatprep.mubr.f32.mxu0 0.0
        %3246 = vmatmul.mubr.f32.gmra.mrb[0].mxu0 %v3049
        %v3247 = vpop.f32.mrb[0].mxu0
        %v3248 = vadd.f32 0.0, %v3247
        %v3249 = vpop.f32.mrb[0].mxu0
        %3250 = vmatprep.mubr.f32.mxu0 0.0
        %3251 = vmatmul.mubr.f32.gmra.mrb[0].mxu0 %v3052
        %v3252 = vpop.f32.mrb[0].mxu0
        %v3253 = vadd.f32 0.0, %v3252
        %v3254 = vpop.f32.mrb[0].mxu0
        %3255 = vmatprep.mubr.f32.mxu0 0.0
        %3256 = vmatmul.mubr.f32.gmra.mrb[0].mxu0 %v3055
        %v3257 = vpop.f32.mrb[0].mxu0
        %v3258 = vadd.f32 0.0, %v3257
        %v3259 = vpop.f32.mrb[0].mxu0
        %3260 = vmatprep.mubr.f32.mxu0 0.0
        %3261 = vmatmul.mubr.f32.gmra.mrb[0].mxu0 %v3058
        %v3262 = vpop.f32.mrb[0].mxu0
        %v3263 = vadd.f32 0.0, %v3262
        %v3264 = vpop.f32.mrb[0].mxu0
        %3265 = vmatprep.mubr.f32.mxu0 0.0
        %3266 = vmatmul.mubr.f32.gmra.mrb[0].mxu0 %v3061
        %v3267 = vpop.f32.mrb[0].mxu0
        %v3268 = vadd.f32 0.0, %v3267
        %v3269 = vpop.f32.mrb[0].mxu0
        %3270 = vmatprep.mubr.f32.mxu0 0.0
        %3271 = vmatmul.mubr.f32.gmra.mrb[0].mxu0 %v3064
        %v3272 = vpop.f32.mrb[0].mxu0
        %v3273 = vadd.f32 0.0, %v3272
        %v3274 = vpop.f32.mrb[0].mxu0
        %3275 = vmatprep.mubr.f32.mxu0 0.0
        %3276 = vmatmul.mubr.f32.gmra.mrb[0].mxu0 %v3067
        %v3277 = vpop.f32.mrb[0].mxu0
        %v3278 = vadd.f32 0.0, %v3277
        %v3279 = vpop.f32.mrb[0].mxu0
        %3280 = vmatprep.mubr.f32.mxu0 0.0
        %3281 = vmatmul.mubr.f32.gmra.mrb[0].mxu0 %v3070
        %v3282 = vpop.f32.mrb[0].mxu0
        %v3283 = vadd.f32 0.0, %v3282
        %v3284 = vpop.f32.mrb[0].mxu0
        %3285 = vmatprep.mubr.f32.mxu0 0.0
        %3286 = vmatmul.mubr.f32.gmra.mrb[0].mxu0 %v3073
        %v3287 = vpop.f32.mrb[0].mxu0
        %v3288 = vadd.f32 0.0, %v3287
        %v3289 = vpop.f32.mrb[0].mxu0
        %3290 = vmatprep.mubr.f32.mxu0 0.0
        %3291 = vmatmul.mubr.f32.gmra.mrb[0].mxu0 %v3076
        %v3292 = vpop.f32.mrb[0].mxu0
        %v3293 = vadd.f32 0.0, %v3292
        %v3294 = vpop.f32.mrb[0].mxu0
        %3295 = vmatprep.mubr.f32.mxu0 0.0
        %3296 = vmatmul.mubr.f32.gmra.mrb[0].mxu0 %v3079
        %v3297 = vpop.f32.mrb[0].mxu0
        %v3298 = vadd.f32 0.0, %v3297
        %v3299 = vpop.f32.mrb[0].mxu0
        %3300 = vmatprep.mubr.f32.mxu0 0.0
        %3301 = vmatmul.mubr.f32.gmra.mrb[0].mxu0 %v3082
        %v3302 = vpop.f32.mrb[0].mxu0
        %v3303 = vadd.f32 0.0, %v3302
        %v3304 = vpop.f32.mrb[0].mxu0
        %3305 = vmatprep.mubr.f32.mxu0 0.0
        %3306 = vmatmul.mubr.f32.gmra.mrb[0].mxu0 %v3085
        %v3307 = vpop.f32.mrb[0].mxu0
        %v3308 = vadd.f32 0.0, %v3307
        %v3309 = vpop.f32.mrb[0].mxu0
        %3310 = vmatprep.mubr.f32.mxu0 0.0
        %3311 = vmatmul.mubr.f32.gmra.mrb[0].mxu0 %v3088
        %v3312 = vpop.f32.mrb[0].mxu0
        %v3313 = vadd.f32 0.0, %v3312
        %v3314 = vpop.f32.mrb[0].mxu0
        %3315 = vmatprep.mubr.f32.mxu0 0.0
        %3316 = vmatmul.mubr.f32.gmra.mrb[0].mxu0 %v3091
        %v3317 = vpop.f32.mrb[0].mxu0
        %v3318 = vadd.f32 0.0, %v3317
        %v3319 = vpop.f32.mrb[0].mxu0
        %3320 = vdwg.mxu0
        %v3321 = vadd.f32 %v2931, %v3163
        %v3322 = vadd.f32 %v2932, %v3168
        %v3323 = vadd.f32 %v2933, %v3173
        %v3324 = vadd.f32 %v2934, %v3178
        %v3325 = vadd.f32 %v2935, %v3183
        %v3326 = vadd.f32 %v2936, %v3188
        %v3327 = vadd.f32 %v2937, %v3193
        %v3328 = vadd.f32 %v2938, %v3198
        %v3329 = vadd.f32 %v2939, %v3203
        %v3330 = vadd.f32 %v2940, %v3208
        %v3331 = vadd.f32 %v2941, %v3213
        %v3332 = vadd.f32 %v2942, %v3218
        %v3333 = vadd.f32 %v2943, %v3223
        %v3334 = vadd.f32 %v2944, %v3228
        %v3335 = vadd.f32 %v2945, %v3233
        %v3336 = vadd.f32 %v2946, %v3238
        %v3337 = vadd.f32 %v2947, %v3243
        %v3338 = vadd.f32 %v2948, %v3248
        %v3339 = vadd.f32 %v2949, %v3253
        %v3340 = vadd.f32 %v2950, %v3258
        %v3341 = vadd.f32 %v2951, %v3263
        %v3342 = vadd.f32 %v2952, %v3268
        %v3343 = vadd.f32 %v2953, %v3273
        %v3344 = vadd.f32 %v2954, %v3278
        %v3345 = vadd.f32 %v2955, %v3283
        %v3346 = vadd.f32 %v2956, %v3288
        %v3347 = vadd.f32 %v2957, %v3293
        %v3348 = vadd.f32 %v2958, %v3298
        %v3349 = vadd.f32 %v2959, %v3303
        %v3350 = vadd.f32 %v2960, %v3308
        %v3351 = vadd.f32 %v2961, %v3313
        %v3352 = vadd.f32 %v2962, %v3318
        %v3353 = vld [vmem:[%s2572 + $0x2] sm:$0xff]
        %v3354 = vld [vmem:[%s2572 + $0xa] sm:$0xff]
        %v3355 = vld [vmem:[%s2572 + $0x1a] sm:$0xff]
        %v3356 = vld [vmem:[%s2572 + $0x22] sm:$0xff]
        %v3357 = vld [vmem:[%s2572 + $0x32] sm:$0xff]
        %v3358 = vld [vmem:[%s2572 + $0x3a] sm:$0xff]
        %v3359 = vld [vmem:[%s2572 + $0x4a] sm:$0xff]
        %v3360 = vld [vmem:[%s2572 + $0x52] sm:$0xff]
        %v3361 = vld [vmem:[%s2572 + $0x62] sm:$0xff]
        %v3362 = vld [vmem:[%s2572 + $0x6a] sm:$0xff]
        %v3363 = vld [vmem:[%s2572 + $0x7a] sm:$0xff]
        %v3364 = vld [vmem:[%s2572 + $0x82] sm:$0xff]
        %v3365 = vld [vmem:[%s2572 + $0x92] sm:$0xff]
        %v3366 = vld [vmem:[%s2572 + $0x9a] sm:$0xff]
        %v3367 = vld [vmem:[%s2572 + $0xaa] sm:$0xff]
        %v3368 = vld [vmem:[%s2572 + $0xb2] sm:$0xff]
        %v3369 = vld [vmem:[%s2572 + $0xc2] sm:$0xff]
        %v3370 = vld [vmem:[%s2572 + $0xca] sm:$0xff]
        %v3371 = vld [vmem:[%s2572 + $0xda] sm:$0xff]
        %v3372 = vld [vmem:[%s2572 + $0xe2] sm:$0xff]
        %v3373 = vld [vmem:[%s2572 + $0xf2] sm:$0xff]
        %v3374 = vld [vmem:[%s2572 + $0xfa] sm:$0xff]
        %v3375 = vld [vmem:[%s2572 + $0x10a] sm:$0xff]
        %v3376 = vld [vmem:[%s2572 + $0x112] sm:$0xff]
        %v3377 = vld [vmem:[%s2572 + $0x122] sm:$0xff]
        %v3378 = vld [vmem:[%s2572 + $0x12a] sm:$0xff]
        %v3379 = vld [vmem:[%s2572 + $0x13a] sm:$0xff]
        %v3380 = vld [vmem:[%s2572 + $0x142] sm:$0xff]
        %v3381 = vld [vmem:[%s2572 + $0x152] sm:$0xff]
        %v3382 = vld [vmem:[%s2572 + $0x15a] sm:$0xff]
        %v3383 = vld [vmem:[%s2572 + $0x16a] sm:$0xff]
        %v3384 = vld [vmem:[%s2572 + $0x172] sm:$0xff]
        %s3385 = scalar_lea.vmem %s1, 32
        %v3386 = vld [vmem:[%s3385] sm:$0xf]
        %v3388 = vsel %vm263, %v3353, 0
        %v3391 = vsel %vm263, %v3354, 0
        %v3394 = vsel %vm263, %v3355, 0
        %v3397 = vsel %vm263, %v3356, 0
        %v3400 = vsel %vm263, %v3357, 0
        %v3403 = vsel %vm263, %v3358, 0
        %v3406 = vsel %vm263, %v3359, 0
        %v3409 = vsel %vm263, %v3360, 0
        %v3412 = vsel %vm263, %v3361, 0
        %v3415 = vsel %vm263, %v3362, 0
        %v3418 = vsel %vm263, %v3363, 0
        %v3421 = vsel %vm263, %v3364, 0
        %v3424 = vsel %vm263, %v3365, 0
        %v3427 = vsel %vm263, %v3366, 0
        %v3430 = vsel %vm263, %v3367, 0
        %v3433 = vsel %vm263, %v3368, 0
        %v3436 = vsel %vm263, %v3369, 0
        %v3439 = vsel %vm263, %v3370, 0
        %v3442 = vsel %vm263, %v3371, 0
        %v3445 = vsel %vm263, %v3372, 0
        %v3448 = vsel %vm263, %v3373, 0
        %v3451 = vsel %vm263, %v3374, 0
        %v3454 = vsel %vm263, %v3375, 0
        %v3457 = vsel %vm263, %v3376, 0
        %v3460 = vsel %vm263, %v3377, 0
        %v3463 = vsel %vm263, %v3378, 0
        %v3466 = vsel %vm263, %v3379, 0
        %v3469 = vsel %vm263, %v3380, 0
        %v3472 = vsel %vm263, %v3381, 0
        %v3475 = vsel %vm263, %v3382, 0
        %v3478 = vsel %vm263, %v3383, 0
        %v3481 = vsel %vm263, %v3384, 0
        %v3484 = vsel %vm360, %v3386, 0
        %3486 = vmatprep.subr.mxu0 0.0
        %3487 = vmatpush1.msra.mxu0 %v3484
        %3488 = vmatprep.subr.mxu0 0.0
        %3489 = vmatpush1.msra.mxu0 0.0
        %3490 = vmatprep.subr.mxu0 0.0
        %3491 = vmatpush1.msra.mxu0 0.0
        %3492 = vmatprep.subr.mxu0 0.0
        %3493 = vmatpush1.msra.mxu0 0.0
        %3494 = vmatprep.subr.mxu0 0.0
        %3495 = vmatpush1.msra.mxu0 0.0
        %3496 = vmatprep.subr.mxu0 0.0
        %3497 = vmatpush1.msra.mxu0 0.0
        %3498 = vmatprep.subr.mxu0 0.0
        %3499 = vmatpush1.msra.mxu0 0.0
        %3500 = vmatprep.subr.mxu0 0.0
        %3501 = vmatpush1.msra.mxu0 0.0
        %3502 = vmatprep.subr.mxu0 0.0
        %3503 = vmatpush1.msra.mxu0 0.0
        %3504 = vmatprep.subr.mxu0 0.0
        %3505 = vmatpush1.msra.mxu0 0.0
        %3506 = vmatprep.subr.mxu0 0.0
        %3507 = vmatpush1.msra.mxu0 0.0
        %3508 = vmatprep.subr.mxu0 0.0
        %3509 = vmatpush1.msra.mxu0 0.0
        %3510 = vmatprep.subr.mxu0 0.0
        %3511 = vmatpush1.msra.mxu0 0.0
        %3512 = vmatprep.subr.mxu0 0.0
        %3513 = vmatpush1.msra.mxu0 0.0
        %3514 = vmatprep.subr.mxu0 0.0
        %3515 = vmatpush1.msra.mxu0 0.0
        %3516 = vmatprep.subr.mxu0 0.0
        %3517 = vmatpush1.msra.mxu0 0.0
        %3518 = vmatprep.subr.mxu0 0.0
        %3519 = vmatpush1.msra.mxu0 0.0
        %3520 = vmatprep.subr.mxu0 0.0
        %3521 = vmatpush1.msra.mxu0 0.0
        %3522 = vmatprep.subr.mxu0 0.0
        %3523 = vmatpush1.msra.mxu0 0.0
        %3524 = vmatprep.subr.mxu0 0.0
        %3525 = vmatpush1.msra.mxu0 0.0
        %3526 = vmatprep.subr.mxu0 0.0
        %3527 = vmatpush1.msra.mxu0 0.0
        %3528 = vmatprep.subr.mxu0 0.0
        %3529 = vmatpush1.msra.mxu0 0.0
        %3530 = vmatprep.subr.mxu0 0.0
        %3531 = vmatpush1.msra.mxu0 0.0
        %3532 = vmatprep.subr.mxu0 0.0
        %3533 = vmatpush1.msra.mxu0 0.0
        %3534 = vmatprep.subr.mxu0 0.0
        %3535 = vmatpush1.msra.mxu0 0.0
        %3536 = vmatprep.subr.mxu0 0.0
        %3537 = vmatpush1.msra.mxu0 0.0
        %3538 = vmatprep.subr.mxu0 0.0
        %3539 = vmatpush1.msra.mxu0 0.0
        %3540 = vmatprep.subr.mxu0 0.0
        %3541 = vmatpush1.msra.mxu0 0.0
        %3542 = vmatprep.subr.mxu0 0.0
        %3543 = vmatpush1.msra.mxu0 0.0
        %3544 = vmatprep.subr.mxu0 0.0
        %3545 = vmatpush1.msra.mxu0 0.0
        %3546 = vmatprep.subr.mxu0 0.0
        %3547 = vmatpush1.msra.mxu0 0.0
        %3548 = vmatprep.subr.mxu0 0.0
        %3549 = vmatpush1.msra.mxu0 0.0
        %3550 = vmatprep.mubr.f32.mxu0 0.0
        %3551 = vmatmul.mubr.f32.gmra.mrb[0].mxu0 %v3388
        %v3552 = vpop.f32.mrb[0].mxu0
        %v3553 = vadd.f32 0.0, %v3552
        %v3554 = vpop.f32.mrb[0].mxu0
        %3555 = vmatprep.mubr.f32.mxu0 0.0
        %3556 = vmatmul.mubr.f32.gmra.mrb[0].mxu0 %v3391
        %v3557 = vpop.f32.mrb[0].mxu0
        %v3558 = vadd.f32 0.0, %v3557
        %v3559 = vpop.f32.mrb[0].mxu0
        %3560 = vmatprep.mubr.f32.mxu0 0.0
        %3561 = vmatmul.mubr.f32.gmra.mrb[0].mxu0 %v3394
        %v3562 = vpop.f32.mrb[0].mxu0
        %v3563 = vadd.f32 0.0, %v3562
        %v3564 = vpop.f32.mrb[0].mxu0
        %3565 = vmatprep.mubr.f32.mxu0 0.0
        %3566 = vmatmul.mubr.f32.gmra.mrb[0].mxu0 %v3397
        %v3567 = vpop.f32.mrb[0].mxu0
        %v3568 = vadd.f32 0.0, %v3567
        %v3569 = vpop.f32.mrb[0].mxu0
        %3570 = vmatprep.mubr.f32.mxu0 0.0
        %3571 = vmatmul.mubr.f32.gmra.mrb[0].mxu0 %v3400
        %v3572 = vpop.f32.mrb[0].mxu0
        %v3573 = vadd.f32 0.0, %v3572
        %v3574 = vpop.f32.mrb[0].mxu0
        %3575 = vmatprep.mubr.f32.mxu0 0.0
        %3576 = vmatmul.mubr.f32.gmra.mrb[0].mxu0 %v3403
        %v3577 = vpop.f32.mrb[0].mxu0
        %v3578 = vadd.f32 0.0, %v3577
        %v3579 = vpop.f32.mrb[0].mxu0
        %3580 = vmatprep.mubr.f32.mxu0 0.0
        %3581 = vmatmul.mubr.f32.gmra.mrb[0].mxu0 %v3406
        %v3582 = vpop.f32.mrb[0].mxu0
        %v3583 = vadd.f32 0.0, %v3582
        %v3584 = vpop.f32.mrb[0].mxu0
        %3585 = vmatprep.mubr.f32.mxu0 0.0
        %3586 = vmatmul.mubr.f32.gmra.mrb[0].mxu0 %v3409
        %v3587 = vpop.f32.mrb[0].mxu0
        %v3588 = vadd.f32 0.0, %v3587
        %v3589 = vpop.f32.mrb[0].mxu0
        %3590 = vmatprep.mubr.f32.mxu0 0.0
        %3591 = vmatmul.mubr.f32.gmra.mrb[0].mxu0 %v3412
        %v3592 = vpop.f32.mrb[0].mxu0
        %v3593 = vadd.f32 0.0, %v3592
        %v3594 = vpop.f32.mrb[0].mxu0
        %3595 = vmatprep.mubr.f32.mxu0 0.0
        %3596 = vmatmul.mubr.f32.gmra.mrb[0].mxu0 %v3415
        %v3597 = vpop.f32.mrb[0].mxu0
        %v3598 = vadd.f32 0.0, %v3597
        %v3599 = vpop.f32.mrb[0].mxu0
        %3600 = vmatprep.mubr.f32.mxu0 0.0
        %3601 = vmatmul.mubr.f32.gmra.mrb[0].mxu0 %v3418
        %v3602 = vpop.f32.mrb[0].mxu0
        %v3603 = vadd.f32 0.0, %v3602
        %v3604 = vpop.f32.mrb[0].mxu0
        %3605 = vmatprep.mubr.f32.mxu0 0.0
        %3606 = vmatmul.mubr.f32.gmra.mrb[0].mxu0 %v3421
        %v3607 = vpop.f32.mrb[0].mxu0
        %v3608 = vadd.f32 0.0, %v3607
        %v3609 = vpop.f32.mrb[0].mxu0
        %3610 = vmatprep.mubr.f32.mxu0 0.0
        %3611 = vmatmul.mubr.f32.gmra.mrb[0].mxu0 %v3424
        %v3612 = vpop.f32.mrb[0].mxu0
        %v3613 = vadd.f32 0.0, %v3612
        %v3614 = vpop.f32.mrb[0].mxu0
        %3615 = vmatprep.mubr.f32.mxu0 0.0
        %3616 = vmatmul.mubr.f32.gmra.mrb[0].mxu0 %v3427
        %v3617 = vpop.f32.mrb[0].mxu0
        %v3618 = vadd.f32 0.0, %v3617
        %v3619 = vpop.f32.mrb[0].mxu0
        %3620 = vmatprep.mubr.f32.mxu0 0.0
        %3621 = vmatmul.mubr.f32.gmra.mrb[0].mxu0 %v3430
        %v3622 = vpop.f32.mrb[0].mxu0
        %v3623 = vadd.f32 0.0, %v3622
        %v3624 = vpop.f32.mrb[0].mxu0
        %3625 = vmatprep.mubr.f32.mxu0 0.0
        %3626 = vmatmul.mubr.f32.gmra.mrb[0].mxu0 %v3433
        %v3627 = vpop.f32.mrb[0].mxu0
        %v3628 = vadd.f32 0.0, %v3627
        %v3629 = vpop.f32.mrb[0].mxu0
        %3630 = vmatprep.mubr.f32.mxu0 0.0
        %3631 = vmatmul.mubr.f32.gmra.mrb[0].mxu0 %v3436
        %v3632 = vpop.f32.mrb[0].mxu0
        %v3633 = vadd.f32 0.0, %v3632
        %v3634 = vpop.f32.mrb[0].mxu0
        %3635 = vmatprep.mubr.f32.mxu0 0.0
        %3636 = vmatmul.mubr.f32.gmra.mrb[0].mxu0 %v3439
        %v3637 = vpop.f32.mrb[0].mxu0
        %v3638 = vadd.f32 0.0, %v3637
        %v3639 = vpop.f32.mrb[0].mxu0
        %3640 = vmatprep.mubr.f32.mxu0 0.0
        %3641 = vmatmul.mubr.f32.gmra.mrb[0].mxu0 %v3442
        %v3642 = vpop.f32.mrb[0].mxu0
        %v3643 = vadd.f32 0.0, %v3642
        %v3644 = vpop.f32.mrb[0].mxu0
        %3645 = vmatprep.mubr.f32.mxu0 0.0
        %3646 = vmatmul.mubr.f32.gmra.mrb[0].mxu0 %v3445
        %v3647 = vpop.f32.mrb[0].mxu0
        %v3648 = vadd.f32 0.0, %v3647
        %v3649 = vpop.f32.mrb[0].mxu0
        %3650 = vmatprep.mubr.f32.mxu0 0.0
        %3651 = vmatmul.mubr.f32.gmra.mrb[0].mxu0 %v3448
        %v3652 = vpop.f32.mrb[0].mxu0
        %v3653 = vadd.f32 0.0, %v3652
        %v3654 = vpop.f32.mrb[0].mxu0
        %3655 = vmatprep.mubr.f32.mxu0 0.0
        %3656 = vmatmul.mubr.f32.gmra.mrb[0].mxu0 %v3451
        %v3657 = vpop.f32.mrb[0].mxu0
        %v3658 = vadd.f32 0.0, %v3657
        %v3659 = vpop.f32.mrb[0].mxu0
        %3660 = vmatprep.mubr.f32.mxu0 0.0
        %3661 = vmatmul.mubr.f32.gmra.mrb[0].mxu0 %v3454
        %v3662 = vpop.f32.mrb[0].mxu0
        %v3663 = vadd.f32 0.0, %v3662
        %v3664 = vpop.f32.mrb[0].mxu0
        %3665 = vmatprep.mubr.f32.mxu0 0.0
        %3666 = vmatmul.mubr.f32.gmra.mrb[0].mxu0 %v3457
        %v3667 = vpop.f32.mrb[0].mxu0
        %v3668 = vadd.f32 0.0, %v3667
        %v3669 = vpop.f32.mrb[0].mxu0
        %3670 = vmatprep.mubr.f32.mxu0 0.0
        %3671 = vmatmul.mubr.f32.gmra.mrb[0].mxu0 %v3460
        %v3672 = vpop.f32.mrb[0].mxu0
        %v3673 = vadd.f32 0.0, %v3672
        %v3674 = vpop.f32.mrb[0].mxu0
        %3675 = vmatprep.mubr.f32.mxu0 0.0
        %3676 = vmatmul.mubr.f32.gmra.mrb[0].mxu0 %v3463
        %v3677 = vpop.f32.mrb[0].mxu0
        %v3678 = vadd.f32 0.0, %v3677
        %v3679 = vpop.f32.mrb[0].mxu0
        %3680 = vmatprep.mubr.f32.mxu0 0.0
        %3681 = vmatmul.mubr.f32.gmra.mrb[0].mxu0 %v3466
        %v3682 = vpop.f32.mrb[0].mxu0
        %v3683 = vadd.f32 0.0, %v3682
        %v3684 = vpop.f32.mrb[0].mxu0
        %3685 = vmatprep.mubr.f32.mxu0 0.0
        %3686 = vmatmul.mubr.f32.gmra.mrb[0].mxu0 %v3469
        %v3687 = vpop.f32.mrb[0].mxu0
        %v3688 = vadd.f32 0.0, %v3687
        %v3689 = vpop.f32.mrb[0].mxu0
        %3690 = vmatprep.mubr.f32.mxu0 0.0
        %3691 = vmatmul.mubr.f32.gmra.mrb[0].mxu0 %v3472
        %v3692 = vpop.f32.mrb[0].mxu0
        %v3693 = vadd.f32 0.0, %v3692
        %v3694 = vpop.f32.mrb[0].mxu0
        %3695 = vmatprep.mubr.f32.mxu0 0.0
        %3696 = vmatmul.mubr.f32.gmra.mrb[0].mxu0 %v3475
        %v3697 = vpop.f32.mrb[0].mxu0
        %v3698 = vadd.f32 0.0, %v3697
        %v3699 = vpop.f32.mrb[0].mxu0
        %3700 = vmatprep.mubr.f32.mxu0 0.0
        %3701 = vmatmul.mubr.f32.gmra.mrb[0].mxu0 %v3478
        %v3702 = vpop.f32.mrb[0].mxu0
        %v3703 = vadd.f32 0.0, %v3702
        %v3704 = vpop.f32.mrb[0].mxu0
        %3705 = vmatprep.mubr.f32.mxu0 0.0
        %3706 = vmatmul.mubr.f32.gmra.mrb[0].mxu0 %v3481
        %v3707 = vpop.f32.mrb[0].mxu0
        %v3708 = vadd.f32 0.0, %v3707
        %v3709 = vpop.f32.mrb[0].mxu0
        %3710 = vdwg.mxu0
        %v3711 = vadd.f32 %v3321, %v3553
        %v3712 = vadd.f32 %v3322, %v3558
        %v3713 = vadd.f32 %v3323, %v3563
        %v3714 = vadd.f32 %v3324, %v3568
        %v3715 = vadd.f32 %v3325, %v3573
        %v3716 = vadd.f32 %v3326, %v3578
        %v3717 = vadd.f32 %v3327, %v3583
        %v3718 = vadd.f32 %v3328, %v3588
        %v3719 = vadd.f32 %v3329, %v3593
        %v3720 = vadd.f32 %v3330, %v3598
        %v3721 = vadd.f32 %v3331, %v3603
        %v3722 = vadd.f32 %v3332, %v3608
        %v3723 = vadd.f32 %v3333, %v3613
        %v3724 = vadd.f32 %v3334, %v3618
        %v3725 = vadd.f32 %v3335, %v3623
        %v3726 = vadd.f32 %v3336, %v3628
        %v3727 = vadd.f32 %v3337, %v3633
        %v3728 = vadd.f32 %v3338, %v3638
        %v3729 = vadd.f32 %v3339, %v3643
        %v3730 = vadd.f32 %v3340, %v3648
        %v3731 = vadd.f32 %v3341, %v3653
        %v3732 = vadd.f32 %v3342, %v3658
        %v3733 = vadd.f32 %v3343, %v3663
        %v3734 = vadd.f32 %v3344, %v3668
        %v3735 = vadd.f32 %v3345, %v3673
        %v3736 = vadd.f32 %v3346, %v3678
        %v3737 = vadd.f32 %v3347, %v3683
        %v3738 = vadd.f32 %v3348, %v3688
        %v3739 = vadd.f32 %v3349, %v3693
        %v3740 = vadd.f32 %v3350, %v3698
        %v3741 = vadd.f32 %v3351, %v3703
        %v3742 = vadd.f32 %v3352, %v3708
        %3775 = vrot.lane.b32.xlu0 %v3711, 124
        %v3776 = vpop.permute.xlu0 %3775
        %3777 = vrot.lane.b32.xlu0 %v3712, 124
        %v3778 = vpop.permute.xlu0 %3777
        %3779 = vrot.lane.b32.xlu0 %v3713, 124
        %v3780 = vpop.permute.xlu0 %3779
        %3781 = vrot.lane.b32.xlu0 %v3714, 124
        %v3782 = vpop.permute.xlu0 %3781
        %3783 = vrot.lane.b32.xlu0 %v3715, 124
        %v3784 = vpop.permute.xlu0 %3783
        %3785 = vrot.lane.b32.xlu0 %v3716, 124
        %v3786 = vpop.permute.xlu0 %3785
        %3787 = vrot.lane.b32.xlu0 %v3717, 124
        %v3788 = vpop.permute.xlu0 %3787
        %3789 = vrot.lane.b32.xlu0 %v3718, 124
        %v3790 = vpop.permute.xlu0 %3789
        %3791 = vrot.lane.b32.xlu0 %v3719, 124
        %v3792 = vpop.permute.xlu0 %3791
        %3793 = vrot.lane.b32.xlu0 %v3720, 124
        %v3794 = vpop.permute.xlu0 %3793
        %3795 = vrot.lane.b32.xlu0 %v3721, 124
        %v3796 = vpop.permute.xlu0 %3795
        %3797 = vrot.lane.b32.xlu0 %v3722, 124
        %v3798 = vpop.permute.xlu0 %3797
        %3799 = vrot.lane.b32.xlu0 %v3723, 124
        %v3800 = vpop.permute.xlu0 %3799
        %3801 = vrot.lane.b32.xlu0 %v3724, 124
        %v3802 = vpop.permute.xlu0 %3801
        %3803 = vrot.lane.b32.xlu0 %v3725, 124
        %v3804 = vpop.permute.xlu0 %3803
        %3805 = vrot.lane.b32.xlu0 %v3726, 124
        %v3806 = vpop.permute.xlu0 %3805
        %3807 = vrot.lane.b32.xlu0 %v3727, 124
        %v3808 = vpop.permute.xlu0 %3807
        %3809 = vrot.lane.b32.xlu0 %v3728, 124
        %v3810 = vpop.permute.xlu0 %3809
        %3811 = vrot.lane.b32.xlu0 %v3729, 124
        %v3812 = vpop.permute.xlu0 %3811
        %3813 = vrot.lane.b32.xlu0 %v3730, 124
        %v3814 = vpop.permute.xlu0 %3813
        %3815 = vrot.lane.b32.xlu0 %v3731, 124
        %v3816 = vpop.permute.xlu0 %3815
        %3817 = vrot.lane.b32.xlu0 %v3732, 124
        %v3818 = vpop.permute.xlu0 %3817
        %3819 = vrot.lane.b32.xlu0 %v3733, 124
        %v3820 = vpop.permute.xlu0 %3819
        %3821 = vrot.lane.b32.xlu0 %v3734, 124
        %v3822 = vpop.permute.xlu0 %3821
        %3823 = vrot.lane.b32.xlu0 %v3735, 124
        %v3824 = vpop.permute.xlu0 %3823
        %3825 = vrot.lane.b32.xlu0 %v3736, 124
        %v3826 = vpop.permute.xlu0 %3825
        %3827 = vrot.lane.b32.xlu0 %v3737, 124
        %v3828 = vpop.permute.xlu0 %3827
        %3829 = vrot.lane.b32.xlu0 %v3738, 124
        %v3830 = vpop.permute.xlu0 %3829
        %3831 = vrot.lane.b32.xlu0 %v3739, 124
        %v3832 = vpop.permute.xlu0 %3831
        %3833 = vrot.lane.b32.xlu0 %v3740, 124
        %v3834 = vpop.permute.xlu0 %3833
        %3835 = vrot.lane.b32.xlu0 %v3741, 124
        %v3836 = vpop.permute.xlu0 %3835
        %3837 = vrot.lane.b32.xlu0 %v3742, 124
        %v3838 = vpop.permute.xlu0 %3837
        %v3839 = vsel %vm263, %v3711, 0
        %v3841 = vsel %vm263, %v3712, 0
        %v3843 = vsel %vm263, %v3713, 0
        %v3845 = vsel %vm263, %v3714, 0
        %v3847 = vsel %vm263, %v3715, 0
        %v3849 = vsel %vm263, %v3716, 0
        %v3851 = vsel %vm263, %v3717, 0
        %v3853 = vsel %vm263, %v3718, 0
        %v3855 = vsel %vm263, %v3719, 0
        %v3857 = vsel %vm263, %v3720, 0
        %v3859 = vsel %vm263, %v3721, 0
        %v3861 = vsel %vm263, %v3722, 0
        %v3863 = vsel %vm263, %v3723, 0
        %v3865 = vsel %vm263, %v3724, 0
        %v3867 = vsel %vm263, %v3725, 0
        %v3869 = vsel %vm263, %v3726, 0
        %v3871 = vsel %vm263, %v3727, 0
        %v3873 = vsel %vm263, %v3728, 0
        %v3875 = vsel %vm263, %v3729, 0
        %v3877 = vsel %vm263, %v3730, 0
        %v3879 = vsel %vm263, %v3731, 0
        %v3881 = vsel %vm263, %v3732, 0
        %v3883 = vsel %vm263, %v3733, 0
        %v3885 = vsel %vm263, %v3734, 0
        %v3887 = vsel %vm263, %v3735, 0
        %v3889 = vsel %vm263, %v3736, 0
        %v3891 = vsel %vm263, %v3737, 0
        %v3893 = vsel %vm263, %v3738, 0
        %v3895 = vsel %vm263, %v3739, 0
        %v3897 = vsel %vm263, %v3740, 0
        %v3899 = vsel %vm263, %v3741, 0
        %v3901 = vsel %vm263, %v3742, 0
        %v3903 = vsel %vm263, %v3776, 0
        %v3905 = vsel %vm263, %v3778, 0
        %v3907 = vsel %vm263, %v3780, 0
        %v3909 = vsel %vm263, %v3782, 0
        %v3911 = vsel %vm263, %v3784, 0
        %v3913 = vsel %vm263, %v3786, 0
        %v3915 = vsel %vm263, %v3788, 0
        %v3917 = vsel %vm263, %v3790, 0
        %v3919 = vsel %vm263, %v3792, 0
        %v3921 = vsel %vm263, %v3794, 0
        %v3923 = vsel %vm263, %v3796, 0
        %v3925 = vsel %vm263, %v3798, 0
        %v3927 = vsel %vm263, %v3800, 0
        %v3929 = vsel %vm263, %v3802, 0
        %v3931 = vsel %vm263, %v3804, 0
        %v3933 = vsel %vm263, %v3806, 0
        %v3935 = vsel %vm263, %v3808, 0
        %v3937 = vsel %vm263, %v3810, 0
        %v3939 = vsel %vm263, %v3812, 0
        %v3941 = vsel %vm263, %v3814, 0
        %v3943 = vsel %vm263, %v3816, 0
        %v3945 = vsel %vm263, %v3818, 0
        %v3947 = vsel %vm263, %v3820, 0
        %v3949 = vsel %vm263, %v3822, 0
        %v3951 = vsel %vm263, %v3824, 0
        %v3953 = vsel %vm263, %v3826, 0
        %v3955 = vsel %vm263, %v3828, 0
        %v3957 = vsel %vm263, %v3830, 0
        %v3959 = vsel %vm263, %v3832, 0
        %v3961 = vsel %vm263, %v3834, 0
        %v3963 = vsel %vm263, %v3836, 0
        %v3965 = vsel %vm263, %v3838, 0
        %3967 = vmatprep.subr.mxu0 0.0
        %3968 = vmatpush1.xpose.msra.mxu0 %v3903
        %3969 = vmatprep.subr.mxu0 0.0
        %3970 = vmatpush1.xpose.msra.mxu0 %v3905
        %3971 = vmatprep.subr.mxu0 0.0
        %3972 = vmatpush1.xpose.msra.mxu0 %v3907
        %3973 = vmatprep.subr.mxu0 0.0
        %3974 = vmatpush1.xpose.msra.mxu0 %v3909
        %3975 = vmatprep.subr.mxu0 0.0
        %3976 = vmatpush1.xpose.msra.mxu0 %v3911
        %3977 = vmatprep.subr.mxu0 0.0
        %3978 = vmatpush1.xpose.msra.mxu0 %v3913
        %3979 = vmatprep.subr.mxu0 0.0
        %3980 = vmatpush1.xpose.msra.mxu0 %v3915
        %3981 = vmatprep.subr.mxu0 0.0
        %3982 = vmatpush1.xpose.msra.mxu0 %v3917
        %3983 = vmatprep.subr.mxu0 0.0
        %3984 = vmatpush1.xpose.msra.mxu0 %v3919
        %3985 = vmatprep.subr.mxu0 0.0
        %3986 = vmatpush1.xpose.msra.mxu0 %v3921
        %3987 = vmatprep.subr.mxu0 0.0
        %3988 = vmatpush1.xpose.msra.mxu0 %v3923
        %3989 = vmatprep.subr.mxu0 0.0
        %3990 = vmatpush1.xpose.msra.mxu0 %v3925
        %3991 = vmatprep.subr.mxu0 0.0
        %3992 = vmatpush1.xpose.msra.mxu0 %v3927
        %3993 = vmatprep.subr.mxu0 0.0
        %3994 = vmatpush1.xpose.msra.mxu0 %v3929
        %3995 = vmatprep.subr.mxu0 0.0
        %3996 = vmatpush1.xpose.msra.mxu0 %v3931
        %3997 = vmatprep.subr.mxu0 0.0
        %3998 = vmatpush1.xpose.msra.mxu0 %v3933
        %3999 = vmatprep.subr.mxu0 0.0
        %4000 = vmatpush1.xpose.msra.mxu0 %v3935
        %4001 = vmatprep.subr.mxu0 0.0
        %4002 = vmatpush1.xpose.msra.mxu0 %v3937
        %4003 = vmatprep.subr.mxu0 0.0
        %4004 = vmatpush1.xpose.msra.mxu0 %v3939
        %4005 = vmatprep.subr.mxu0 0.0
        %4006 = vmatpush1.xpose.msra.mxu0 %v3941
        %4007 = vmatprep.subr.mxu0 0.0
        %4008 = vmatpush1.xpose.msra.mxu0 %v3943
        %4009 = vmatprep.subr.mxu0 0.0
        %4010 = vmatpush1.xpose.msra.mxu0 %v3945
        %4011 = vmatprep.subr.mxu0 0.0
        %4012 = vmatpush1.xpose.msra.mxu0 %v3947
        %4013 = vmatprep.subr.mxu0 0.0
        %4014 = vmatpush1.xpose.msra.mxu0 %v3949
        %4015 = vmatprep.subr.mxu0 0.0
        %4016 = vmatpush1.xpose.msra.mxu0 %v3951
        %4017 = vmatprep.subr.mxu0 0.0
        %4018 = vmatpush1.xpose.msra.mxu0 %v3953
        %4019 = vmatprep.subr.mxu0 0.0
        %4020 = vmatpush1.xpose.msra.mxu0 %v3955
        %4021 = vmatprep.subr.mxu0 0.0
        %4022 = vmatpush1.xpose.msra.mxu0 %v3957
        %4023 = vmatprep.subr.mxu0 0.0
        %4024 = vmatpush1.xpose.msra.mxu0 %v3959
        %4025 = vmatprep.subr.mxu0 0.0
        %4026 = vmatpush1.xpose.msra.mxu0 %v3961
        %4027 = vmatprep.subr.mxu0 0.0
        %4028 = vmatpush1.xpose.msra.mxu0 %v3963
        %4029 = vmatprep.subr.mxu0 0.0
        %4030 = vmatpush1.xpose.msra.mxu0 %v3965
        %4031 = vmatprep.mubr.f32.mxu0 0.0
        %4032 = vmatmul.mubr.f32.gmra.mrb[0].mxu0 %v3839
        %v4033 = vpop.f32.mrb[0].mxu0
        %v4034 = vadd.f32 0.0, %v4033
        %v4035 = vpop.f32.mrb[0].mxu0
        %v4036 = vadd.f32 0.0, %v4035
        %4037 = vmatprep.mubr.f32.mxu0 0.0
        %4038 = vmatmul.mubr.f32.gmra.mrb[0].mxu0 %v3841
        %v4039 = vpop.f32.mrb[0].mxu0
        %v4040 = vadd.f32 0.0, %v4039
        %v4041 = vpop.f32.mrb[0].mxu0
        %v4042 = vadd.f32 0.0, %v4041
        %4043 = vmatprep.mubr.f32.mxu0 0.0
        %4044 = vmatmul.mubr.f32.gmra.mrb[0].mxu0 %v3843
        %v4045 = vpop.f32.mrb[0].mxu0
        %v4046 = vadd.f32 0.0, %v4045
        %v4047 = vpop.f32.mrb[0].mxu0
        %v4048 = vadd.f32 0.0, %v4047
        %4049 = vmatprep.mubr.f32.mxu0 0.0
        %4050 = vmatmul.mubr.f32.gmra.mrb[0].mxu0 %v3845
        %v4051 = vpop.f32.mrb[0].mxu0
        %v4052 = vadd.f32 0.0, %v4051
        %v4053 = vpop.f32.mrb[0].mxu0
        %v4054 = vadd.f32 0.0, %v4053
        %4055 = vmatprep.mubr.f32.mxu0 0.0
        %4056 = vmatmul.mubr.f32.gmra.mrb[0].mxu0 %v3847
        %v4057 = vpop.f32.mrb[0].mxu0
        %v4058 = vadd.f32 0.0, %v4057
        %v4059 = vpop.f32.mrb[0].mxu0
        %v4060 = vadd.f32 0.0, %v4059
        %4061 = vmatprep.mubr.f32.mxu0 0.0
        %4062 = vmatmul.mubr.f32.gmra.mrb[0].mxu0 %v3849
        %v4063 = vpop.f32.mrb[0].mxu0
        %v4064 = vadd.f32 0.0, %v4063
        %v4065 = vpop.f32.mrb[0].mxu0
        %v4066 = vadd.f32 0.0, %v4065
        %4067 = vmatprep.mubr.f32.mxu0 0.0
        %4068 = vmatmul.mubr.f32.gmra.mrb[0].mxu0 %v3851
        %v4069 = vpop.f32.mrb[0].mxu0
        %v4070 = vadd.f32 0.0, %v4069
        %v4071 = vpop.f32.mrb[0].mxu0
        %v4072 = vadd.f32 0.0, %v4071
        %4073 = vmatprep.mubr.f32.mxu0 0.0
        %4074 = vmatmul.mubr.f32.gmra.mrb[0].mxu0 %v3853
        %v4075 = vpop.f32.mrb[0].mxu0
        %v4076 = vadd.f32 0.0, %v4075
        %v4077 = vpop.f32.mrb[0].mxu0
        %v4078 = vadd.f32 0.0, %v4077
        %4079 = vmatprep.mubr.f32.mxu0 0.0
        %4080 = vmatmul.mubr.f32.gmra.mrb[0].mxu0 %v3855
        %v4081 = vpop.f32.mrb[0].mxu0
        %v4082 = vadd.f32 0.0, %v4081
        %v4083 = vpop.f32.mrb[0].mxu0
        %v4084 = vadd.f32 0.0, %v4083
        %4085 = vmatprep.mubr.f32.mxu0 0.0
        %4086 = vmatmul.mubr.f32.gmra.mrb[0].mxu0 %v3857
        %v4087 = vpop.f32.mrb[0].mxu0
        %v4088 = vadd.f32 0.0, %v4087
        %v4089 = vpop.f32.mrb[0].mxu0
        %v4090 = vadd.f32 0.0, %v4089
        %4091 = vmatprep.mubr.f32.mxu0 0.0
        %4092 = vmatmul.mubr.f32.gmra.mrb[0].mxu0 %v3859
        %v4093 = vpop.f32.mrb[0].mxu0
        %v4094 = vadd.f32 0.0, %v4093
        %v4095 = vpop.f32.mrb[0].mxu0
        %v4096 = vadd.f32 0.0, %v4095
        %4097 = vmatprep.mubr.f32.mxu0 0.0
        %4098 = vmatmul.mubr.f32.gmra.mrb[0].mxu0 %v3861
        %v4099 = vpop.f32.mrb[0].mxu0
        %v4100 = vadd.f32 0.0, %v4099
        %v4101 = vpop.f32.mrb[0].mxu0
        %v4102 = vadd.f32 0.0, %v4101
        %4103 = vmatprep.mubr.f32.mxu0 0.0
        %4104 = vmatmul.mubr.f32.gmra.mrb[0].mxu0 %v3863
        %v4105 = vpop.f32.mrb[0].mxu0
        %v4106 = vadd.f32 0.0, %v4105
        %v4107 = vpop.f32.mrb[0].mxu0
        %v4108 = vadd.f32 0.0, %v4107
        %4109 = vmatprep.mubr.f32.mxu0 0.0
        %4110 = vmatmul.mubr.f32.gmra.mrb[0].mxu0 %v3865
        %v4111 = vpop.f32.mrb[0].mxu0
        %v4112 = vadd.f32 0.0, %v4111
        %v4113 = vpop.f32.mrb[0].mxu0
        %v4114 = vadd.f32 0.0, %v4113
        %4115 = vmatprep.mubr.f32.mxu0 0.0
        %4116 = vmatmul.mubr.f32.gmra.mrb[0].mxu0 %v3867
        %v4117 = vpop.f32.mrb[0].mxu0
        %v4118 = vadd.f32 0.0, %v4117
        %v4119 = vpop.f32.mrb[0].mxu0
        %v4120 = vadd.f32 0.0, %v4119
        %4121 = vmatprep.mubr.f32.mxu0 0.0
        %4122 = vmatmul.mubr.f32.gmra.mrb[0].mxu0 %v3869
        %v4123 = vpop.f32.mrb[0].mxu0
        %v4124 = vadd.f32 0.0, %v4123
        %v4125 = vpop.f32.mrb[0].mxu0
        %v4126 = vadd.f32 0.0, %v4125
        %4127 = vmatprep.mubr.f32.mxu0 0.0
        %4128 = vmatmul.mubr.f32.gmra.mrb[0].mxu0 %v3871
        %v4129 = vpop.f32.mrb[0].mxu0
        %v4130 = vadd.f32 0.0, %v4129
        %v4131 = vpop.f32.mrb[0].mxu0
        %v4132 = vadd.f32 0.0, %v4131
        %4133 = vmatprep.mubr.f32.mxu0 0.0
        %4134 = vmatmul.mubr.f32.gmra.mrb[0].mxu0 %v3873
        %v4135 = vpop.f32.mrb[0].mxu0
        %v4136 = vadd.f32 0.0, %v4135
        %v4137 = vpop.f32.mrb[0].mxu0
        %v4138 = vadd.f32 0.0, %v4137
        %4139 = vmatprep.mubr.f32.mxu0 0.0
        %4140 = vmatmul.mubr.f32.gmra.mrb[0].mxu0 %v3875
        %v4141 = vpop.f32.mrb[0].mxu0
        %v4142 = vadd.f32 0.0, %v4141
        %v4143 = vpop.f32.mrb[0].mxu0
        %v4144 = vadd.f32 0.0, %v4143
        %4145 = vmatprep.mubr.f32.mxu0 0.0
        %4146 = vmatmul.mubr.f32.gmra.mrb[0].mxu0 %v3877
        %v4147 = vpop.f32.mrb[0].mxu0
        %v4148 = vadd.f32 0.0, %v4147
        %v4149 = vpop.f32.mrb[0].mxu0
        %v4150 = vadd.f32 0.0, %v4149
        %4151 = vmatprep.mubr.f32.mxu0 0.0
        %4152 = vmatmul.mubr.f32.gmra.mrb[0].mxu0 %v3879
        %v4153 = vpop.f32.mrb[0].mxu0
        %v4154 = vadd.f32 0.0, %v4153
        %v4155 = vpop.f32.mrb[0].mxu0
        %v4156 = vadd.f32 0.0, %v4155
        %4157 = vmatprep.mubr.f32.mxu0 0.0
        %4158 = vmatmul.mubr.f32.gmra.mrb[0].mxu0 %v3881
        %v4159 = vpop.f32.mrb[0].mxu0
        %v4160 = vadd.f32 0.0, %v4159
        %v4161 = vpop.f32.mrb[0].mxu0
        %v4162 = vadd.f32 0.0, %v4161
        %4163 = vmatprep.mubr.f32.mxu0 0.0
        %4164 = vmatmul.mubr.f32.gmra.mrb[0].mxu0 %v3883
        %v4165 = vpop.f32.mrb[0].mxu0
        %v4166 = vadd.f32 0.0, %v4165
        %v4167 = vpop.f32.mrb[0].mxu0
        %v4168 = vadd.f32 0.0, %v4167
        %4169 = vmatprep.mubr.f32.mxu0 0.0
        %4170 = vmatmul.mubr.f32.gmra.mrb[0].mxu0 %v3885
        %v4171 = vpop.f32.mrb[0].mxu0
        %v4172 = vadd.f32 0.0, %v4171
        %v4173 = vpop.f32.mrb[0].mxu0
        %v4174 = vadd.f32 0.0, %v4173
        %4175 = vmatprep.mubr.f32.mxu0 0.0
        %4176 = vmatmul.mubr.f32.gmra.mrb[0].mxu0 %v3887
        %v4177 = vpop.f32.mrb[0].mxu0
        %v4178 = vadd.f32 0.0, %v4177
        %v4179 = vpop.f32.mrb[0].mxu0
        %v4180 = vadd.f32 0.0, %v4179
        %4181 = vmatprep.mubr.f32.mxu0 0.0
        %4182 = vmatmul.mubr.f32.gmra.mrb[0].mxu0 %v3889
        %v4183 = vpop.f32.mrb[0].mxu0
        %v4184 = vadd.f32 0.0, %v4183
        %v4185 = vpop.f32.mrb[0].mxu0
        %v4186 = vadd.f32 0.0, %v4185
        %4187 = vmatprep.mubr.f32.mxu0 0.0
        %4188 = vmatmul.mubr.f32.gmra.mrb[0].mxu0 %v3891
        %v4189 = vpop.f32.mrb[0].mxu0
        %v4190 = vadd.f32 0.0, %v4189
        %v4191 = vpop.f32.mrb[0].mxu0
        %v4192 = vadd.f32 0.0, %v4191
        %4193 = vmatprep.mubr.f32.mxu0 0.0
        %4194 = vmatmul.mubr.f32.gmra.mrb[0].mxu0 %v3893
        %v4195 = vpop.f32.mrb[0].mxu0
        %v4196 = vadd.f32 0.0, %v4195
        %v4197 = vpop.f32.mrb[0].mxu0
        %v4198 = vadd.f32 0.0, %v4197
        %4199 = vmatprep.mubr.f32.mxu0 0.0
        %4200 = vmatmul.mubr.f32.gmra.mrb[0].mxu0 %v3895
        %v4201 = vpop.f32.mrb[0].mxu0
        %v4202 = vadd.f32 0.0, %v4201
        %v4203 = vpop.f32.mrb[0].mxu0
        %v4204 = vadd.f32 0.0, %v4203
        %4205 = vmatprep.mubr.f32.mxu0 0.0
        %4206 = vmatmul.mubr.f32.gmra.mrb[0].mxu0 %v3897
        %v4207 = vpop.f32.mrb[0].mxu0
        %v4208 = vadd.f32 0.0, %v4207
        %v4209 = vpop.f32.mrb[0].mxu0
        %v4210 = vadd.f32 0.0, %v4209
        %4211 = vmatprep.mubr.f32.mxu0 0.0
        %4212 = vmatmul.mubr.f32.gmra.mrb[0].mxu0 %v3899
        %v4213 = vpop.f32.mrb[0].mxu0
        %v4214 = vadd.f32 0.0, %v4213
        %v4215 = vpop.f32.mrb[0].mxu0
        %v4216 = vadd.f32 0.0, %v4215
        %4217 = vmatprep.mubr.f32.mxu0 0.0
        %4218 = vmatmul.mubr.f32.gmra.mrb[0].mxu0 %v3901
        %v4219 = vpop.f32.mrb[0].mxu0
        %v4220 = vadd.f32 0.0, %v4219
        %v4221 = vpop.f32.mrb[0].mxu0
        %v4222 = vadd.f32 0.0, %v4221
        %4223 = vdwg.mxu0
        %v4224 = vmax.f32 %v4034, %v4036
        %4225 = vmax.xlane.f32.xlu0 %v4224
        %v4226 = vpop.xlane.xlu0 %4225
        %v4227 = vmax.f32 %v4040, %v4042
        %4228 = vmax.xlane.f32.xlu0 %v4227
        %v4229 = vpop.xlane.xlu0 %4228
        %v4230 = vmax.f32 %v4046, %v4048
        %4231 = vmax.xlane.f32.xlu0 %v4230
        %v4232 = vpop.xlane.xlu0 %4231
        %v4233 = vmax.f32 %v4052, %v4054
        %4234 = vmax.xlane.f32.xlu0 %v4233
        %v4235 = vpop.xlane.xlu0 %4234
        %v4236 = vmax.f32 %v4058, %v4060
        %4237 = vmax.xlane.f32.xlu0 %v4236
        %v4238 = vpop.xlane.xlu0 %4237
        %v4239 = vmax.f32 %v4064, %v4066
        %4240 = vmax.xlane.f32.xlu0 %v4239
        %v4241 = vpop.xlane.xlu0 %4240
        %v4242 = vmax.f32 %v4070, %v4072
        %4243 = vmax.xlane.f32.xlu0 %v4242
        %v4244 = vpop.xlane.xlu0 %4243
        %v4245 = vmax.f32 %v4076, %v4078
        %4246 = vmax.xlane.f32.xlu0 %v4245
        %v4247 = vpop.xlane.xlu0 %4246
        %v4248 = vmax.f32 %v4082, %v4084
        %4249 = vmax.xlane.f32.xlu0 %v4248
        %v4250 = vpop.xlane.xlu0 %4249
        %v4251 = vmax.f32 %v4088, %v4090
        %4252 = vmax.xlane.f32.xlu0 %v4251
        %v4253 = vpop.xlane.xlu0 %4252
        %v4254 = vmax.f32 %v4094, %v4096
        %4255 = vmax.xlane.f32.xlu0 %v4254
        %v4256 = vpop.xlane.xlu0 %4255
        %v4257 = vmax.f32 %v4100, %v4102
        %4258 = vmax.xlane.f32.xlu0 %v4257
        %v4259 = vpop.xlane.xlu0 %4258
        %v4260 = vmax.f32 %v4106, %v4108
        %4261 = vmax.xlane.f32.xlu0 %v4260
        %v4262 = vpop.xlane.xlu0 %4261
        %v4263 = vmax.f32 %v4112, %v4114
        %4264 = vmax.xlane.f32.xlu0 %v4263
        %v4265 = vpop.xlane.xlu0 %4264
        %v4266 = vmax.f32 %v4118, %v4120
        %4267 = vmax.xlane.f32.xlu0 %v4266
        %v4268 = vpop.xlane.xlu0 %4267
        %v4269 = vmax.f32 %v4124, %v4126
        %4270 = vmax.xlane.f32.xlu0 %v4269
        %v4271 = vpop.xlane.xlu0 %4270
        %v4272 = vmax.f32 %v4130, %v4132
        %4273 = vmax.xlane.f32.xlu0 %v4272
        %v4274 = vpop.xlane.xlu0 %4273
        %v4275 = vmax.f32 %v4136, %v4138
        %4276 = vmax.xlane.f32.xlu0 %v4275
        %v4277 = vpop.xlane.xlu0 %4276
        %v4278 = vmax.f32 %v4142, %v4144
        %4279 = vmax.xlane.f32.xlu0 %v4278
        %v4280 = vpop.xlane.xlu0 %4279
        %v4281 = vmax.f32 %v4148, %v4150
        %4282 = vmax.xlane.f32.xlu0 %v4281
        %v4283 = vpop.xlane.xlu0 %4282
        %v4284 = vmax.f32 %v4154, %v4156
        %4285 = vmax.xlane.f32.xlu0 %v4284
        %v4286 = vpop.xlane.xlu0 %4285
        %v4287 = vmax.f32 %v4160, %v4162
        %4288 = vmax.xlane.f32.xlu0 %v4287
        %v4289 = vpop.xlane.xlu0 %4288
        %v4290 = vmax.f32 %v4166, %v4168
        %4291 = vmax.xlane.f32.xlu0 %v4290
        %v4292 = vpop.xlane.xlu0 %4291
        %v4293 = vmax.f32 %v4172, %v4174
        %4294 = vmax.xlane.f32.xlu0 %v4293
        %v4295 = vpop.xlane.xlu0 %4294
        %v4296 = vmax.f32 %v4178, %v4180
        %4297 = vmax.xlane.f32.xlu0 %v4296
        %v4298 = vpop.xlane.xlu0 %4297
        %v4299 = vmax.f32 %v4184, %v4186
        %4300 = vmax.xlane.f32.xlu0 %v4299
        %v4301 = vpop.xlane.xlu0 %4300
        %v4302 = vmax.f32 %v4190, %v4192
        %4303 = vmax.xlane.f32.xlu0 %v4302
        %v4304 = vpop.xlane.xlu0 %4303
        %v4305 = vmax.f32 %v4196, %v4198
        %4306 = vmax.xlane.f32.xlu0 %v4305
        %v4307 = vpop.xlane.xlu0 %4306
        %v4308 = vmax.f32 %v4202, %v4204
        %4309 = vmax.xlane.f32.xlu0 %v4308
        %v4310 = vpop.xlane.xlu0 %4309
        %v4311 = vmax.f32 %v4208, %v4210
        %4312 = vmax.xlane.f32.xlu0 %v4311
        %v4313 = vpop.xlane.xlu0 %4312
        %v4314 = vmax.f32 %v4214, %v4216
        %4315 = vmax.xlane.f32.xlu0 %v4314
        %v4316 = vpop.xlane.xlu0 %4315
        %v4317 = vmax.f32 %v4220, %v4222
        %4318 = vmax.xlane.f32.xlu0 %v4317
        %v4319 = vpop.xlane.xlu0 %4318
        %v4320 = vsub.f32 %v4034, %v4226
        %v4321 = vsub.f32 %v4036, %v4226
        %v4322 = vsub.f32 %v4040, %v4229
        %v4323 = vsub.f32 %v4042, %v4229
        %v4324 = vsub.f32 %v4046, %v4232
        %v4325 = vsub.f32 %v4048, %v4232
        %v4326 = vsub.f32 %v4052, %v4235
        %v4327 = vsub.f32 %v4054, %v4235
        %v4328 = vsub.f32 %v4058, %v4238
        %v4329 = vsub.f32 %v4060, %v4238
        %v4330 = vsub.f32 %v4064, %v4241
        %v4331 = vsub.f32 %v4066, %v4241
        %v4332 = vsub.f32 %v4070, %v4244
        %v4333 = vsub.f32 %v4072, %v4244
        %v4334 = vsub.f32 %v4076, %v4247
        %v4335 = vsub.f32 %v4078, %v4247
        %v4336 = vsub.f32 %v4082, %v4250
        %v4337 = vsub.f32 %v4084, %v4250
        %v4338 = vsub.f32 %v4088, %v4253
        %v4339 = vsub.f32 %v4090, %v4253
        %v4340 = vsub.f32 %v4094, %v4256
        %v4341 = vsub.f32 %v4096, %v4256
        %v4342 = vsub.f32 %v4100, %v4259
        %v4343 = vsub.f32 %v4102, %v4259
        %v4344 = vsub.f32 %v4106, %v4262
        %v4345 = vsub.f32 %v4108, %v4262
        %v4346 = vsub.f32 %v4112, %v4265
        %v4347 = vsub.f32 %v4114, %v4265
        %v4348 = vsub.f32 %v4118, %v4268
        %v4349 = vsub.f32 %v4120, %v4268
        %v4350 = vsub.f32 %v4124, %v4271
        %v4351 = vsub.f32 %v4126, %v4271
        %v4352 = vsub.f32 %v4130, %v4274
        %v4353 = vsub.f32 %v4132, %v4274
        %v4354 = vsub.f32 %v4136, %v4277
        %v4355 = vsub.f32 %v4138, %v4277
        %v4356 = vsub.f32 %v4142, %v4280
        %v4357 = vsub.f32 %v4144, %v4280
        %v4358 = vsub.f32 %v4148, %v4283
        %v4359 = vsub.f32 %v4150, %v4283
        %v4360 = vsub.f32 %v4154, %v4286
        %v4361 = vsub.f32 %v4156, %v4286
        %v4362 = vsub.f32 %v4160, %v4289
        %v4363 = vsub.f32 %v4162, %v4289
        %v4364 = vsub.f32 %v4166, %v4292
        %v4365 = vsub.f32 %v4168, %v4292
        %v4366 = vsub.f32 %v4172, %v4295
        %v4367 = vsub.f32 %v4174, %v4295
        %v4368 = vsub.f32 %v4178, %v4298
        %v4369 = vsub.f32 %v4180, %v4298
        %v4370 = vsub.f32 %v4184, %v4301
        %v4371 = vsub.f32 %v4186, %v4301
        %v4372 = vsub.f32 %v4190, %v4304
        %v4373 = vsub.f32 %v4192, %v4304
        %v4374 = vsub.f32 %v4196, %v4307
        %v4375 = vsub.f32 %v4198, %v4307
        %v4376 = vsub.f32 %v4202, %v4310
        %v4377 = vsub.f32 %v4204, %v4310
        %v4378 = vsub.f32 %v4208, %v4313
        %v4379 = vsub.f32 %v4210, %v4313
        %v4380 = vsub.f32 %v4214, %v4316
        %v4381 = vsub.f32 %v4216, %v4316
        %v4382 = vsub.f32 %v4220, %v4319
        %v4383 = vsub.f32 %v4222, %v4319
        %v4384 = vmul.f32 %v4320, 1.442695
        %v4385 = vpow.pop %v4384
        %v4386 = vmul.f32 %v4321, 1.442695
        %v4387 = vpow.pop %v4386
        %v4388 = vmul.f32 %v4322, 1.442695
        %v4389 = vpow.pop %v4388
        %v4390 = vmul.f32 %v4323, 1.442695
        %v4391 = vpow.pop %v4390
        %v4392 = vmul.f32 %v4324, 1.442695
        %v4393 = vpow.pop %v4392
        %v4394 = vmul.f32 %v4325, 1.442695
        %v4395 = vpow.pop %v4394
        %v4396 = vmul.f32 %v4326, 1.442695
        %v4397 = vpow.pop %v4396
        %v4398 = vmul.f32 %v4327, 1.442695
        %v4399 = vpow.pop %v4398
        %v4400 = vmul.f32 %v4328, 1.442695
        %v4401 = vpow.pop %v4400
        %v4402 = vmul.f32 %v4329, 1.442695
        %v4403 = vpow.pop %v4402
        %v4404 = vmul.f32 %v4330, 1.442695
        %v4405 = vpow.pop %v4404
        %v4406 = vmul.f32 %v4331, 1.442695
        %v4407 = vpow.pop %v4406
        %v4408 = vmul.f32 %v4332, 1.442695
        %v4409 = vpow.pop %v4408
        %v4410 = vmul.f32 %v4333, 1.442695
        %v4411 = vpow.pop %v4410
        %v4412 = vmul.f32 %v4334, 1.442695
        %v4413 = vpow.pop %v4412
        %v4414 = vmul.f32 %v4335, 1.442695
        %v4415 = vpow.pop %v4414
        %v4416 = vmul.f32 %v4336, 1.442695
        %v4417 = vpow.pop %v4416
        %v4418 = vmul.f32 %v4337, 1.442695
        %v4419 = vpow.pop %v4418
        %v4420 = vmul.f32 %v4338, 1.442695
        %v4421 = vpow.pop %v4420
        %v4422 = vmul.f32 %v4339, 1.442695
        %v4423 = vpow.pop %v4422
        %v4424 = vmul.f32 %v4340, 1.442695
        %v4425 = vpow.pop %v4424
        %v4426 = vmul.f32 %v4341, 1.442695
        %v4427 = vpow.pop %v4426
        %v4428 = vmul.f32 %v4342, 1.442695
        %v4429 = vpow.pop %v4428
        %v4430 = vmul.f32 %v4343, 1.442695
        %v4431 = vpow.pop %v4430
        %v4432 = vmul.f32 %v4344, 1.442695
        %v4433 = vpow.pop %v4432
        %v4434 = vmul.f32 %v4345, 1.442695
        %v4435 = vpow.pop %v4434
        %v4436 = vmul.f32 %v4346, 1.442695
        %v4437 = vpow.pop %v4436
        %v4438 = vmul.f32 %v4347, 1.442695
        %v4439 = vpow.pop %v4438
        %v4440 = vmul.f32 %v4348, 1.442695
        %v4441 = vpow.pop %v4440
        %v4442 = vmul.f32 %v4349, 1.442695
        %v4443 = vpow.pop %v4442
        %v4444 = vmul.f32 %v4350, 1.442695
        %v4445 = vpow.pop %v4444
        %v4446 = vmul.f32 %v4351, 1.442695
        %v4447 = vpow.pop %v4446
        %v4448 = vmul.f32 %v4352, 1.442695
        %v4449 = vpow.pop %v4448
        %v4450 = vmul.f32 %v4353, 1.442695
        %v4451 = vpow.pop %v4450
        %v4452 = vmul.f32 %v4354, 1.442695
        %v4453 = vpow.pop %v4452
        %v4454 = vmul.f32 %v4355, 1.442695
        %v4455 = vpow.pop %v4454
        %v4456 = vmul.f32 %v4356, 1.442695
        %v4457 = vpow.pop %v4456
        %v4458 = vmul.f32 %v4357, 1.442695
        %v4459 = vpow.pop %v4458
        %v4460 = vmul.f32 %v4358, 1.442695
        %v4461 = vpow.pop %v4460
        %v4462 = vmul.f32 %v4359, 1.442695
        %v4463 = vpow.pop %v4462
        %v4464 = vmul.f32 %v4360, 1.442695
        %v4465 = vpow.pop %v4464
        %v4466 = vmul.f32 %v4361, 1.442695
        %v4467 = vpow.pop %v4466
        %v4468 = vmul.f32 %v4362, 1.442695
        %v4469 = vpow.pop %v4468
        %v4470 = vmul.f32 %v4363, 1.442695
        %v4471 = vpow.pop %v4470
        %v4472 = vmul.f32 %v4364, 1.442695
        %v4473 = vpow.pop %v4472
        %v4474 = vmul.f32 %v4365, 1.442695
        %v4475 = vpow.pop %v4474
        %v4476 = vmul.f32 %v4366, 1.442695
        %v4477 = vpow.pop %v4476
        %v4478 = vmul.f32 %v4367, 1.442695
        %v4479 = vpow.pop %v4478
        %v4480 = vmul.f32 %v4368, 1.442695
        %v4481 = vpow.pop %v4480
        %v4482 = vmul.f32 %v4369, 1.442695
        %v4483 = vpow.pop %v4482
        %v4484 = vmul.f32 %v4370, 1.442695
        %v4485 = vpow.pop %v4484
        %v4486 = vmul.f32 %v4371, 1.442695
        %v4487 = vpow.pop %v4486
        %v4488 = vmul.f32 %v4372, 1.442695
        %v4489 = vpow.pop %v4488
        %v4490 = vmul.f32 %v4373, 1.442695
        %v4491 = vpow.pop %v4490
        %v4492 = vmul.f32 %v4374, 1.442695
        %v4493 = vpow.pop %v4492
        %v4494 = vmul.f32 %v4375, 1.442695
        %v4495 = vpow.pop %v4494
        %v4496 = vmul.f32 %v4376, 1.442695
        %v4497 = vpow.pop %v4496
        %v4498 = vmul.f32 %v4377, 1.442695
        %v4499 = vpow.pop %v4498
        %v4500 = vmul.f32 %v4378, 1.442695
        %v4501 = vpow.pop %v4500
        %v4502 = vmul.f32 %v4379, 1.442695
        %v4503 = vpow.pop %v4502
        %v4504 = vmul.f32 %v4380, 1.442695
        %v4505 = vpow.pop %v4504
        %v4506 = vmul.f32 %v4381, 1.442695
        %v4507 = vpow.pop %v4506
        %v4508 = vmul.f32 %v4382, 1.442695
        %v4509 = vpow.pop %v4508
        %v4510 = vmul.f32 %v4383, 1.442695
        %v4511 = vpow.pop %v4510
        %v4512 = vadd.f32 %v4385, %v4387
        %4513 = vadd.xlane.f32.xlu0 %v4512
        %v4514 = vpop.xlane.xlu0 %4513
        %v4515 = vadd.f32 %v4389, %v4391
        %4516 = vadd.xlane.f32.xlu0 %v4515
        %v4517 = vpop.xlane.xlu0 %4516
        %v4518 = vadd.f32 %v4393, %v4395
        %4519 = vadd.xlane.f32.xlu0 %v4518
        %v4520 = vpop.xlane.xlu0 %4519
        %v4521 = vadd.f32 %v4397, %v4399
        %4522 = vadd.xlane.f32.xlu0 %v4521
        %v4523 = vpop.xlane.xlu0 %4522
        %v4524 = vadd.f32 %v4401, %v4403
        %4525 = vadd.xlane.f32.xlu0 %v4524
        %v4526 = vpop.xlane.xlu0 %4525
        %v4527 = vadd.f32 %v4405, %v4407
        %4528 = vadd.xlane.f32.xlu0 %v4527
        %v4529 = vpop.xlane.xlu0 %4528
        %v4530 = vadd.f32 %v4409, %v4411
        %4531 = vadd.xlane.f32.xlu0 %v4530
        %v4532 = vpop.xlane.xlu0 %4531
        %v4533 = vadd.f32 %v4413, %v4415
        %4534 = vadd.xlane.f32.xlu0 %v4533
        %v4535 = vpop.xlane.xlu0 %4534
        %v4536 = vadd.f32 %v4417, %v4419
        %4537 = vadd.xlane.f32.xlu0 %v4536
        %v4538 = vpop.xlane.xlu0 %4537
        %v4539 = vadd.f32 %v4421, %v4423
        %4540 = vadd.xlane.f32.xlu0 %v4539
        %v4541 = vpop.xlane.xlu0 %4540
        %v4542 = vadd.f32 %v4425, %v4427
        %4543 = vadd.xlane.f32.xlu0 %v4542
        %v4544 = vpop.xlane.xlu0 %4543
        %v4545 = vadd.f32 %v4429, %v4431
        %4546 = vadd.xlane.f32.xlu0 %v4545
        %v4547 = vpop.xlane.xlu0 %4546
        %v4548 = vadd.f32 %v4433, %v4435
        %4549 = vadd.xlane.f32.xlu0 %v4548
        %v4550 = vpop.xlane.xlu0 %4549
        %v4551 = vadd.f32 %v4437, %v4439
        %4552 = vadd.xlane.f32.xlu0 %v4551
        %v4553 = vpop.xlane.xlu0 %4552
        %v4554 = vadd.f32 %v4441, %v4443
        %4555 = vadd.xlane.f32.xlu0 %v4554
        %v4556 = vpop.xlane.xlu0 %4555
        %v4557 = vadd.f32 %v4445, %v4447
        %4558 = vadd.xlane.f32.xlu0 %v4557
        %v4559 = vpop.xlane.xlu0 %4558
        %v4560 = vadd.f32 %v4449, %v4451
        %4561 = vadd.xlane.f32.xlu0 %v4560
        %v4562 = vpop.xlane.xlu0 %4561
        %v4563 = vadd.f32 %v4453, %v4455
        %4564 = vadd.xlane.f32.xlu0 %v4563
        %v4565 = vpop.xlane.xlu0 %4564
        %v4566 = vadd.f32 %v4457, %v4459
        %4567 = vadd.xlane.f32.xlu0 %v4566
        %v4568 = vpop.xlane.xlu0 %4567
        %v4569 = vadd.f32 %v4461, %v4463
        %4570 = vadd.xlane.f32.xlu0 %v4569
        %v4571 = vpop.xlane.xlu0 %4570
        %v4572 = vadd.f32 %v4465, %v4467
        %4573 = vadd.xlane.f32.xlu0 %v4572
        %v4574 = vpop.xlane.xlu0 %4573
        %v4575 = vadd.f32 %v4469, %v4471
        %4576 = vadd.xlane.f32.xlu0 %v4575
        %v4577 = vpop.xlane.xlu0 %4576
        %v4578 = vadd.f32 %v4473, %v4475
        %4579 = vadd.xlane.f32.xlu0 %v4578
        %v4580 = vpop.xlane.xlu0 %4579
        %v4581 = vadd.f32 %v4477, %v4479
        %4582 = vadd.xlane.f32.xlu0 %v4581
        %v4583 = vpop.xlane.xlu0 %4582
        %v4584 = vadd.f32 %v4481, %v4483
        %4585 = vadd.xlane.f32.xlu0 %v4584
        %v4586 = vpop.xlane.xlu0 %4585
        %v4587 = vadd.f32 %v4485, %v4487
        %4588 = vadd.xlane.f32.xlu0 %v4587
        %v4589 = vpop.xlane.xlu0 %4588
        %v4590 = vadd.f32 %v4489, %v4491
        %4591 = vadd.xlane.f32.xlu0 %v4590
        %v4592 = vpop.xlane.xlu0 %4591
        %v4593 = vadd.f32 %v4493, %v4495
        %4594 = vadd.xlane.f32.xlu0 %v4593
        %v4595 = vpop.xlane.xlu0 %4594
        %v4596 = vadd.f32 %v4497, %v4499
        %4597 = vadd.xlane.f32.xlu0 %v4596
        %v4598 = vpop.xlane.xlu0 %4597
        %v4599 = vadd.f32 %v4501, %v4503
        %4600 = vadd.xlane.f32.xlu0 %v4599
        %v4601 = vpop.xlane.xlu0 %4600
        %v4602 = vadd.f32 %v4505, %v4507
        %4603 = vadd.xlane.f32.xlu0 %v4602
        %v4604 = vpop.xlane.xlu0 %4603
        %v4605 = vadd.f32 %v4509, %v4511
        %4606 = vadd.xlane.f32.xlu0 %v4605
        %v4607 = vpop.xlane.xlu0 %4606
        %4608 = vrot.lane.b32.xlu0 %v3711, 120
        %v4609 = vpop.permute.xlu0 %4608
        %4610 = vrot.lane.b32.xlu0 %v3712, 120
        %v4611 = vpop.permute.xlu0 %4610
        %4612 = vrot.lane.b32.xlu0 %v3713, 120
        %v4613 = vpop.permute.xlu0 %4612
        %4614 = vrot.lane.b32.xlu0 %v3714, 120
        %v4615 = vpop.permute.xlu0 %4614
        %4616 = vrot.lane.b32.xlu0 %v3715, 120
        %v4617 = vpop.permute.xlu0 %4616
        %4618 = vrot.lane.b32.xlu0 %v3716, 120
        %v4619 = vpop.permute.xlu0 %4618
        %4620 = vrot.lane.b32.xlu0 %v3717, 120
        %v4621 = vpop.permute.xlu0 %4620
        %4622 = vrot.lane.b32.xlu0 %v3718, 120
        %v4623 = vpop.permute.xlu0 %4622
        %4624 = vrot.lane.b32.xlu0 %v3719, 120
        %v4625 = vpop.permute.xlu0 %4624
        %4626 = vrot.lane.b32.xlu0 %v3720, 120
        %v4627 = vpop.permute.xlu0 %4626
        %4628 = vrot.lane.b32.xlu0 %v3721, 120
        %v4629 = vpop.permute.xlu0 %4628
        %4630 = vrot.lane.b32.xlu0 %v3722, 120
        %v4631 = vpop.permute.xlu0 %4630
        %4632 = vrot.lane.b32.xlu0 %v3723, 120
        %v4633 = vpop.permute.xlu0 %4632
        %4634 = vrot.lane.b32.xlu0 %v3724, 120
        %v4635 = vpop.permute.xlu0 %4634
        %4636 = vrot.lane.b32.xlu0 %v3725, 120
        %v4637 = vpop.permute.xlu0 %4636
        %4638 = vrot.lane.b32.xlu0 %v3726, 120
        %v4639 = vpop.permute.xlu0 %4638
        %4640 = vrot.lane.b32.xlu0 %v3727, 120
        %v4641 = vpop.permute.xlu0 %4640
        %4642 = vrot.lane.b32.xlu0 %v3728, 120
        %v4643 = vpop.permute.xlu0 %4642
        %4644 = vrot.lane.b32.xlu0 %v3729, 120
        %v4645 = vpop.permute.xlu0 %4644
        %4646 = vrot.lane.b32.xlu0 %v3730, 120
        %v4647 = vpop.permute.xlu0 %4646
        %4648 = vrot.lane.b32.xlu0 %v3731, 120
        %v4649 = vpop.permute.xlu0 %4648
        %4650 = vrot.lane.b32.xlu0 %v3732, 120
        %v4651 = vpop.permute.xlu0 %4650
        %4652 = vrot.lane.b32.xlu0 %v3733, 120
        %v4653 = vpop.permute.xlu0 %4652
        %4654 = vrot.lane.b32.xlu0 %v3734, 120
        %v4655 = vpop.permute.xlu0 %4654
        %4656 = vrot.lane.b32.xlu0 %v3735, 120
        %v4657 = vpop.permute.xlu0 %4656
        %4658 = vrot.lane.b32.xlu0 %v3736, 120
        %v4659 = vpop.permute.xlu0 %4658
        %4660 = vrot.lane.b32.xlu0 %v3737, 120
        %v4661 = vpop.permute.xlu0 %4660
        %4662 = vrot.lane.b32.xlu0 %v3738, 120
        %v4663 = vpop.permute.xlu0 %4662
        %4664 = vrot.lane.b32.xlu0 %v3739, 120
        %v4665 = vpop.permute.xlu0 %4664
        %4666 = vrot.lane.b32.xlu0 %v3740, 120
        %v4667 = vpop.permute.xlu0 %4666
        %4668 = vrot.lane.b32.xlu0 %v3741, 120
        %v4669 = vpop.permute.xlu0 %4668
        %4670 = vrot.lane.b32.xlu0 %v3742, 120
        %v4671 = vpop.permute.xlu0 %4670
        %4704 = vmatprep.subr.mxu0 0.0
        %4705 = vmatpush1.msra.mxu0 %v4609
        %4706 = vmatprep.subr.mxu0 0.0
        %4707 = vmatpush1.msra.mxu0 %v4611
        %4708 = vmatprep.subr.mxu0 0.0
        %4709 = vmatpush1.msra.mxu0 %v4613
        %4710 = vmatprep.subr.mxu0 0.0
        %4711 = vmatpush1.msra.mxu0 %v4615
        %4712 = vmatprep.subr.mxu0 0.0
        %4713 = vmatpush1.msra.mxu0 %v4617
        %4714 = vmatprep.subr.mxu0 0.0
        %4715 = vmatpush1.msra.mxu0 %v4619
        %4716 = vmatprep.subr.mxu0 0.0
        %4717 = vmatpush1.msra.mxu0 %v4621
        %4718 = vmatprep.subr.mxu0 0.0
        %4719 = vmatpush1.msra.mxu0 %v4623
        %4720 = vmatprep.subr.mxu0 0.0
        %4721 = vmatpush1.msra.mxu0 %v4625
        %4722 = vmatprep.subr.mxu0 0.0
        %4723 = vmatpush1.msra.mxu0 %v4627
        %4724 = vmatprep.subr.mxu0 0.0
        %4725 = vmatpush1.msra.mxu0 %v4629
        %4726 = vmatprep.subr.mxu0 0.0
        %4727 = vmatpush1.msra.mxu0 %v4631
        %4728 = vmatprep.subr.mxu0 0.0
        %4729 = vmatpush1.msra.mxu0 %v4633
        %4730 = vmatprep.subr.mxu0 0.0
        %4731 = vmatpush1.msra.mxu0 %v4635
        %4732 = vmatprep.subr.mxu0 0.0
        %4733 = vmatpush1.msra.mxu0 %v4637
        %4734 = vmatprep.subr.mxu0 0.0
        %4735 = vmatpush1.msra.mxu0 %v4639
        %4736 = vmatprep.subr.mxu0 0.0
        %4737 = vmatpush1.msra.mxu0 %v4641
        %4738 = vmatprep.subr.mxu0 0.0
        %4739 = vmatpush1.msra.mxu0 %v4643
        %4740 = vmatprep.subr.mxu0 0.0
        %4741 = vmatpush1.msra.mxu0 %v4645
        %4742 = vmatprep.subr.mxu0 0.0
        %4743 = vmatpush1.msra.mxu0 %v4647
        %4744 = vmatprep.subr.mxu0 0.0
        %4745 = vmatpush1.msra.mxu0 %v4649
        %4746 = vmatprep.subr.mxu0 0.0
        %4747 = vmatpush1.msra.mxu0 %v4651
        %4748 = vmatprep.subr.mxu0 0.0
        %4749 = vmatpush1.msra.mxu0 %v4653
        %4750 = vmatprep.subr.mxu0 0.0
        %4751 = vmatpush1.msra.mxu0 %v4655
        %4752 = vmatprep.subr.mxu0 0.0
        %4753 = vmatpush1.msra.mxu0 %v4657
        %4754 = vmatprep.subr.mxu0 0.0
        %4755 = vmatpush1.msra.mxu0 %v4659
        %4756 = vmatprep.subr.mxu0 0.0
        %4757 = vmatpush1.msra.mxu0 %v4661
        %4758 = vmatprep.subr.mxu0 0.0
        %4759 = vmatpush1.msra.mxu0 %v4663
        %4760 = vmatprep.subr.mxu0 0.0
        %4761 = vmatpush1.msra.mxu0 %v4665
        %4762 = vmatprep.subr.mxu0 0.0
        %4763 = vmatpush1.msra.mxu0 %v4667
        %4764 = vmatprep.subr.mxu0 0.0
        %4765 = vmatpush1.msra.mxu0 %v4669
        %4766 = vmatprep.subr.mxu0 0.0
        %4767 = vmatpush1.msra.mxu0 %v4671
        %4768 = vmatprep.mubr.f32.mxu0 %v4387
        %4769 = vmatmul.mubr.f32.gmra.mrb[0].mxu0 %v4385
        %v4770 = vpop.f32.mrb[0].mxu0
        %v4771 = vadd.f32 0.0, %v4770
        %v4772 = vpop.f32.mrb[0].mxu0
        %4773 = vmatprep.mubr.f32.mxu0 %v4391
        %4774 = vmatmul.mubr.f32.gmra.mrb[0].mxu0 %v4389
        %v4775 = vpop.f32.mrb[0].mxu0
        %v4776 = vadd.f32 0.0, %v4775
        %v4777 = vpop.f32.mrb[0].mxu0
        %4778 = vmatprep.mubr.f32.mxu0 %v4395
        %4779 = vmatmul.mubr.f32.gmra.mrb[0].mxu0 %v4393
        %v4780 = vpop.f32.mrb[0].mxu0
        %v4781 = vadd.f32 0.0, %v4780
        %v4782 = vpop.f32.mrb[0].mxu0
        %4783 = vmatprep.mubr.f32.mxu0 %v4399
        %4784 = vmatmul.mubr.f32.gmra.mrb[0].mxu0 %v4397
        %v4785 = vpop.f32.mrb[0].mxu0
        %v4786 = vadd.f32 0.0, %v4785
        %v4787 = vpop.f32.mrb[0].mxu0
        %4788 = vmatprep.mubr.f32.mxu0 %v4403
        %4789 = vmatmul.mubr.f32.gmra.mrb[0].mxu0 %v4401
        %v4790 = vpop.f32.mrb[0].mxu0
        %v4791 = vadd.f32 0.0, %v4790
        %v4792 = vpop.f32.mrb[0].mxu0
        %4793 = vmatprep.mubr.f32.mxu0 %v4407
        %4794 = vmatmul.mubr.f32.gmra.mrb[0].mxu0 %v4405
        %v4795 = vpop.f32.mrb[0].mxu0
        %v4796 = vadd.f32 0.0, %v4795
        %v4797 = vpop.f32.mrb[0].mxu0
        %4798 = vmatprep.mubr.f32.mxu0 %v4411
        %4799 = vmatmul.mubr.f32.gmra.mrb[0].mxu0 %v4409
        %v4800 = vpop.f32.mrb[0].mxu0
        %v4801 = vadd.f32 0.0, %v4800
        %v4802 = vpop.f32.mrb[0].mxu0
        %4803 = vmatprep.mubr.f32.mxu0 %v4415
        %4804 = vmatmul.mubr.f32.gmra.mrb[0].mxu0 %v4413
        %v4805 = vpop.f32.mrb[0].mxu0
        %v4806 = vadd.f32 0.0, %v4805
        %v4807 = vpop.f32.mrb[0].mxu0
        %4808 = vmatprep.mubr.f32.mxu0 %v4419
        %4809 = vmatmul.mubr.f32.gmra.mrb[0].mxu0 %v4417
        %v4810 = vpop.f32.mrb[0].mxu0
        %v4811 = vadd.f32 0.0, %v4810
        %v4812 = vpop.f32.mrb[0].mxu0
        %4813 = vmatprep.mubr.f32.mxu0 %v4423
        %4814 = vmatmul.mubr.f32.gmra.mrb[0].mxu0 %v4421
        %v4815 = vpop.f32.mrb[0].mxu0
        %v4816 = vadd.f32 0.0, %v4815
        %v4817 = vpop.f32.mrb[0].mxu0
        %4818 = vmatprep.mubr.f32.mxu0 %v4427
        %4819 = vmatmul.mubr.f32.gmra.mrb[0].mxu0 %v4425
        %v4820 = vpop.f32.mrb[0].mxu0
        %v4821 = vadd.f32 0.0, %v4820
        %v4822 = vpop.f32.mrb[0].mxu0
        %4823 = vmatprep.mubr.f32.mxu0 %v4431
        %4824 = vmatmul.mubr.f32.gmra.mrb[0].mxu0 %v4429
        %v4825 = vpop.f32.mrb[0].mxu0
        %v4826 = vadd.f32 0.0, %v4825
        %v4827 = vpop.f32.mrb[0].mxu0
        %4828 = vmatprep.mubr.f32.mxu0 %v4435
        %4829 = vmatmul.mubr.f32.gmra.mrb[0].mxu0 %v4433
        %v4830 = vpop.f32.mrb[0].mxu0
        %v4831 = vadd.f32 0.0, %v4830
        %v4832 = vpop.f32.mrb[0].mxu0
        %4833 = vmatprep.mubr.f32.mxu0 %v4439
        %4834 = vmatmul.mubr.f32.gmra.mrb[0].mxu0 %v4437
        %v4835 = vpop.f32.mrb[0].mxu0
        %v4836 = vadd.f32 0.0, %v4835
        %v4837 = vpop.f32.mrb[0].mxu0
        %4838 = vmatprep.mubr.f32.mxu0 %v4443
        %4839 = vmatmul.mubr.f32.gmra.mrb[0].mxu0 %v4441
        %v4840 = vpop.f32.mrb[0].mxu0
        %v4841 = vadd.f32 0.0, %v4840
        %v4842 = vpop.f32.mrb[0].mxu0
        %4843 = vmatprep.mubr.f32.mxu0 %v4447
        %4844 = vmatmul.mubr.f32.gmra.mrb[0].mxu0 %v4445
        %v4845 = vpop.f32.mrb[0].mxu0
        %v4846 = vadd.f32 0.0, %v4845
        %v4847 = vpop.f32.mrb[0].mxu0
        %4848 = vmatprep.mubr.f32.mxu0 %v4451
        %4849 = vmatmul.mubr.f32.gmra.mrb[0].mxu0 %v4449
        %v4850 = vpop.f32.mrb[0].mxu0
        %v4851 = vadd.f32 0.0, %v4850
        %v4852 = vpop.f32.mrb[0].mxu0
        %4853 = vmatprep.mubr.f32.mxu0 %v4455
        %4854 = vmatmul.mubr.f32.gmra.mrb[0].mxu0 %v4453
        %v4855 = vpop.f32.mrb[0].mxu0
        %v4856 = vadd.f32 0.0, %v4855
        %v4857 = vpop.f32.mrb[0].mxu0
        %4858 = vmatprep.mubr.f32.mxu0 %v4459
        %4859 = vmatmul.mubr.f32.gmra.mrb[0].mxu0 %v4457
        %v4860 = vpop.f32.mrb[0].mxu0
        %v4861 = vadd.f32 0.0, %v4860
        %v4862 = vpop.f32.mrb[0].mxu0
        %4863 = vmatprep.mubr.f32.mxu0 %v4463
        %4864 = vmatmul.mubr.f32.gmra.mrb[0].mxu0 %v4461
        %v4865 = vpop.f32.mrb[0].mxu0
        %v4866 = vadd.f32 0.0, %v4865
        %v4867 = vpop.f32.mrb[0].mxu0
        %4868 = vmatprep.mubr.f32.mxu0 %v4467
        %4869 = vmatmul.mubr.f32.gmra.mrb[0].mxu0 %v4465
        %v4870 = vpop.f32.mrb[0].mxu0
        %v4871 = vadd.f32 0.0, %v4870
        %v4872 = vpop.f32.mrb[0].mxu0
        %4873 = vmatprep.mubr.f32.mxu0 %v4471
        %4874 = vmatmul.mubr.f32.gmra.mrb[0].mxu0 %v4469
        %v4875 = vpop.f32.mrb[0].mxu0
        %v4876 = vadd.f32 0.0, %v4875
        %v4877 = vpop.f32.mrb[0].mxu0
        %4878 = vmatprep.mubr.f32.mxu0 %v4475
        %4879 = vmatmul.mubr.f32.gmra.mrb[0].mxu0 %v4473
        %v4880 = vpop.f32.mrb[0].mxu0
        %v4881 = vadd.f32 0.0, %v4880
        %v4882 = vpop.f32.mrb[0].mxu0
        %4883 = vmatprep.mubr.f32.mxu0 %v4479
        %4884 = vmatmul.mubr.f32.gmra.mrb[0].mxu0 %v4477
        %v4885 = vpop.f32.mrb[0].mxu0
        %v4886 = vadd.f32 0.0, %v4885
        %v4887 = vpop.f32.mrb[0].mxu0
        %4888 = vmatprep.mubr.f32.mxu0 %v4483
        %4889 = vmatmul.mubr.f32.gmra.mrb[0].mxu0 %v4481
        %v4890 = vpop.f32.mrb[0].mxu0
        %v4891 = vadd.f32 0.0, %v4890
        %v4892 = vpop.f32.mrb[0].mxu0
        %4893 = vmatprep.mubr.f32.mxu0 %v4487
        %4894 = vmatmul.mubr.f32.gmra.mrb[0].mxu0 %v4485
        %v4895 = vpop.f32.mrb[0].mxu0
        %v4896 = vadd.f32 0.0, %v4895
        %v4897 = vpop.f32.mrb[0].mxu0
        %4898 = vmatprep.mubr.f32.mxu0 %v4491
        %4899 = vmatmul.mubr.f32.gmra.mrb[0].mxu0 %v4489
        %v4900 = vpop.f32.mrb[0].mxu0
        %v4901 = vadd.f32 0.0, %v4900
        %v4902 = vpop.f32.mrb[0].mxu0
        %4903 = vmatprep.mubr.f32.mxu0 %v4495
        %4904 = vmatmul.mubr.f32.gmra.mrb[0].mxu0 %v4493
        %v4905 = vpop.f32.mrb[0].mxu0
        %v4906 = vadd.f32 0.0, %v4905
        %v4907 = vpop.f32.mrb[0].mxu0
        %4908 = vmatprep.mubr.f32.mxu0 %v4499
        %4909 = vmatmul.mubr.f32.gmra.mrb[0].mxu0 %v4497
        %v4910 = vpop.f32.mrb[0].mxu0
        %v4911 = vadd.f32 0.0, %v4910
        %v4912 = vpop.f32.mrb[0].mxu0
        %4913 = vmatprep.mubr.f32.mxu0 %v4503
        %4914 = vmatmul.mubr.f32.gmra.mrb[0].mxu0 %v4501
        %v4915 = vpop.f32.mrb[0].mxu0
        %v4916 = vadd.f32 0.0, %v4915
        %v4917 = vpop.f32.mrb[0].mxu0
        %4918 = vmatprep.mubr.f32.mxu0 %v4507
        %4919 = vmatmul.mubr.f32.gmra.mrb[0].mxu0 %v4505
        %v4920 = vpop.f32.mrb[0].mxu0
        %v4921 = vadd.f32 0.0, %v4920
        %v4922 = vpop.f32.mrb[0].mxu0
        %4923 = vmatprep.mubr.f32.mxu0 %v4511
        %4924 = vmatmul.mubr.f32.gmra.mrb[0].mxu0 %v4509
        %v4925 = vpop.f32.mrb[0].mxu0
        %v4926 = vadd.f32 0.0, %v4925
        %v4927 = vpop.f32.mrb[0].mxu0
        %4928 = vdwg.mxu0
        %v4929 = vrcp.pop %v4514
        %v4930 = vrcp.pop %v4517
        %v4931 = vrcp.pop %v4520
        %v4932 = vrcp.pop %v4523
        %v4933 = vrcp.pop %v4526
        %v4934 = vrcp.pop %v4529
        %v4935 = vrcp.pop %v4532
        %v4936 = vrcp.pop %v4535
        %v4937 = vrcp.pop %v4538
        %v4938 = vrcp.pop %v4541
        %v4939 = vrcp.pop %v4544
        %v4940 = vrcp.pop %v4547
        %v4941 = vrcp.pop %v4550
        %v4942 = vrcp.pop %v4553
        %v4943 = vrcp.pop %v4556
        %v4944 = vrcp.pop %v4559
        %v4945 = vrcp.pop %v4562
        %v4946 = vrcp.pop %v4565
        %v4947 = vrcp.pop %v4568
        %v4948 = vrcp.pop %v4571
        %v4949 = vrcp.pop %v4574
        %v4950 = vrcp.pop %v4577
        %v4951 = vrcp.pop %v4580
        %v4952 = vrcp.pop %v4583
        %v4953 = vrcp.pop %v4586
        %v4954 = vrcp.pop %v4589
        %v4955 = vrcp.pop %v4592
        %v4956 = vrcp.pop %v4595
        %v4957 = vrcp.pop %v4598
        %v4958 = vrcp.pop %v4601
        %v4959 = vrcp.pop %v4604
        %v4960 = vrcp.pop %v4607
        %v4961 = vmul.f32 %v4771, %v4929
        %v4962 = vmul.f32 %v4776, %v4930
        %v4963 = vmul.f32 %v4781, %v4931
        %v4964 = vmul.f32 %v4786, %v4932
        %v4965 = vmul.f32 %v4791, %v4933
        %v4966 = vmul.f32 %v4796, %v4934
        %v4967 = vmul.f32 %v4801, %v4935
        %v4968 = vmul.f32 %v4806, %v4936
        %v4969 = vmul.f32 %v4811, %v4937
        %v4970 = vmul.f32 %v4816, %v4938
        %v4971 = vmul.f32 %v4821, %v4939
        %v4972 = vmul.f32 %v4826, %v4940
        %v4973 = vmul.f32 %v4831, %v4941
        %v4974 = vmul.f32 %v4836, %v4942
        %v4975 = vmul.f32 %v4841, %v4943
        %v4976 = vmul.f32 %v4846, %v4944
        %v4977 = vmul.f32 %v4851, %v4945
        %v4978 = vmul.f32 %v4856, %v4946
        %v4979 = vmul.f32 %v4861, %v4947
        %v4980 = vmul.f32 %v4866, %v4948
        %v4981 = vmul.f32 %v4871, %v4949
        %v4982 = vmul.f32 %v4876, %v4950
        %v4983 = vmul.f32 %v4881, %v4951
        %v4984 = vmul.f32 %v4886, %v4952
        %v4985 = vmul.f32 %v4891, %v4953
        %v4986 = vmul.f32 %v4896, %v4954
        %v4987 = vmul.f32 %v4901, %v4955
        %v4988 = vmul.f32 %v4906, %v4956
        %v4989 = vmul.f32 %v4911, %v4957
        %v4990 = vmul.f32 %v4916, %v4958
        %v4991 = vmul.f32 %v4921, %v4959
        %v4992 = vmul.f32 %v4926, %v4960
        %v4993 = vld [vmem:[%s3] sm:$0xff]
        %v4994 = vld [vmem:[%s4] sm:$0xff]
        %4996 = vset.pattern.permute.xlu0 0
        %4997 = vperm.xlu0 %4996, %v4994
        %v4998 = vpop.permute.xlu0 %4997
        %v5001 = vsel %vm263, %v4993, 0
        %v5004 = vsel %vm263, %v4961, 0
        %v5007 = vsel %vm263, %v4962, 0
        %v5010 = vsel %vm263, %v4963, 0
        %v5013 = vsel %vm263, %v4964, 0
        %v5016 = vsel %vm263, %v4965, 0
        %v5019 = vsel %vm263, %v4966, 0
        %v5022 = vsel %vm263, %v4967, 0
        %v5025 = vsel %vm263, %v4968, 0
        %v5028 = vsel %vm263, %v4969, 0
        %v5031 = vsel %vm263, %v4970, 0
        %v5034 = vsel %vm263, %v4971, 0
        %v5037 = vsel %vm263, %v4972, 0
        %v5040 = vsel %vm263, %v4973, 0
        %v5043 = vsel %vm263, %v4974, 0
        %v5046 = vsel %vm263, %v4975, 0
        %v5049 = vsel %vm263, %v4976, 0
        %v5052 = vsel %vm263, %v4977, 0
        %v5055 = vsel %vm263, %v4978, 0
        %v5058 = vsel %vm263, %v4979, 0
        %v5061 = vsel %vm263, %v4980, 0
        %v5064 = vsel %vm263, %v4981, 0
        %v5067 = vsel %vm263, %v4982, 0
        %v5070 = vsel %vm263, %v4983, 0
        %v5073 = vsel %vm263, %v4984, 0
        %v5076 = vsel %vm263, %v4985, 0
        %v5079 = vsel %vm263, %v4986, 0
        %v5082 = vsel %vm263, %v4987, 0
        %v5085 = vsel %vm263, %v4988, 0
        %v5088 = vsel %vm263, %v4989, 0
        %v5091 = vsel %vm263, %v4990, 0
        %v5094 = vsel %vm263, %v4991, 0
        %v5097 = vsel %vm263, %v4992, 0
        %5099 = vmatprep.subr.mxu0 0.0
        %5100 = vmatpush1.xpose.msra.mxu0 %v5004
        %5101 = vmatprep.subr.mxu0 0.0
        %5102 = vmatpush1.xpose.msra.mxu0 %v5007
        %5103 = vmatprep.subr.mxu0 0.0
        %5104 = vmatpush1.xpose.msra.mxu0 %v5010
        %5105 = vmatprep.subr.mxu0 0.0
        %5106 = vmatpush1.xpose.msra.mxu0 %v5013
        %5107 = vmatprep.subr.mxu0 0.0
        %5108 = vmatpush1.xpose.msra.mxu0 %v5016
        %5109 = vmatprep.subr.mxu0 0.0
        %5110 = vmatpush1.xpose.msra.mxu0 %v5019
        %5111 = vmatprep.subr.mxu0 0.0
        %5112 = vmatpush1.xpose.msra.mxu0 %v5022
        %5113 = vmatprep.subr.mxu0 0.0
        %5114 = vmatpush1.xpose.msra.mxu0 %v5025
        %5115 = vmatprep.subr.mxu0 0.0
        %5116 = vmatpush1.xpose.msra.mxu0 %v5028
        %5117 = vmatprep.subr.mxu0 0.0
        %5118 = vmatpush1.xpose.msra.mxu0 %v5031
        %5119 = vmatprep.subr.mxu0 0.0
        %5120 = vmatpush1.xpose.msra.mxu0 %v5034
        %5121 = vmatprep.subr.mxu0 0.0
        %5122 = vmatpush1.xpose.msra.mxu0 %v5037
        %5123 = vmatprep.subr.mxu0 0.0
        %5124 = vmatpush1.xpose.msra.mxu0 %v5040
        %5125 = vmatprep.subr.mxu0 0.0
        %5126 = vmatpush1.xpose.msra.mxu0 %v5043
        %5127 = vmatprep.subr.mxu0 0.0
        %5128 = vmatpush1.xpose.msra.mxu0 %v5046
        %5129 = vmatprep.subr.mxu0 0.0
        %5130 = vmatpush1.xpose.msra.mxu0 %v5049
        %5131 = vmatprep.subr.mxu0 0.0
        %5132 = vmatpush1.xpose.msra.mxu0 %v5052
        %5133 = vmatprep.subr.mxu0 0.0
        %5134 = vmatpush1.xpose.msra.mxu0 %v5055
        %5135 = vmatprep.subr.mxu0 0.0
        %5136 = vmatpush1.xpose.msra.mxu0 %v5058
        %5137 = vmatprep.subr.mxu0 0.0
        %5138 = vmatpush1.xpose.msra.mxu0 %v5061
        %5139 = vmatprep.subr.mxu0 0.0
        %5140 = vmatpush1.xpose.msra.mxu0 %v5064
        %5141 = vmatprep.subr.mxu0 0.0
        %5142 = vmatpush1.xpose.msra.mxu0 %v5067
        %5143 = vmatprep.subr.mxu0 0.0
        %5144 = vmatpush1.xpose.msra.mxu0 %v5070
        %5145 = vmatprep.subr.mxu0 0.0
        %5146 = vmatpush1.xpose.msra.mxu0 %v5073
        %5147 = vmatprep.subr.mxu0 0.0
        %5148 = vmatpush1.xpose.msra.mxu0 %v5076
        %5149 = vmatprep.subr.mxu0 0.0
        %5150 = vmatpush1.xpose.msra.mxu0 %v5079
        %5151 = vmatprep.subr.mxu0 0.0
        %5152 = vmatpush1.xpose.msra.mxu0 %v5082
        %5153 = vmatprep.subr.mxu0 0.0
        %5154 = vmatpush1.xpose.msra.mxu0 %v5085
        %5155 = vmatprep.subr.mxu0 0.0
        %5156 = vmatpush1.xpose.msra.mxu0 %v5088
        %5157 = vmatprep.subr.mxu0 0.0
        %5158 = vmatpush1.xpose.msra.mxu0 %v5091
        %5159 = vmatprep.subr.mxu0 0.0
        %5160 = vmatpush1.xpose.msra.mxu0 %v5094
        %5161 = vmatprep.subr.mxu0 0.0
        %5162 = vmatpush1.xpose.msra.mxu0 %v5097
        %5163 = vmatprep.mubr.f32.mxu0 0.0
        %5164 = vmatmul.mubr.f32.gmra.mrb[0].mxu0 %v5001
        %v5165 = vpop.f32.mrb[0].mxu0
        %v5166 = vadd.f32 %v4998, %v5165
        %v5167 = vpop.f32.mrb[0].mxu0
        %v5168 = vadd.f32 %v4998, %v5167
        %5169 = vdwg.mxu0
        %5170 = vst [vmem:[%s217] sm:$0xff] %v5166
        %5171 = vst [vmem:[%s217 + $0x8] sm:$0xff] %v5168
        %s5172 = sand.u32 %s137, 1
        %s5173 = scalar_lea.sflag [#allocation3], %s5172
        %s5174 = sand.u32 %s137, 1
        %s5175 = smul.addr %s5174, 16
        %s5176 = scalar_lea.vmem [#allocation2], %s5175
        // Predicated region
        $region41: #{tpu_custom_call.1} parent=39 // pred_check
          %p5177 = pneg %p147
        $region42: #{tpu_custom_call.1} parent=39 // pred_check_branch
          %5179 = sbr.rel (%p5177) target = $region44
        $region43: #{tpu_custom_call.1} parent=39 // pred_region
          %s5181 = ssub.s32 256, 256
          %5182 = vsyncadd %s5173, %s5181
          %s5183 = smul.addr %s19, 2
          %s5184 = smul.addr %s5183, 128
          %s5185 = scalar_lea.hbm %s5, %s5184
          %s5187 = sshll.u32 %s5176, 4
          %s5188 = int_to_ptr.vmem [resolvable:$true] %s5187
          %5190 = dma.vmem_to_hbm [thread:$0]  %s5188, 256, %s5185, %s5173
        $region44: #{tpu_custom_call.1} parent=39 // pred_fallthru
          _
      $region40: #{tpu_custom_call.1} parent=5 // pred_fallthru
        _
      %p5191 = scmp.le.s32.totalorder 2, %s14
      // Predicated region
      $region45: #{tpu_custom_call.1} parent=5 // pred_check
        %p5192 = pneg %p5191
      $region46: #{tpu_custom_call.1} parent=5 // pred_check_branch
        %5194 = sbr.rel (%p5192) target = $region48
      $region47: #{tpu_custom_call.1} parent=5 // pred_region
        %s5195 = ssub.s32 %s14, 2
        // Predicated region
        $region49: #{tpu_custom_call.1} parent=47 // pred_check
          %p5196 = pneg %p153
        $region50: #{tpu_custom_call.1} parent=47 // pred_check_branch
          %5198 = sbr.rel (%p5196) target = $region52
        $region51: #{tpu_custom_call.1} parent=47 // pred_region
          %s5199 = sand.u32 %s138, 1
          %s5200 = scalar_lea.sflag [#allocation3], %s5199
          %s5201 = sand.u32 %s138, 1
          %s5202 = smul.addr %s5201, 16
          %s5203 = scalar_lea.vmem [#allocation2], %s5202
          %5204 = dma.done %s5200, 256
        $region52: #{tpu_custom_call.1} parent=47 // pred_fallthru
          _
      $region48: #{tpu_custom_call.1} parent=5 // pred_fallthru
        _
    $region6: #{tpu_custom_call.1} parent=1 // loop_footer
      %s18 = sadd.s32 1, %s14
    $region7: #{tpu_custom_call.1} parent=1 // loop_footer_branch
      %13 = sbr.rel target = $region3
    $region8: #{tpu_custom_call.1} parent=1 // loop_exit
      _
    %5205 = vsyncpa [#allocation3], 1
    %s5206 = scalar_lea.sflag [#allocation3], 1
    %5207 = vsyncpa %s5206, 1

</llo_original>
